<compile_context>
chip_gen: v5e
topology: v5e:2x2
jax: 0.10.0
libtpu: 0.0.40
codegen_flags: <defaults>
</compile_context>

<pallas_src>
import jax
import jax.numpy as jnp
from jax.experimental import pallas as pl
from jax.experimental.pallas import tpu as pltpu

LEAKY_SLOPE = 0.01      # nn.LeakyReLU default negative_slope
BN_EPS = 1e-5           # nn.BatchNorm1d default eps
HIDDEN = (500, 400, 300, 200, 100, 50)
LANE = 128
SUBLANE_BF16 = 16       # bf16 packs 16 sublanes per vreg


def _round_up(n, m):
    return (n + m - 1) // m * m


def _make_kernel(layout, batch_valid, batch_pad, out_valid):
    """Fused MLP kernel.  `layout[i] = (row_off, k_pad, n_pad)` describes where
    layer i's column-blocks live inside the packed weight buffer."""
    n_layers = len(layout)

    def kernel(x_ref, w_ref, b_ref, out_ref):
        h = x_ref[...]                               # (batch_pad, f_pad) f32

        # Padded batch rows carry bias/BN-shift values after layer 0, so BN
        # statistics must only see the real rows.
        need_row_mask = batch_pad != batch_valid
        if need_row_mask:
            row_ids = jax.lax.broadcasted_iota(jnp.int32, (batch_pad, 1), 0)
            row_valid = row_ids < batch_valid
        inv_b = jnp.float32(1.0 / batch_valid)

        for i, (row_off, k_pad, n_pad) in enumerate(layout):
            # ---- Linear on the MXU: bf16 x bf16 -> f32 accumulation --------
            h16 = h.astype(jnp.bfloat16)
            cols = []
            for j in range(n_pad // LANE):
                w_blk = w_ref[pl.ds(row_off + j * k_pad, k_pad), :]  # (k_pad,128)
                cols.append(jnp.dot(h16, w_blk,
                                    preferred_element_type=jnp.float32))
            h = cols[0] if len(cols) == 1 else jnp.concatenate(cols, axis=-1)
            h = h + b_ref[pl.ds(i, 1), pl.ds(0, n_pad)]

            if i < n_layers - 1:
                # LeakyReLU (f32 on the VPU).
                h = jnp.where(h >= 0, h, LEAKY_SLOPE * h)

                # BatchNorm1d, training mode (biased variance), two-pass.
                hm = jnp.where(row_valid, h, 0.0) if need_row_mask else h
                mean = jnp.sum(hm, axis=0, keepdims=True) * inv_b
                cent = h - mean
                cm = jnp.where(row_valid, cent, 0.0) if need_row_mask else cent
                var = jnp.sum(cm * cm, axis=0, keepdims=True) * inv_b
                h = cent * jax.lax.rsqrt(var + BN_EPS)
                # Zero-padded lanes: mean = var = 0 -> stay exactly 0.
            else:
                # LogSoftmax over the real `out_valid` lanes only; padded
                # logit lanes are masked with -inf so they don't affect the
                # max or the sum.
                lane_ids = jax.lax.broadcasted_iota(
                    jnp.int32, (batch_pad, n_pad), 1)
                lane_valid = lane_ids < out_valid
                hv = jnp.where(lane_valid, h, -jnp.inf)
                m = jnp.max(hv, axis=-1, keepdims=True)
                s = hv - m
                lse = jnp.log(jnp.sum(jnp.exp(s), axis=-1, keepdims=True))
                h = jnp.where(lane_valid, s - lse, 0.0)

        out_ref[...] = h.astype(out_ref.dtype)

    return kernel


def prepare_params(weights, biases):
    """One-time packing of parameters (call ONCE, cache the result).

    weights[i]: (in_i, out_i) f32, biases[i]: (1, out_i) f32.

    Returns:
      w_packed: (total_rows, 128) bf16 - every weight, zero-padded to
                (k_pad, n_pad), stored as n_pad/128 column blocks of
                (k_pad, 128) stacked along rows.
      b_packed: (rows, 512) f32 - bias i in row i, zero-padded.
      layout:   tuple of (row_off, k_pad, n_pad) per layer (static metadata).
    """
    n_layers = len(weights)
    n_pads = [_round_up(w.shape[1], LANE) for w in weights]
    b_cols = max(n_pads)
    b_packed = jnp.zeros((_round_up(n_layers, 8), b_cols), jnp.float32)

    layout = []
    w_blocks = []
    row_off = 0
    prev_n_pad = None
    for i, (w, b) in enumerate(zip(weights, biases)):
        k, n = w.shape
        n_pad = n_pads[i]
        # K must match the incoming activation's lane width: previous layer's
        # n_pad for i>0; for layer 0 pad only to the bf16 sublane multiple.
        k_pad = _round_up(k, SUBLANE_BF16) if i == 0 else prev_n_pad
        w_p = jnp.zeros((k_pad, n_pad), jnp.bfloat16)
        w_p = w_p.at[:k, :n].set(w.astype(jnp.bfloat16))
        for j in range(n_pad // LANE):
            w_blocks.append(w_p[:, j * LANE:(j + 1) * LANE])
        b_packed = b_packed.at[i, :n].set(b.reshape(-1))
        layout.append((row_off, k_pad, n_pad))
        row_off += k_pad * (n_pad // LANE)
        prev_n_pad = n_pad

    w_packed = jnp.concatenate(w_blocks, axis=0)
    return w_packed, b_packed, tuple(layout)


def image_classifier_forward(x, w_packed, b_packed, *, layout, output_size):
    """x: (B, input_size) f32; w_packed/b_packed/layout from prepare_params."""
    B, F = x.shape
    b_pad = _round_up(B, SUBLANE_BF16)
    f_pad = layout[0][1]
    out_pad = layout[-1][2]

    x_p = jnp.zeros((b_pad, f_pad), jnp.float32).at[:B, :F].set(x)

    kernel = _make_kernel(layout, B, b_pad, output_size)
    vmem = pl.BlockSpec(memory_space=pltpu.MemorySpace.VMEM)

    flops = 2 * b_pad * sum(k * n for _, k, n in layout)
    transcendentals = b_pad * (sum(n for _, _, n in layout[:-1]) + 2 * out_pad)
    bytes_accessed = (w_packed.size * 2 + b_packed.size * 4
                      + x_p.size * 4 + b_pad * out_pad * 4)

    out = pl.pallas_call(
        kernel,
        out_shape=jax.ShapeDtypeStruct((b_pad, out_pad), jnp.float32),
        in_specs=[vmem, vmem, vmem],
        out_specs=vmem,
        cost_estimate=pl.CostEstimate(flops=flops,
                                      transcendentals=transcendentals,
                                      bytes_accessed=bytes_accessed),
    )(x_p, w_packed, b_packed)
    return out[:B, :output_size]


def init_params(key, input_size, output_size):
    """Deterministic PyTorch-style Linear init: U(-1/sqrt(in), 1/sqrt(in))."""
    dims = (input_size,) + HIDDEN + (output_size,)
    weights, biases = [], []
    for i in range(len(dims) - 1):
        fan_in, fan_out = dims[i], dims[i + 1]
        key, kw, kb = jax.random.split(key, 3)
        bound = 1.0 / (fan_in ** 0.5)
        # stored already transposed to (in, out)
        w = jax.random.uniform(kw, (fan_in, fan_out), jnp.float32, -bound, bound)
        b = jax.random.uniform(kb, (1, fan_out), jnp.float32, -bound, bound)
        weights.append(w)
        biases.append(b)
    return weights, biases


def reference_forward(x, weights, biases):
    """Pure-JAX reference matching the PyTorch module (training-mode BN).

    Uses the same bf16 matmul operands / f32 accumulation as the kernel so the
    comparison isolates the Pallas implementation (not the dtype choice).
    """
    h = x
    n = len(weights)
    for i in range(n):
        h = jnp.dot(h.astype(jnp.bfloat16), weights[i].astype(jnp.bfloat16),
                    preferred_element_type=jnp.float32) + biases[i]
        if i < n - 1:
            h = jnp.where(h >= 0, h, LEAKY_SLOPE * h)
            mean = jnp.mean(h, axis=0, keepdims=True)
            var = jnp.mean((h - mean) ** 2, axis=0, keepdims=True)
            h = (h - mean) / jnp.sqrt(var + BN_EPS)
        else:
            h = jax.nn.log_softmax(h, axis=-1)
    return h


if __name__ == "__main__":
    B = 8
    INPUT_SIZE = 32
    OUTPUT_SIZE = 10

    key = jax.random.PRNGKey(0)
    key, kx = jax.random.split(key)
    x = jax.random.normal(kx, (B, INPUT_SIZE), jnp.float32)
    weights, biases = init_params(key, INPUT_SIZE, OUTPUT_SIZE)

    # One-time parameter packing (cached across calls).
    w_packed, b_packed, layout = prepare_params(weights, biases)
    w_packed = jax.block_until_ready(w_packed)
    b_packed = jax.block_until_ready(b_packed)

    fwd = jax.jit(image_classifier_forward,
                  static_argnames=("layout", "output_size"))

    y = fwd(x, w_packed, b_packed, layout=layout, output_size=OUTPUT_SIZE)
    y = jax.block_until_ready(y)

    y_ref = reference_forward(x, weights, biases)
    assert y.shape == (B, OUTPUT_SIZE)
    assert jnp.allclose(y, y_ref, atol=5e-3, rtol=5e-3), "mismatch vs reference"

    print("KERNEL_OK")
</pallas_src>

<mosaic_0001>
module attributes {stable_mosaic.version = 11 : i64} {
  func.func @kernel(%arg0: memref<16x32xf32, #tpu.memory_space<vmem>>, %arg1: memref<4992x128xbf16, #tpu.memory_space<vmem>>, %arg2: memref<8x512xf32, #tpu.memory_space<vmem>>, %arg3: memref<16x128xf32, #tpu.memory_space<vmem>>) attributes {dimension_semantics = [], scalar_prefetch = 0 : i64, scratch_operands = 0 : i64, tpu.core_type = #tpu.core_type<tc>} {
    %c0 = arith.constant 0 : index
    %c0_0 = arith.constant 0 : index
    %0 = vector.load %arg0[%c0, %c0_0] : memref<16x32xf32, #tpu.memory_space<vmem>>, vector<16x32xf32>
    %1 = tpu.iota {dimensions = array<i32: 0>} : vector<16x1xi32>
    %c8_i32 = arith.constant 8 : i32
    %2 = vector.broadcast %c8_i32 : i32 to vector<16x1xi32>
    %3 = arith.cmpi slt, %1, %2 : vector<16x1xi32>
    %4 = arith.truncf %0 : vector<16x32xf32> to vector<16x32xbf16>
    %c0_1 = arith.constant 0 : index
    %c0_2 = arith.constant 0 : index
    %5 = vector.load %arg1[%c0_1, %c0_2] : memref<4992x128xbf16, #tpu.memory_space<vmem>>, vector<32x128xbf16>
    %cst = arith.constant dense<0.000000e+00> : vector<16x128xf32>
    %6 = tpu.matmul %4, %5, %cst {dimension_numbers = #tpu.dot_dimension_numbers<[1], [0], [0], [1], [0, 0, 1, 1], [], []>} : vector<16x32xbf16>, vector<32x128xbf16>, vector<16x128xf32> -> vector<16x128xf32>
    %c32 = arith.constant 32 : index
    %c0_3 = arith.constant 0 : index
    %7 = vector.load %arg1[%c32, %c0_3] : memref<4992x128xbf16, #tpu.memory_space<vmem>>, vector<32x128xbf16>
    %cst_4 = arith.constant dense<0.000000e+00> : vector<16x128xf32>
    %8 = tpu.matmul %4, %7, %cst_4 {dimension_numbers = #tpu.dot_dimension_numbers<[1], [0], [0], [1], [0, 0, 1, 1], [], []>} : vector<16x32xbf16>, vector<32x128xbf16>, vector<16x128xf32> -> vector<16x128xf32>
    %c64 = arith.constant 64 : index
    %c0_5 = arith.constant 0 : index
    %9 = vector.load %arg1[%c64, %c0_5] : memref<4992x128xbf16, #tpu.memory_space<vmem>>, vector<32x128xbf16>
    %cst_6 = arith.constant dense<0.000000e+00> : vector<16x128xf32>
    %10 = tpu.matmul %4, %9, %cst_6 {dimension_numbers = #tpu.dot_dimension_numbers<[1], [0], [0], [1], [0, 0, 1, 1], [], []>} : vector<16x32xbf16>, vector<32x128xbf16>, vector<16x128xf32> -> vector<16x128xf32>
    %c96 = arith.constant 96 : index
    %c0_7 = arith.constant 0 : index
    %11 = vector.load %arg1[%c96, %c0_7] : memref<4992x128xbf16, #tpu.memory_space<vmem>>, vector<32x128xbf16>
    %cst_8 = arith.constant dense<0.000000e+00> : vector<16x128xf32>
    %12 = tpu.matmul %4, %11, %cst_8 {dimension_numbers = #tpu.dot_dimension_numbers<[1], [0], [0], [1], [0, 0, 1, 1], [], []>} : vector<16x32xbf16>, vector<32x128xbf16>, vector<16x128xf32> -> vector<16x128xf32>
    %13 = tpu.concatenate %6, %8, %10, %12 in 1 : vector<16x128xf32>, vector<16x128xf32>, vector<16x128xf32>, vector<16x128xf32> -> vector<16x512xf32>
    %c0_9 = arith.constant 0 : index
    %c0_10 = arith.constant 0 : index
    %14 = vector.load %arg2[%c0_9, %c0_10] : memref<8x512xf32, #tpu.memory_space<vmem>>, vector<1x512xf32>
    %15 = vector.broadcast %14 : vector<1x512xf32> to vector<16x512xf32>
    %16 = arith.addf %13, %15 : vector<16x512xf32>
    %cst_11 = arith.constant 0.000000e+00 : f32
    %17 = vector.broadcast %cst_11 : f32 to vector<16x512xf32>
    %18 = arith.cmpf oge, %16, %17 : vector<16x512xf32>
    %cst_12 = arith.constant 0.00999999977 : f32
    %19 = vector.broadcast %cst_12 : f32 to vector<16x512xf32>
    %20 = arith.mulf %19, %16 : vector<16x512xf32>
    %21 = arith.select %18, %16, %20 : vector<16x512xi1>, vector<16x512xf32>
    %cst_13 = arith.constant 0.000000e+00 : f32
    %22 = vector.shape_cast %3 : vector<16x1xi1> to vector<16x1xi1>
    %23 = vector.broadcast %22 : vector<16x1xi1> to vector<16x512xi1>
    %24 = vector.broadcast %cst_13 : f32 to vector<16x512xf32>
    %25 = arith.select %23, %21, %24 : vector<16x512xi1>, vector<16x512xf32>
    %cst_14 = arith.constant dense<0.000000e+00> : vector<512xf32>
    %26 = vector.multi_reduction <add>, %25, %cst_14 [0] : vector<16x512xf32> to vector<512xf32>
    %27 = vector.shape_cast %26 : vector<512xf32> to vector<1x512xf32>
    %cst_15 = arith.constant 1.250000e-01 : f32
    %28 = vector.broadcast %cst_15 : f32 to vector<1x512xf32>
    %29 = arith.mulf %27, %28 : vector<1x512xf32>
    %30 = vector.broadcast %29 : vector<1x512xf32> to vector<16x512xf32>
    %31 = arith.subf %21, %30 : vector<16x512xf32>
    %cst_16 = arith.constant 0.000000e+00 : f32
    %32 = vector.shape_cast %3 : vector<16x1xi1> to vector<16x1xi1>
    %33 = vector.broadcast %32 : vector<16x1xi1> to vector<16x512xi1>
    %34 = vector.broadcast %cst_16 : f32 to vector<16x512xf32>
    %35 = arith.select %33, %31, %34 : vector<16x512xi1>, vector<16x512xf32>
    %36 = arith.mulf %35, %35 : vector<16x512xf32>
    %cst_17 = arith.constant dense<0.000000e+00> : vector<512xf32>
    %37 = vector.multi_reduction <add>, %36, %cst_17 [0] : vector<16x512xf32> to vector<512xf32>
    %38 = vector.shape_cast %37 : vector<512xf32> to vector<1x512xf32>
    %cst_18 = arith.constant 1.250000e-01 : f32
    %39 = vector.broadcast %cst_18 : f32 to vector<1x512xf32>
    %40 = arith.mulf %38, %39 : vector<1x512xf32>
    %cst_19 = arith.constant 9.99999974E-6 : f32
    %41 = vector.broadcast %cst_19 : f32 to vector<1x512xf32>
    %42 = arith.addf %40, %41 : vector<1x512xf32>
    %43 = math.rsqrt %42 : vector<1x512xf32>
    %44 = vector.broadcast %43 : vector<1x512xf32> to vector<16x512xf32>
    %45 = arith.mulf %31, %44 : vector<16x512xf32>
    %46 = arith.truncf %45 : vector<16x512xf32> to vector<16x512xbf16>
    %c128 = arith.constant 128 : index
    %c0_20 = arith.constant 0 : index
    %47 = vector.load %arg1[%c128, %c0_20] : memref<4992x128xbf16, #tpu.memory_space<vmem>>, vector<512x128xbf16>
    %cst_21 = arith.constant dense<0.000000e+00> : vector<16x128xf32>
    %48 = tpu.matmul %46, %47, %cst_21 {dimension_numbers = #tpu.dot_dimension_numbers<[1], [0], [0], [1], [0, 0, 1, 1], [], []>} : vector<16x512xbf16>, vector<512x128xbf16>, vector<16x128xf32> -> vector<16x128xf32>
    %c640 = arith.constant 640 : index
    %c0_22 = arith.constant 0 : index
    %49 = vector.load %arg1[%c640, %c0_22] : memref<4992x128xbf16, #tpu.memory_space<vmem>>, vector<512x128xbf16>
    %cst_23 = arith.constant dense<0.000000e+00> : vector<16x128xf32>
    %50 = tpu.matmul %46, %49, %cst_23 {dimension_numbers = #tpu.dot_dimension_numbers<[1], [0], [0], [1], [0, 0, 1, 1], [], []>} : vector<16x512xbf16>, vector<512x128xbf16>, vector<16x128xf32> -> vector<16x128xf32>
    %c1152 = arith.constant 1152 : index
    %c0_24 = arith.constant 0 : index
    %51 = vector.load %arg1[%c1152, %c0_24] : memref<4992x128xbf16, #tpu.memory_space<vmem>>, vector<512x128xbf16>
    %cst_25 = arith.constant dense<0.000000e+00> : vector<16x128xf32>
    %52 = tpu.matmul %46, %51, %cst_25 {dimension_numbers = #tpu.dot_dimension_numbers<[1], [0], [0], [1], [0, 0, 1, 1], [], []>} : vector<16x512xbf16>, vector<512x128xbf16>, vector<16x128xf32> -> vector<16x128xf32>
    %c1664 = arith.constant 1664 : index
    %c0_26 = arith.constant 0 : index
    %53 = vector.load %arg1[%c1664, %c0_26] : memref<4992x128xbf16, #tpu.memory_space<vmem>>, vector<512x128xbf16>
    %cst_27 = arith.constant dense<0.000000e+00> : vector<16x128xf32>
    %54 = tpu.matmul %46, %53, %cst_27 {dimension_numbers = #tpu.dot_dimension_numbers<[1], [0], [0], [1], [0, 0, 1, 1], [], []>} : vector<16x512xbf16>, vector<512x128xbf16>, vector<16x128xf32> -> vector<16x128xf32>
    %55 = tpu.concatenate %48, %50, %52, %54 in 1 : vector<16x128xf32>, vector<16x128xf32>, vector<16x128xf32>, vector<16x128xf32> -> vector<16x512xf32>
    %c1 = arith.constant 1 : index
    %c0_28 = arith.constant 0 : index
    %56 = vector.load %arg2[%c1, %c0_28] : memref<8x512xf32, #tpu.memory_space<vmem>>, vector<1x512xf32>
    %57 = vector.broadcast %56 : vector<1x512xf32> to vector<16x512xf32>
    %58 = arith.addf %55, %57 : vector<16x512xf32>
    %cst_29 = arith.constant 0.000000e+00 : f32
    %59 = vector.broadcast %cst_29 : f32 to vector<16x512xf32>
    %60 = arith.cmpf oge, %58, %59 : vector<16x512xf32>
    %cst_30 = arith.constant 0.00999999977 : f32
    %61 = vector.broadcast %cst_30 : f32 to vector<16x512xf32>
    %62 = arith.mulf %61, %58 : vector<16x512xf32>
    %63 = arith.select %60, %58, %62 : vector<16x512xi1>, vector<16x512xf32>
    %cst_31 = arith.constant 0.000000e+00 : f32
    %64 = vector.shape_cast %3 : vector<16x1xi1> to vector<16x1xi1>
    %65 = vector.broadcast %64 : vector<16x1xi1> to vector<16x512xi1>
    %66 = vector.broadcast %cst_31 : f32 to vector<16x512xf32>
    %67 = arith.select %65, %63, %66 : vector<16x512xi1>, vector<16x512xf32>
    %cst_32 = arith.constant dense<0.000000e+00> : vector<512xf32>
    %68 = vector.multi_reduction <add>, %67, %cst_32 [0] : vector<16x512xf32> to vector<512xf32>
    %69 = vector.shape_cast %68 : vector<512xf32> to vector<1x512xf32>
    %cst_33 = arith.constant 1.250000e-01 : f32
    %70 = vector.broadcast %cst_33 : f32 to vector<1x512xf32>
    %71 = arith.mulf %69, %70 : vector<1x512xf32>
    %72 = vector.broadcast %71 : vector<1x512xf32> to vector<16x512xf32>
    %73 = arith.subf %63, %72 : vector<16x512xf32>
    %cst_34 = arith.constant 0.000000e+00 : f32
    %74 = vector.shape_cast %3 : vector<16x1xi1> to vector<16x1xi1>
    %75 = vector.broadcast %74 : vector<16x1xi1> to vector<16x512xi1>
    %76 = vector.broadcast %cst_34 : f32 to vector<16x512xf32>
    %77 = arith.select %75, %73, %76 : vector<16x512xi1>, vector<16x512xf32>
    %78 = arith.mulf %77, %77 : vector<16x512xf32>
    %cst_35 = arith.constant dense<0.000000e+00> : vector<512xf32>
    %79 = vector.multi_reduction <add>, %78, %cst_35 [0] : vector<16x512xf32> to vector<512xf32>
    %80 = vector.shape_cast %79 : vector<512xf32> to vector<1x512xf32>
    %cst_36 = arith.constant 1.250000e-01 : f32
    %81 = vector.broadcast %cst_36 : f32 to vector<1x512xf32>
    %82 = arith.mulf %80, %81 : vector<1x512xf32>
    %cst_37 = arith.constant 9.99999974E-6 : f32
    %83 = vector.broadcast %cst_37 : f32 to vector<1x512xf32>
    %84 = arith.addf %82, %83 : vector<1x512xf32>
    %85 = math.rsqrt %84 : vector<1x512xf32>
    %86 = vector.broadcast %85 : vector<1x512xf32> to vector<16x512xf32>
    %87 = arith.mulf %73, %86 : vector<16x512xf32>
    %88 = arith.truncf %87 : vector<16x512xf32> to vector<16x512xbf16>
    %c2176 = arith.constant 2176 : index
    %c0_38 = arith.constant 0 : index
    %89 = vector.load %arg1[%c2176, %c0_38] : memref<4992x128xbf16, #tpu.memory_space<vmem>>, vector<512x128xbf16>
    %cst_39 = arith.constant dense<0.000000e+00> : vector<16x128xf32>
    %90 = tpu.matmul %88, %89, %cst_39 {dimension_numbers = #tpu.dot_dimension_numbers<[1], [0], [0], [1], [0, 0, 1, 1], [], []>} : vector<16x512xbf16>, vector<512x128xbf16>, vector<16x128xf32> -> vector<16x128xf32>
    %c2688 = arith.constant 2688 : index
    %c0_40 = arith.constant 0 : index
    %91 = vector.load %arg1[%c2688, %c0_40] : memref<4992x128xbf16, #tpu.memory_space<vmem>>, vector<512x128xbf16>
    %cst_41 = arith.constant dense<0.000000e+00> : vector<16x128xf32>
    %92 = tpu.matmul %88, %91, %cst_41 {dimension_numbers = #tpu.dot_dimension_numbers<[1], [0], [0], [1], [0, 0, 1, 1], [], []>} : vector<16x512xbf16>, vector<512x128xbf16>, vector<16x128xf32> -> vector<16x128xf32>
    %c3200 = arith.constant 3200 : index
    %c0_42 = arith.constant 0 : index
    %93 = vector.load %arg1[%c3200, %c0_42] : memref<4992x128xbf16, #tpu.memory_space<vmem>>, vector<512x128xbf16>
    %cst_43 = arith.constant dense<0.000000e+00> : vector<16x128xf32>
    %94 = tpu.matmul %88, %93, %cst_43 {dimension_numbers = #tpu.dot_dimension_numbers<[1], [0], [0], [1], [0, 0, 1, 1], [], []>} : vector<16x512xbf16>, vector<512x128xbf16>, vector<16x128xf32> -> vector<16x128xf32>
    %95 = tpu.concatenate %90, %92, %94 in 1 : vector<16x128xf32>, vector<16x128xf32>, vector<16x128xf32> -> vector<16x384xf32>
    %c2 = arith.constant 2 : index
    %c0_44 = arith.constant 0 : index
    %96 = vector.load %arg2[%c2, %c0_44] : memref<8x512xf32, #tpu.memory_space<vmem>>, vector<1x384xf32>
    %97 = vector.broadcast %96 : vector<1x384xf32> to vector<16x384xf32>
    %98 = arith.addf %95, %97 : vector<16x384xf32>
    %cst_45 = arith.constant 0.000000e+00 : f32
    %99 = vector.broadcast %cst_45 : f32 to vector<16x384xf32>
    %100 = arith.cmpf oge, %98, %99 : vector<16x384xf32>
    %cst_46 = arith.constant 0.00999999977 : f32
    %101 = vector.broadcast %cst_46 : f32 to vector<16x384xf32>
    %102 = arith.mulf %101, %98 : vector<16x384xf32>
    %103 = arith.select %100, %98, %102 : vector<16x384xi1>, vector<16x384xf32>
    %cst_47 = arith.constant 0.000000e+00 : f32
    %104 = vector.shape_cast %3 : vector<16x1xi1> to vector<16x1xi1>
    %105 = vector.broadcast %104 : vector<16x1xi1> to vector<16x384xi1>
    %106 = vector.broadcast %cst_47 : f32 to vector<16x384xf32>
    %107 = arith.select %105, %103, %106 : vector<16x384xi1>, vector<16x384xf32>
    %cst_48 = arith.constant dense<0.000000e+00> : vector<384xf32>
    %108 = vector.multi_reduction <add>, %107, %cst_48 [0] : vector<16x384xf32> to vector<384xf32>
    %109 = vector.shape_cast %108 : vector<384xf32> to vector<1x384xf32>
    %cst_49 = arith.constant 1.250000e-01 : f32
    %110 = vector.broadcast %cst_49 : f32 to vector<1x384xf32>
    %111 = arith.mulf %109, %110 : vector<1x384xf32>
    %112 = vector.broadcast %111 : vector<1x384xf32> to vector<16x384xf32>
    %113 = arith.subf %103, %112 : vector<16x384xf32>
    %cst_50 = arith.constant 0.000000e+00 : f32
    %114 = vector.shape_cast %3 : vector<16x1xi1> to vector<16x1xi1>
    %115 = vector.broadcast %114 : vector<16x1xi1> to vector<16x384xi1>
    %116 = vector.broadcast %cst_50 : f32 to vector<16x384xf32>
    %117 = arith.select %115, %113, %116 : vector<16x384xi1>, vector<16x384xf32>
    %118 = arith.mulf %117, %117 : vector<16x384xf32>
    %cst_51 = arith.constant dense<0.000000e+00> : vector<384xf32>
    %119 = vector.multi_reduction <add>, %118, %cst_51 [0] : vector<16x384xf32> to vector<384xf32>
    %120 = vector.shape_cast %119 : vector<384xf32> to vector<1x384xf32>
    %cst_52 = arith.constant 1.250000e-01 : f32
    %121 = vector.broadcast %cst_52 : f32 to vector<1x384xf32>
    %122 = arith.mulf %120, %121 : vector<1x384xf32>
    %cst_53 = arith.constant 9.99999974E-6 : f32
    %123 = vector.broadcast %cst_53 : f32 to vector<1x384xf32>
    %124 = arith.addf %122, %123 : vector<1x384xf32>
    %125 = math.rsqrt %124 : vector<1x384xf32>
    %126 = vector.broadcast %125 : vector<1x384xf32> to vector<16x384xf32>
    %127 = arith.mulf %113, %126 : vector<16x384xf32>
    %128 = arith.truncf %127 : vector<16x384xf32> to vector<16x384xbf16>
    %c3712 = arith.constant 3712 : index
    %c0_54 = arith.constant 0 : index
    %129 = vector.load %arg1[%c3712, %c0_54] : memref<4992x128xbf16, #tpu.memory_space<vmem>>, vector<384x128xbf16>
    %cst_55 = arith.constant dense<0.000000e+00> : vector<16x128xf32>
    %130 = tpu.matmul %128, %129, %cst_55 {dimension_numbers = #tpu.dot_dimension_numbers<[1], [0], [0], [1], [0, 0, 1, 1], [], []>} : vector<16x384xbf16>, vector<384x128xbf16>, vector<16x128xf32> -> vector<16x128xf32>
    %c4096 = arith.constant 4096 : index
    %c0_56 = arith.constant 0 : index
    %131 = vector.load %arg1[%c4096, %c0_56] : memref<4992x128xbf16, #tpu.memory_space<vmem>>, vector<384x128xbf16>
    %cst_57 = arith.constant dense<0.000000e+00> : vector<16x128xf32>
    %132 = tpu.matmul %128, %131, %cst_57 {dimension_numbers = #tpu.dot_dimension_numbers<[1], [0], [0], [1], [0, 0, 1, 1], [], []>} : vector<16x384xbf16>, vector<384x128xbf16>, vector<16x128xf32> -> vector<16x128xf32>
    %133 = tpu.concatenate %130, %132 in 1 : vector<16x128xf32>, vector<16x128xf32> -> vector<16x256xf32>
    %c3 = arith.constant 3 : index
    %c0_58 = arith.constant 0 : index
    %134 = vector.load %arg2[%c3, %c0_58] : memref<8x512xf32, #tpu.memory_space<vmem>>, vector<1x256xf32>
    %135 = vector.broadcast %134 : vector<1x256xf32> to vector<16x256xf32>
    %136 = arith.addf %133, %135 : vector<16x256xf32>
    %cst_59 = arith.constant 0.000000e+00 : f32
    %137 = vector.broadcast %cst_59 : f32 to vector<16x256xf32>
    %138 = arith.cmpf oge, %136, %137 : vector<16x256xf32>
    %cst_60 = arith.constant 0.00999999977 : f32
    %139 = vector.broadcast %cst_60 : f32 to vector<16x256xf32>
    %140 = arith.mulf %139, %136 : vector<16x256xf32>
    %141 = arith.select %138, %136, %140 : vector<16x256xi1>, vector<16x256xf32>
    %cst_61 = arith.constant 0.000000e+00 : f32
    %142 = vector.shape_cast %3 : vector<16x1xi1> to vector<16x1xi1>
    %143 = vector.broadcast %142 : vector<16x1xi1> to vector<16x256xi1>
    %144 = vector.broadcast %cst_61 : f32 to vector<16x256xf32>
    %145 = arith.select %143, %141, %144 : vector<16x256xi1>, vector<16x256xf32>
    %cst_62 = arith.constant dense<0.000000e+00> : vector<256xf32>
    %146 = vector.multi_reduction <add>, %145, %cst_62 [0] : vector<16x256xf32> to vector<256xf32>
    %147 = vector.shape_cast %146 : vector<256xf32> to vector<1x256xf32>
    %cst_63 = arith.constant 1.250000e-01 : f32
    %148 = vector.broadcast %cst_63 : f32 to vector<1x256xf32>
    %149 = arith.mulf %147, %148 : vector<1x256xf32>
    %150 = vector.broadcast %149 : vector<1x256xf32> to vector<16x256xf32>
    %151 = arith.subf %141, %150 : vector<16x256xf32>
    %cst_64 = arith.constant 0.000000e+00 : f32
    %152 = vector.shape_cast %3 : vector<16x1xi1> to vector<16x1xi1>
    %153 = vector.broadcast %152 : vector<16x1xi1> to vector<16x256xi1>
    %154 = vector.broadcast %cst_64 : f32 to vector<16x256xf32>
    %155 = arith.select %153, %151, %154 : vector<16x256xi1>, vector<16x256xf32>
    %156 = arith.mulf %155, %155 : vector<16x256xf32>
    %cst_65 = arith.constant dense<0.000000e+00> : vector<256xf32>
    %157 = vector.multi_reduction <add>, %156, %cst_65 [0] : vector<16x256xf32> to vector<256xf32>
    %158 = vector.shape_cast %157 : vector<256xf32> to vector<1x256xf32>
    %cst_66 = arith.constant 1.250000e-01 : f32
    %159 = vector.broadcast %cst_66 : f32 to vector<1x256xf32>
    %160 = arith.mulf %158, %159 : vector<1x256xf32>
    %cst_67 = arith.constant 9.99999974E-6 : f32
    %161 = vector.broadcast %cst_67 : f32 to vector<1x256xf32>
    %162 = arith.addf %160, %161 : vector<1x256xf32>
    %163 = math.rsqrt %162 : vector<1x256xf32>
    %164 = vector.broadcast %163 : vector<1x256xf32> to vector<16x256xf32>
    %165 = arith.mulf %151, %164 : vector<16x256xf32>
    %166 = arith.truncf %165 : vector<16x256xf32> to vector<16x256xbf16>
    %c4480 = arith.constant 4480 : index
    %c0_68 = arith.constant 0 : index
    %167 = vector.load %arg1[%c4480, %c0_68] : memref<4992x128xbf16, #tpu.memory_space<vmem>>, vector<256x128xbf16>
    %cst_69 = arith.constant dense<0.000000e+00> : vector<16x128xf32>
    %168 = tpu.matmul %166, %167, %cst_69 {dimension_numbers = #tpu.dot_dimension_numbers<[1], [0], [0], [1], [0, 0, 1, 1], [], []>} : vector<16x256xbf16>, vector<256x128xbf16>, vector<16x128xf32> -> vector<16x128xf32>
    %c4 = arith.constant 4 : index
    %c0_70 = arith.constant 0 : index
    %169 = vector.load %arg2[%c4, %c0_70] : memref<8x512xf32, #tpu.memory_space<vmem>>, vector<1x128xf32>
    %170 = vector.broadcast %169 : vector<1x128xf32> to vector<16x128xf32>
    %171 = arith.addf %168, %170 : vector<16x128xf32>
    %cst_71 = arith.constant 0.000000e+00 : f32
    %172 = vector.broadcast %cst_71 : f32 to vector<16x128xf32>
    %173 = arith.cmpf oge, %171, %172 : vector<16x128xf32>
    %cst_72 = arith.constant 0.00999999977 : f32
    %174 = vector.broadcast %cst_72 : f32 to vector<16x128xf32>
    %175 = arith.mulf %174, %171 : vector<16x128xf32>
    %176 = arith.select %173, %171, %175 : vector<16x128xi1>, vector<16x128xf32>
    %cst_73 = arith.constant 0.000000e+00 : f32
    %177 = vector.shape_cast %3 : vector<16x1xi1> to vector<16x1xi1>
    %178 = vector.broadcast %177 : vector<16x1xi1> to vector<16x128xi1>
    %179 = vector.broadcast %cst_73 : f32 to vector<16x128xf32>
    %180 = arith.select %178, %176, %179 : vector<16x128xi1>, vector<16x128xf32>
    %cst_74 = arith.constant dense<0.000000e+00> : vector<128xf32>
    %181 = vector.multi_reduction <add>, %180, %cst_74 [0] : vector<16x128xf32> to vector<128xf32>
    %182 = vector.shape_cast %181 : vector<128xf32> to vector<1x128xf32>
    %cst_75 = arith.constant 1.250000e-01 : f32
    %183 = vector.broadcast %cst_75 : f32 to vector<1x128xf32>
    %184 = arith.mulf %182, %183 : vector<1x128xf32>
    %185 = vector.broadcast %184 : vector<1x128xf32> to vector<16x128xf32>
    %186 = arith.subf %176, %185 : vector<16x128xf32>
    %cst_76 = arith.constant 0.000000e+00 : f32
    %187 = vector.shape_cast %3 : vector<16x1xi1> to vector<16x1xi1>
    %188 = vector.broadcast %187 : vector<16x1xi1> to vector<16x128xi1>
    %189 = vector.broadcast %cst_76 : f32 to vector<16x128xf32>
    %190 = arith.select %188, %186, %189 : vector<16x128xi1>, vector<16x128xf32>
    %191 = arith.mulf %190, %190 : vector<16x128xf32>
    %cst_77 = arith.constant dense<0.000000e+00> : vector<128xf32>
    %192 = vector.multi_reduction <add>, %191, %cst_77 [0] : vector<16x128xf32> to vector<128xf32>
    %193 = vector.shape_cast %192 : vector<128xf32> to vector<1x128xf32>
    %cst_78 = arith.constant 1.250000e-01 : f32
    %194 = vector.broadcast %cst_78 : f32 to vector<1x128xf32>
    %195 = arith.mulf %193, %194 : vector<1x128xf32>
    %cst_79 = arith.constant 9.99999974E-6 : f32
    %196 = vector.broadcast %cst_79 : f32 to vector<1x128xf32>
    %197 = arith.addf %195, %196 : vector<1x128xf32>
    %198 = math.rsqrt %197 : vector<1x128xf32>
    %199 = vector.broadcast %198 : vector<1x128xf32> to vector<16x128xf32>
    %200 = arith.mulf %186, %199 : vector<16x128xf32>
    %201 = arith.truncf %200 : vector<16x128xf32> to vector<16x128xbf16>
    %c4736 = arith.constant 4736 : index
    %c0_80 = arith.constant 0 : index
    %202 = vector.load %arg1[%c4736, %c0_80] : memref<4992x128xbf16, #tpu.memory_space<vmem>>, vector<128x128xbf16>
    %cst_81 = arith.constant dense<0.000000e+00> : vector<16x128xf32>
    %203 = tpu.matmul %201, %202, %cst_81 {dimension_numbers = #tpu.dot_dimension_numbers<[1], [0], [0], [1], [0, 0, 1, 1], [], []>} : vector<16x128xbf16>, vector<128x128xbf16>, vector<16x128xf32> -> vector<16x128xf32>
    %c5 = arith.constant 5 : index
    %c0_82 = arith.constant 0 : index
    %204 = vector.load %arg2[%c5, %c0_82] : memref<8x512xf32, #tpu.memory_space<vmem>>, vector<1x128xf32>
    %205 = vector.broadcast %204 : vector<1x128xf32> to vector<16x128xf32>
    %206 = arith.addf %203, %205 : vector<16x128xf32>
    %cst_83 = arith.constant 0.000000e+00 : f32
    %207 = vector.broadcast %cst_83 : f32 to vector<16x128xf32>
    %208 = arith.cmpf oge, %206, %207 : vector<16x128xf32>
    %cst_84 = arith.constant 0.00999999977 : f32
    %209 = vector.broadcast %cst_84 : f32 to vector<16x128xf32>
    %210 = arith.mulf %209, %206 : vector<16x128xf32>
    %211 = arith.select %208, %206, %210 : vector<16x128xi1>, vector<16x128xf32>
    %cst_85 = arith.constant 0.000000e+00 : f32
    %212 = vector.shape_cast %3 : vector<16x1xi1> to vector<16x1xi1>
    %213 = vector.broadcast %212 : vector<16x1xi1> to vector<16x128xi1>
    %214 = vector.broadcast %cst_85 : f32 to vector<16x128xf32>
    %215 = arith.select %213, %211, %214 : vector<16x128xi1>, vector<16x128xf32>
    %cst_86 = arith.constant dense<0.000000e+00> : vector<128xf32>
    %216 = vector.multi_reduction <add>, %215, %cst_86 [0] : vector<16x128xf32> to vector<128xf32>
    %217 = vector.shape_cast %216 : vector<128xf32> to vector<1x128xf32>
    %cst_87 = arith.constant 1.250000e-01 : f32
    %218 = vector.broadcast %cst_87 : f32 to vector<1x128xf32>
    %219 = arith.mulf %217, %218 : vector<1x128xf32>
    %220 = vector.broadcast %219 : vector<1x128xf32> to vector<16x128xf32>
    %221 = arith.subf %211, %220 : vector<16x128xf32>
    %cst_88 = arith.constant 0.000000e+00 : f32
    %222 = vector.shape_cast %3 : vector<16x1xi1> to vector<16x1xi1>
    %223 = vector.broadcast %222 : vector<16x1xi1> to vector<16x128xi1>
    %224 = vector.broadcast %cst_88 : f32 to vector<16x128xf32>
    %225 = arith.select %223, %221, %224 : vector<16x128xi1>, vector<16x128xf32>
    %226 = arith.mulf %225, %225 : vector<16x128xf32>
    %cst_89 = arith.constant dense<0.000000e+00> : vector<128xf32>
    %227 = vector.multi_reduction <add>, %226, %cst_89 [0] : vector<16x128xf32> to vector<128xf32>
    %228 = vector.shape_cast %227 : vector<128xf32> to vector<1x128xf32>
    %cst_90 = arith.constant 1.250000e-01 : f32
    %229 = vector.broadcast %cst_90 : f32 to vector<1x128xf32>
    %230 = arith.mulf %228, %229 : vector<1x128xf32>
    %cst_91 = arith.constant 9.99999974E-6 : f32
    %231 = vector.broadcast %cst_91 : f32 to vector<1x128xf32>
    %232 = arith.addf %230, %231 : vector<1x128xf32>
    %233 = math.rsqrt %232 : vector<1x128xf32>
    %234 = vector.broadcast %233 : vector<1x128xf32> to vector<16x128xf32>
    %235 = arith.mulf %221, %234 : vector<16x128xf32>
    %236 = arith.truncf %235 : vector<16x128xf32> to vector<16x128xbf16>
    %c4864 = arith.constant 4864 : index
    %c0_92 = arith.constant 0 : index
    %237 = vector.load %arg1[%c4864, %c0_92] : memref<4992x128xbf16, #tpu.memory_space<vmem>>, vector<128x128xbf16>
    %cst_93 = arith.constant dense<0.000000e+00> : vector<16x128xf32>
    %238 = tpu.matmul %236, %237, %cst_93 {dimension_numbers = #tpu.dot_dimension_numbers<[1], [0], [0], [1], [0, 0, 1, 1], [], []>} : vector<16x128xbf16>, vector<128x128xbf16>, vector<16x128xf32> -> vector<16x128xf32>
    %c6 = arith.constant 6 : index
    %c0_94 = arith.constant 0 : index
    %239 = vector.load %arg2[%c6, %c0_94] : memref<8x512xf32, #tpu.memory_space<vmem>>, vector<1x128xf32>
    %240 = vector.broadcast %239 : vector<1x128xf32> to vector<16x128xf32>
    %241 = arith.addf %238, %240 : vector<16x128xf32>
    %242 = tpu.iota {dimensions = array<i32: 1>} : vector<16x128xi32>
    %c10_i32 = arith.constant 10 : i32
    %243 = vector.broadcast %c10_i32 : i32 to vector<16x128xi32>
    %244 = arith.cmpi slt, %242, %243 : vector<16x128xi32>
    %cst_95 = arith.constant 0xFF800000 : f32
    %245 = vector.broadcast %cst_95 : f32 to vector<16x128xf32>
    %246 = arith.select %244, %241, %245 : vector<16x128xi1>, vector<16x128xf32>
    %cst_96 = arith.constant dense<0xFF800000> : vector<16xf32>
    %247 = vector.multi_reduction <maximumf>, %246, %cst_96 [1] : vector<16x128xf32> to vector<16xf32>
    %248 = vector.shape_cast %247 : vector<16xf32> to vector<16x1xf32>
    %249 = vector.broadcast %248 : vector<16x1xf32> to vector<16x128xf32>
    %250 = arith.subf %246, %249 : vector<16x128xf32>
    %251 = math.exp %250 : vector<16x128xf32>
    %cst_97 = arith.constant dense<0.000000e+00> : vector<16xf32>
    %252 = vector.multi_reduction <add>, %251, %cst_97 [1] : vector<16x128xf32> to vector<16xf32>
    %253 = vector.shape_cast %252 : vector<16xf32> to vector<16x1xf32>
    %254 = math.log %253 : vector<16x1xf32>
    %255 = vector.broadcast %254 : vector<16x1xf32> to vector<16x128xf32>
    %256 = arith.subf %250, %255 : vector<16x128xf32>
    %cst_98 = arith.constant 0.000000e+00 : f32
    %257 = vector.broadcast %cst_98 : f32 to vector<16x128xf32>
    %258 = arith.select %244, %256, %257 : vector<16x128xi1>, vector<16x128xf32>
    %c0_99 = arith.constant 0 : index
    %c0_100 = arith.constant 0 : index
    %259 = vector.load %arg3[%c0_99, %c0_100] : memref<16x128xf32, #tpu.memory_space<vmem>>, vector<16x128xf32>
    tpu.vector_store %arg3[%c0_99, %c0_100], %258 {strides = array<i32>} : memref<16x128xf32, #tpu.memory_space<vmem>>, vector<16x128xf32>,
    return
  }
}

</mosaic_0001>

<llo_original>
// kernel: image_classifier_forward.1
$region0: #{image_classifier_forward.1}
  #allocation0 [shape = 'u32[]', space=smem, size = 0x4, offset = 0x4, fixed_abs, tag = 'smem constant byte address 0x4 - core index']
  #allocation1 [shape = 'u32[72,128]{1,0:T(1,128)}', space=vmem, size = 0x9000, scoped, tag = 'internal scratch']
  %s0 = inlined_call_operand.vmem [shape: f32[16,32], index: 0, kind: input, shape index: {}]
  %s1 = inlined_call_operand.hbm [shape: bf16[4992,128], index: 1, kind: input, shape index: {}]
  %s2 = inlined_call_operand.hbm [shape: f32[8,512], index: 2, kind: input, shape index: {}]
  %s3 = inlined_call_operand.vmem [shape: f32[16,128], index: 3, kind: output, shape index: {}]
  %s4 = sld [smem:[#allocation0]]
  $region30: #{image_classifier_forward.1} parent=0
    _
  %s6 = ssub.s32 1, %s4
  %s7 = scalar_select 0, %s6, %s4
  $region1: #{image_classifier_forward.1} parent=0
    #allocation2 [shape = 'u8[1277952]{0}', space=vmem, size = 0x138000, scoped, tag = 'input window, operand 1, single buffered']
    #allocation3 [shape = 's32[1]{0}', space=sflag, size = 0x4, scoped, tag = 'scoped memory for image_classifier_forward.1']
    #allocation4 [shape = 'u8[16384]{0}', space=vmem, size = 0x4000, scoped, tag = 'input window, operand 2, single buffered']
    #allocation5 [shape = 's32[1]{0}', space=sflag, size = 0x4, scoped, tag = 'scoped memory for image_classifier_forward.1']
    %8 = vsyncpa [#allocation3], 0
    %9 = vsyncpa [#allocation5], 0
    // Predicated region
    $region2: #{image_classifier_forward.1} parent=1 // pred_check
      _
    $region3: #{image_classifier_forward.1} parent=1 // pred_check_branch
      %11 = sbr.rel (0) target = $region5
    $region4: #{image_classifier_forward.1} parent=1 // pred_region
      _
    $region5: #{image_classifier_forward.1} parent=1 // pred_fallthru
      _
    // Predicated region
    $region6: #{image_classifier_forward.1} parent=1 // pred_check
      _
    $region7: #{image_classifier_forward.1} parent=1 // pred_check_branch
      %13 = sbr.rel (0) target = $region9
    $region8: #{image_classifier_forward.1} parent=1 // pred_region
      %15 = vsyncadd [#allocation3], 0
      %s16 = sshll.u32 %s1, 4
      %s17 = int_to_ptr.hbm [resolvable:$true] %s16
      %s18 = sshll.u32 [#allocation2], 4
      %s19 = int_to_ptr.vmem [resolvable:$true] %s18
      %24 = dma.hbm_to_vmem [thread:$0]  %s17, 39936, %s19, [#allocation3], 64, 64, 4
    $region9: #{image_classifier_forward.1} parent=1 // pred_fallthru
      _
    // Predicated region
    $region10: #{image_classifier_forward.1} parent=1 // pred_check
      _
    $region11: #{image_classifier_forward.1} parent=1 // pred_check_branch
      %26 = sbr.rel (0) target = $region13
    $region12: #{image_classifier_forward.1} parent=1 // pred_region
      %28 = vsyncadd [#allocation5], 0
      %s30 = sshll.u32 %s2, 4
      %s31 = int_to_ptr.hbm [resolvable:$true] %s30
      %s32 = sshll.u32 [#allocation4], 4
      %s33 = int_to_ptr.vmem [resolvable:$true] %s32
      %35 = dma.hbm_to_vmem [thread:$0]  %s31, 512, %s33, [#allocation5]
    $region13: #{image_classifier_forward.1} parent=1 // pred_fallthru
      _
    // Predicated region
    $region14: #{image_classifier_forward.1} parent=1 // pred_check
      _
    $region15: #{image_classifier_forward.1} parent=1 // pred_check_branch
      %37 = sbr.rel (0) target = $region17
    $region16: #{image_classifier_forward.1} parent=1 // pred_region
      %39 = dma.done [#allocation3], 39936
    $region17: #{image_classifier_forward.1} parent=1 // pred_fallthru
      _
    // Predicated region
    $region18: #{image_classifier_forward.1} parent=1 // pred_check
      _
    $region19: #{image_classifier_forward.1} parent=1 // pred_check_branch
      %41 = sbr.rel (0) target = $region21
    $region20: #{image_classifier_forward.1} parent=1 // pred_region
      %43 = dma.done [#allocation5], 512
    $region21: #{image_classifier_forward.1} parent=1 // pred_fallthru
      _
    %v45 = vld [vmem:[%s0] sm:$0xff]
    %v46 = vld [vmem:[%s0 + $0x8] sm:$0xff]
    %v47 = vlaneseq
    %v48 = vshrl.u32 %v47, 7
    %v49 = vadd.s32 %v48, 8
    %vm50 = vcmp.lt.s32.totalorder %v48, 8
    %vm51 = vcmp.lt.s32.totalorder %v49, 8
    %v52 = vpack.c.bf16 %v46, %v45
    %v53 = vld [vmem:[#allocation2] sm:$0xf]
    %v54 = vld [vmem:[#allocation2 + $0x4] sm:$0xf]
    %v55 = vld [vmem:[#allocation2 + $0x8] sm:$0xf]
    %v56 = vld [vmem:[#allocation2 + $0xc] sm:$0xf]
    %v61 = vunpack.c.l.b16 %v53
    %v62 = vunpack.c.l.b16 %v54
    %v63 = vunpack.c.l.b16 %v55
    %v64 = vunpack.c.l.b16 %v56
    %v65 = vpack.c.b16 %v62, %v61
    %v66 = vpack.c.b16 %v64, %v63
    %vm69 = vcmask 261120
    %v71 = vsel %vm69, %v52, 0
    %73 = vmatpush.bf16.msra.mxu0 0
    %74 = vmatpush.bf16.msra.mxu0 0
    %75 = vmatpush.bf16.msra.mxu0 0
    %76 = vmatpush.bf16.msra.mxu0 0
    %77 = vmatpush.bf16.msra.mxu0 0
    %78 = vmatpush.bf16.msra.mxu0 0
    %79 = vmatpush.bf16.msra.mxu0 %v66
    %80 = vmatpush.bf16.msra.mxu0 %v65
    %81 = vmatmul.bf16.gmra.mxu0 %v71
    %v82 = vpop.f32.mrf.mxu0
    %v83 = vadd.f32 0.0, %v82
    %v84 = vpop.f32.mrf.mxu0
    %v85 = vadd.f32 0.0, %v84
    %86 = vdwg.mxu0
    %v87 = vld [vmem:[#allocation2 + $0x10] sm:$0xf]
    %v88 = vld [vmem:[#allocation2 + $0x14] sm:$0xf]
    %v89 = vld [vmem:[#allocation2 + $0x18] sm:$0xf]
    %v90 = vld [vmem:[#allocation2 + $0x1c] sm:$0xf]
    %v95 = vunpack.c.l.b16 %v87
    %v96 = vunpack.c.l.b16 %v88
    %v97 = vunpack.c.l.b16 %v89
    %v98 = vunpack.c.l.b16 %v90
    %v99 = vpack.c.b16 %v96, %v95
    %v100 = vpack.c.b16 %v98, %v97
    %103 = vmatpush.bf16.msra.mxu0 0
    %104 = vmatpush.bf16.msra.mxu0 0
    %105 = vmatpush.bf16.msra.mxu0 0
    %106 = vmatpush.bf16.msra.mxu0 0
    %107 = vmatpush.bf16.msra.mxu0 0
    %108 = vmatpush.bf16.msra.mxu0 0
    %109 = vmatpush.bf16.msra.mxu0 %v100
    %110 = vmatpush.bf16.msra.mxu0 %v99
    %111 = vmatmul.bf16.gmra.mxu0 %v71
    %v112 = vpop.f32.mrf.mxu0
    %v113 = vadd.f32 0.0, %v112
    %v114 = vpop.f32.mrf.mxu0
    %v115 = vadd.f32 0.0, %v114
    %116 = vdwg.mxu0
    %v117 = vld [vmem:[#allocation2 + $0x20] sm:$0xf]
    %v118 = vld [vmem:[#allocation2 + $0x24] sm:$0xf]
    %v119 = vld [vmem:[#allocation2 + $0x28] sm:$0xf]
    %v120 = vld [vmem:[#allocation2 + $0x2c] sm:$0xf]
    %v125 = vunpack.c.l.b16 %v117
    %v126 = vunpack.c.l.b16 %v118
    %v127 = vunpack.c.l.b16 %v119
    %v128 = vunpack.c.l.b16 %v120
    %v129 = vpack.c.b16 %v126, %v125
    %v130 = vpack.c.b16 %v128, %v127
    %133 = vmatpush.bf16.msra.mxu0 0
    %134 = vmatpush.bf16.msra.mxu0 0
    %135 = vmatpush.bf16.msra.mxu0 0
    %136 = vmatpush.bf16.msra.mxu0 0
    %137 = vmatpush.bf16.msra.mxu0 0
    %138 = vmatpush.bf16.msra.mxu0 0
    %139 = vmatpush.bf16.msra.mxu0 %v130
    %140 = vmatpush.bf16.msra.mxu0 %v129
    %141 = vmatmul.bf16.gmra.mxu0 %v71
    %v142 = vpop.f32.mrf.mxu0
    %v143 = vadd.f32 0.0, %v142
    %v144 = vpop.f32.mrf.mxu0
    %v145 = vadd.f32 0.0, %v144
    %146 = vdwg.mxu0
    %v147 = vld [vmem:[#allocation2 + $0x30] sm:$0xf]
    %v148 = vld [vmem:[#allocation2 + $0x34] sm:$0xf]
    %v149 = vld [vmem:[#allocation2 + $0x38] sm:$0xf]
    %v150 = vld [vmem:[#allocation2 + $0x3c] sm:$0xf]
    %v155 = vunpack.c.l.b16 %v147
    %v156 = vunpack.c.l.b16 %v148
    %v157 = vunpack.c.l.b16 %v149
    %v158 = vunpack.c.l.b16 %v150
    %v159 = vpack.c.b16 %v156, %v155
    %v160 = vpack.c.b16 %v158, %v157
    %163 = vmatpush.bf16.msra.mxu0 0
    %164 = vmatpush.bf16.msra.mxu0 0
    %165 = vmatpush.bf16.msra.mxu0 0
    %166 = vmatpush.bf16.msra.mxu0 0
    %167 = vmatpush.bf16.msra.mxu0 0
    %168 = vmatpush.bf16.msra.mxu0 0
    %169 = vmatpush.bf16.msra.mxu0 %v160
    %170 = vmatpush.bf16.msra.mxu0 %v159
    %171 = vmatmul.bf16.gmra.mxu0 %v71
    %v172 = vpop.f32.mrf.mxu0
    %v173 = vadd.f32 0.0, %v172
    %v174 = vpop.f32.mrf.mxu0
    %v175 = vadd.f32 0.0, %v174
    %176 = vdwg.mxu0
    %v177 = vld [vmem:[#allocation4] ss:$8 sm:$0xf]
    %v179 = vperm.slane %v177, 0
    %v180 = vperm.slane %v177, 1
    %v181 = vperm.slane %v177, 2
    %v182 = vperm.slane %v177, 3
    %v187 = vadd.f32 %v83, %v179
    %v188 = vadd.f32 %v113, %v180
    %v189 = vadd.f32 %v143, %v181
    %v190 = vadd.f32 %v173, %v182
    %v191 = vadd.f32 %v85, %v179
    %v192 = vadd.f32 %v115, %v180
    %v193 = vadd.f32 %v145, %v181
    %v194 = vadd.f32 %v175, %v182
    %vm195 = vcmp.ge.f32.partialorder %v187, 0.0
    %vm196 = vcmp.ge.f32.partialorder %v188, 0.0
    %vm197 = vcmp.ge.f32.partialorder %v189, 0.0
    %vm198 = vcmp.ge.f32.partialorder %v190, 0.0
    %vm199 = vcmp.ge.f32.partialorder %v191, 0.0
    %vm200 = vcmp.ge.f32.partialorder %v192, 0.0
    %vm201 = vcmp.ge.f32.partialorder %v193, 0.0
    %vm202 = vcmp.ge.f32.partialorder %v194, 0.0
    %v203 = vmul.f32 %v187, 0.01
    %v204 = vmul.f32 %v188, 0.01
    %v205 = vmul.f32 %v189, 0.01
    %v206 = vmul.f32 %v190, 0.01
    %v207 = vmul.f32 %v191, 0.01
    %v208 = vmul.f32 %v192, 0.01
    %v209 = vmul.f32 %v193, 0.01
    %v210 = vmul.f32 %v194, 0.01
    %v211 = vsel %vm195, %v187, %v203
    %v212 = vsel %vm196, %v188, %v204
    %v213 = vsel %vm197, %v189, %v205
    %v214 = vsel %vm198, %v190, %v206
    %v215 = vsel %vm199, %v191, %v207
    %v216 = vsel %vm200, %v192, %v208
    %v217 = vsel %vm201, %v193, %v209
    %v218 = vsel %vm202, %v194, %v210
    %v219 = vsel %vm50, 1, 0
    %v220 = vsel %vm51, 1, 0
    %vm221 = vcmp.eq.s32.totalorder %v219, 1
    %vm222 = vcmp.eq.s32.totalorder %v220, 1
    %v223 = vsel %vm221, %v211, 0.0
    %v224 = vsel %vm221, %v212, 0.0
    %v225 = vsel %vm221, %v213, 0.0
    %v226 = vsel %vm221, %v214, 0.0
    %v227 = vsel %vm222, %v215, 0.0
    %v228 = vsel %vm222, %v216, 0.0
    %v229 = vsel %vm222, %v217, 0.0
    %v230 = vsel %vm222, %v218, 0.0
    %v231 = vadd.f32 %v223, %v227
    %v232 = vrot.slane %v231, 4
    %v233 = vadd.f32 %v231, %v232
    %v234 = vrot.slane %v233, 2
    %v235 = vadd.f32 %v233, %v234
    %v236 = vrot.slane %v235, 1
    %v237 = vadd.f32 %v235, %v236
    %v238 = vadd.f32 %v224, %v228
    %v239 = vrot.slane %v238, 4
    %v240 = vadd.f32 %v238, %v239
    %v241 = vrot.slane %v240, 2
    %v242 = vadd.f32 %v240, %v241
    %v243 = vrot.slane %v242, 1
    %v244 = vadd.f32 %v242, %v243
    %v245 = vadd.f32 %v225, %v229
    %v246 = vrot.slane %v245, 4
    %v247 = vadd.f32 %v245, %v246
    %v248 = vrot.slane %v247, 2
    %v249 = vadd.f32 %v247, %v248
    %v250 = vrot.slane %v249, 1
    %v251 = vadd.f32 %v249, %v250
    %v252 = vadd.f32 %v226, %v230
    %v253 = vrot.slane %v252, 4
    %v254 = vadd.f32 %v252, %v253
    %v255 = vrot.slane %v254, 2
    %v256 = vadd.f32 %v254, %v255
    %v257 = vrot.slane %v256, 1
    %v258 = vadd.f32 %v256, %v257
    %v259 = vmul.f32 %v237, 0.125
    %v260 = vmul.f32 %v244, 0.125
    %v261 = vmul.f32 %v251, 0.125
    %v262 = vmul.f32 %v258, 0.125
    %v263 = vsub.f32 %v211, %v259
    %v264 = vsub.f32 %v212, %v260
    %v265 = vsub.f32 %v213, %v261
    %v266 = vsub.f32 %v214, %v262
    %v267 = vsub.f32 %v215, %v259
    %v268 = vsub.f32 %v216, %v260
    %v269 = vsub.f32 %v217, %v261
    %v270 = vsub.f32 %v218, %v262
    %v271 = vsel %vm221, %v263, 0.0
    %v272 = vsel %vm221, %v264, 0.0
    %v273 = vsel %vm221, %v265, 0.0
    %v274 = vsel %vm221, %v266, 0.0
    %v275 = vsel %vm222, %v267, 0.0
    %v276 = vsel %vm222, %v268, 0.0
    %v277 = vsel %vm222, %v269, 0.0
    %v278 = vsel %vm222, %v270, 0.0
    %v279 = vmul.f32 %v271, %v271
    %v280 = vmul.f32 %v272, %v272
    %v281 = vmul.f32 %v273, %v273
    %v282 = vmul.f32 %v274, %v274
    %v283 = vmul.f32 %v275, %v275
    %v284 = vmul.f32 %v276, %v276
    %v285 = vmul.f32 %v277, %v277
    %v286 = vmul.f32 %v278, %v278
    %v287 = vadd.f32 %v279, %v283
    %v288 = vrot.slane %v287, 4
    %v289 = vadd.f32 %v287, %v288
    %v290 = vrot.slane %v289, 2
    %v291 = vadd.f32 %v289, %v290
    %v292 = vrot.slane %v291, 1
    %v293 = vadd.f32 %v291, %v292
    %v294 = vadd.f32 %v280, %v284
    %v295 = vrot.slane %v294, 4
    %v296 = vadd.f32 %v294, %v295
    %v297 = vrot.slane %v296, 2
    %v298 = vadd.f32 %v296, %v297
    %v299 = vrot.slane %v298, 1
    %v300 = vadd.f32 %v298, %v299
    %v301 = vadd.f32 %v281, %v285
    %v302 = vrot.slane %v301, 4
    %v303 = vadd.f32 %v301, %v302
    %v304 = vrot.slane %v303, 2
    %v305 = vadd.f32 %v303, %v304
    %v306 = vrot.slane %v305, 1
    %v307 = vadd.f32 %v305, %v306
    %v308 = vadd.f32 %v282, %v286
    %v309 = vrot.slane %v308, 4
    %v310 = vadd.f32 %v308, %v309
    %v311 = vrot.slane %v310, 2
    %v312 = vadd.f32 %v310, %v311
    %v313 = vrot.slane %v312, 1
    %v314 = vadd.f32 %v312, %v313
    %v315 = vmul.f32 %v293, 0.125
    %v316 = vmul.f32 %v300, 0.125
    %v317 = vmul.f32 %v307, 0.125
    %v318 = vmul.f32 %v314, 0.125
    %v319 = vadd.f32 %v315, 1e-05
    %v320 = vadd.f32 %v316, 1e-05
    %v321 = vadd.f32 %v317, 1e-05
    %v322 = vadd.f32 %v318, 1e-05
    %v323 = vrsqrt.pop %v319
    %v324 = vmul.f32 %v323, %v319
    %v325 = vmul.f32 %v324, %v323
    %v326 = vmul.f32 0.5, %v325
    %v327 = vsub.f32 1.5, %v326
    %v328 = vmul.f32 %v323, %v327
    %vm329 = vweird.f32 %v319
    %vm330 = vweird.f32 %v323
    %vm331 = vmor %vm329, %vm330
    %v332 = vsel %vm331, %v323, %v328
    %v333 = vrsqrt.pop %v320
    %v334 = vmul.f32 %v333, %v320
    %v335 = vmul.f32 %v334, %v333
    %v336 = vmul.f32 0.5, %v335
    %v337 = vsub.f32 1.5, %v336
    %v338 = vmul.f32 %v333, %v337
    %vm339 = vweird.f32 %v320
    %vm340 = vweird.f32 %v333
    %vm341 = vmor %vm339, %vm340
    %v342 = vsel %vm341, %v333, %v338
    %v343 = vrsqrt.pop %v321
    %v344 = vmul.f32 %v343, %v321
    %v345 = vmul.f32 %v344, %v343
    %v346 = vmul.f32 0.5, %v345
    %v347 = vsub.f32 1.5, %v346
    %v348 = vmul.f32 %v343, %v347
    %vm349 = vweird.f32 %v321
    %vm350 = vweird.f32 %v343
    %vm351 = vmor %vm349, %vm350
    %v352 = vsel %vm351, %v343, %v348
    %v353 = vrsqrt.pop %v322
    %v354 = vmul.f32 %v353, %v322
    %v355 = vmul.f32 %v354, %v353
    %v356 = vmul.f32 0.5, %v355
    %v357 = vsub.f32 1.5, %v356
    %v358 = vmul.f32 %v353, %v357
    %vm359 = vweird.f32 %v322
    %vm360 = vweird.f32 %v353
    %vm361 = vmor %vm359, %vm360
    %v362 = vsel %vm361, %v353, %v358
    %v363 = vmul.f32 %v263, %v332
    %v364 = vmul.f32 %v264, %v342
    %v365 = vmul.f32 %v265, %v352
    %v366 = vmul.f32 %v266, %v362
    %v367 = vmul.f32 %v267, %v332
    %v368 = vmul.f32 %v268, %v342
    %v369 = vmul.f32 %v269, %v352
    %v370 = vmul.f32 %v270, %v362
    %v371 = vpack.c.bf16 %v367, %v363
    %v372 = vpack.c.bf16 %v368, %v364
    %v373 = vpack.c.bf16 %v369, %v365
    %v374 = vpack.c.bf16 %v370, %v366
    %v375 = vld [vmem:[#allocation2 + $0x40] sm:$0xf]
    %v376 = vld [vmem:[#allocation2 + $0x44] sm:$0xf]
    %v377 = vld [vmem:[#allocation2 + $0x48] sm:$0xf]
    %v378 = vld [vmem:[#allocation2 + $0x4c] sm:$0xf]
    %v379 = vld [vmem:[#allocation2 + $0x50] sm:$0xf]
    %v380 = vld [vmem:[#allocation2 + $0x54] sm:$0xf]
    %v381 = vld [vmem:[#allocation2 + $0x58] sm:$0xf]
    %v382 = vld [vmem:[#allocation2 + $0x5c] sm:$0xf]
    %v383 = vld [vmem:[#allocation2 + $0x60] sm:$0xf]
    %v384 = vld [vmem:[#allocation2 + $0x64] sm:$0xf]
    %v385 = vld [vmem:[#allocation2 + $0x68] sm:$0xf]
    %v386 = vld [vmem:[#allocation2 + $0x6c] sm:$0xf]
    %v387 = vld [vmem:[#allocation2 + $0x70] sm:$0xf]
    %v388 = vld [vmem:[#allocation2 + $0x74] sm:$0xf]
    %v389 = vld [vmem:[#allocation2 + $0x78] sm:$0xf]
    %v390 = vld [vmem:[#allocation2 + $0x7c] sm:$0xf]
    %v391 = vld [vmem:[#allocation2 + $0x80] sm:$0xf]
    %v392 = vld [vmem:[#allocation2 + $0x84] sm:$0xf]
    %v393 = vld [vmem:[#allocation2 + $0x88] sm:$0xf]
    %v394 = vld [vmem:[#allocation2 + $0x8c] sm:$0xf]
    %v395 = vld [vmem:[#allocation2 + $0x90] sm:$0xf]
    %v396 = vld [vmem:[#allocation2 + $0x94] sm:$0xf]
    %v397 = vld [vmem:[#allocation2 + $0x98] sm:$0xf]
    %v398 = vld [vmem:[#allocation2 + $0x9c] sm:$0xf]
    %v399 = vld [vmem:[#allocation2 + $0xa0] sm:$0xf]
    %v400 = vld [vmem:[#allocation2 + $0xa4] sm:$0xf]
    %v401 = vld [vmem:[#allocation2 + $0xa8] sm:$0xf]
    %v402 = vld [vmem:[#allocation2 + $0xac] sm:$0xf]
    %v403 = vld [vmem:[#allocation2 + $0xb0] sm:$0xf]
    %v404 = vld [vmem:[#allocation2 + $0xb4] sm:$0xf]
    %v405 = vld [vmem:[#allocation2 + $0xb8] sm:$0xf]
    %v406 = vld [vmem:[#allocation2 + $0xbc] sm:$0xf]
    %v407 = vld [vmem:[#allocation2 + $0xc0] sm:$0xf]
    %v408 = vld [vmem:[#allocation2 + $0xc4] sm:$0xf]
    %v409 = vld [vmem:[#allocation2 + $0xc8] sm:$0xf]
    %v410 = vld [vmem:[#allocation2 + $0xcc] sm:$0xf]
    %v411 = vld [vmem:[#allocation2 + $0xd0] sm:$0xf]
    %v412 = vld [vmem:[#allocation2 + $0xd4] sm:$0xf]
    %v413 = vld [vmem:[#allocation2 + $0xd8] sm:$0xf]
    %v414 = vld [vmem:[#allocation2 + $0xdc] sm:$0xf]
    %v415 = vld [vmem:[#allocation2 + $0xe0] sm:$0xf]
    %v416 = vld [vmem:[#allocation2 + $0xe4] sm:$0xf]
    %v417 = vld [vmem:[#allocation2 + $0xe8] sm:$0xf]
    %v418 = vld [vmem:[#allocation2 + $0xec] sm:$0xf]
    %v419 = vld [vmem:[#allocation2 + $0xf0] sm:$0xf]
    %v420 = vld [vmem:[#allocation2 + $0xf4] sm:$0xf]
    %v421 = vld [vmem:[#allocation2 + $0xf8] sm:$0xf]
    %v422 = vld [vmem:[#allocation2 + $0xfc] sm:$0xf]
    %v423 = vld [vmem:[#allocation2 + $0x100] sm:$0xf]
    %v424 = vld [vmem:[#allocation2 + $0x104] sm:$0xf]
    %v425 = vld [vmem:[#allocation2 + $0x108] sm:$0xf]
    %v426 = vld [vmem:[#allocation2 + $0x10c] sm:$0xf]
    %v427 = vld [vmem:[#allocation2 + $0x110] sm:$0xf]
    %v428 = vld [vmem:[#allocation2 + $0x114] sm:$0xf]
    %v429 = vld [vmem:[#allocation2 + $0x118] sm:$0xf]
    %v430 = vld [vmem:[#allocation2 + $0x11c] sm:$0xf]
    %v431 = vld [vmem:[#allocation2 + $0x120] sm:$0xf]
    %v432 = vld [vmem:[#allocation2 + $0x124] sm:$0xf]
    %v433 = vld [vmem:[#allocation2 + $0x128] sm:$0xf]
    %v434 = vld [vmem:[#allocation2 + $0x12c] sm:$0xf]
    %v435 = vld [vmem:[#allocation2 + $0x130] sm:$0xf]
    %v436 = vld [vmem:[#allocation2 + $0x134] sm:$0xf]
    %v437 = vld [vmem:[#allocation2 + $0x138] sm:$0xf]
    %v438 = vld [vmem:[#allocation2 + $0x13c] sm:$0xf]
    %v503 = vunpack.c.l.b16 %v375
    %v504 = vunpack.c.l.b16 %v376
    %v505 = vunpack.c.l.b16 %v377
    %v506 = vunpack.c.l.b16 %v378
    %v507 = vunpack.c.l.b16 %v379
    %v508 = vunpack.c.l.b16 %v380
    %v509 = vunpack.c.l.b16 %v381
    %v510 = vunpack.c.l.b16 %v382
    %v511 = vunpack.c.l.b16 %v383
    %v512 = vunpack.c.l.b16 %v384
    %v513 = vunpack.c.l.b16 %v385
    %v514 = vunpack.c.l.b16 %v386
    %v515 = vunpack.c.l.b16 %v387
    %v516 = vunpack.c.l.b16 %v388
    %v517 = vunpack.c.l.b16 %v389
    %v518 = vunpack.c.l.b16 %v390
    %v519 = vunpack.c.l.b16 %v391
    %v520 = vunpack.c.l.b16 %v392
    %v521 = vunpack.c.l.b16 %v393
    %v522 = vunpack.c.l.b16 %v394
    %v523 = vunpack.c.l.b16 %v395
    %v524 = vunpack.c.l.b16 %v396
    %v525 = vunpack.c.l.b16 %v397
    %v526 = vunpack.c.l.b16 %v398
    %v527 = vunpack.c.l.b16 %v399
    %v528 = vunpack.c.l.b16 %v400
    %v529 = vunpack.c.l.b16 %v401
    %v530 = vunpack.c.l.b16 %v402
    %v531 = vunpack.c.l.b16 %v403
    %v532 = vunpack.c.l.b16 %v404
    %v533 = vunpack.c.l.b16 %v405
    %v534 = vunpack.c.l.b16 %v406
    %v535 = vunpack.c.l.b16 %v407
    %v536 = vunpack.c.l.b16 %v408
    %v537 = vunpack.c.l.b16 %v409
    %v538 = vunpack.c.l.b16 %v410
    %v539 = vunpack.c.l.b16 %v411
    %v540 = vunpack.c.l.b16 %v412
    %v541 = vunpack.c.l.b16 %v413
    %v542 = vunpack.c.l.b16 %v414
    %v543 = vunpack.c.l.b16 %v415
    %v544 = vunpack.c.l.b16 %v416
    %v545 = vunpack.c.l.b16 %v417
    %v546 = vunpack.c.l.b16 %v418
    %v547 = vunpack.c.l.b16 %v419
    %v548 = vunpack.c.l.b16 %v420
    %v549 = vunpack.c.l.b16 %v421
    %v550 = vunpack.c.l.b16 %v422
    %v551 = vunpack.c.l.b16 %v423
    %v552 = vunpack.c.l.b16 %v424
    %v553 = vunpack.c.l.b16 %v425
    %v554 = vunpack.c.l.b16 %v426
    %v555 = vunpack.c.l.b16 %v427
    %v556 = vunpack.c.l.b16 %v428
    %v557 = vunpack.c.l.b16 %v429
    %v558 = vunpack.c.l.b16 %v430
    %v559 = vunpack.c.l.b16 %v431
    %v560 = vunpack.c.l.b16 %v432
    %v561 = vunpack.c.l.b16 %v433
    %v562 = vunpack.c.l.b16 %v434
    %v563 = vunpack.c.l.b16 %v435
    %v564 = vunpack.c.l.b16 %v436
    %v565 = vunpack.c.l.b16 %v437
    %v566 = vunpack.c.l.b16 %v438
    %v567 = vpack.c.b16 %v504, %v503
    %v568 = vpack.c.b16 %v506, %v505
    %v569 = vpack.c.b16 %v508, %v507
    %v570 = vpack.c.b16 %v510, %v509
    %v571 = vpack.c.b16 %v512, %v511
    %v572 = vpack.c.b16 %v514, %v513
    %v573 = vpack.c.b16 %v516, %v515
    %v574 = vpack.c.b16 %v518, %v517
    %v575 = vpack.c.b16 %v520, %v519
    %v576 = vpack.c.b16 %v522, %v521
    %v577 = vpack.c.b16 %v524, %v523
    %v578 = vpack.c.b16 %v526, %v525
    %v579 = vpack.c.b16 %v528, %v527
    %v580 = vpack.c.b16 %v530, %v529
    %v581 = vpack.c.b16 %v532, %v531
    %v582 = vpack.c.b16 %v534, %v533
    %v583 = vpack.c.b16 %v536, %v535
    %v584 = vpack.c.b16 %v538, %v537
    %v585 = vpack.c.b16 %v540, %v539
    %v586 = vpack.c.b16 %v542, %v541
    %v587 = vpack.c.b16 %v544, %v543
    %v588 = vpack.c.b16 %v546, %v545
    %v589 = vpack.c.b16 %v548, %v547
    %v590 = vpack.c.b16 %v550, %v549
    %v591 = vpack.c.b16 %v552, %v551
    %v592 = vpack.c.b16 %v554, %v553
    %v593 = vpack.c.b16 %v556, %v555
    %v594 = vpack.c.b16 %v558, %v557
    %v595 = vpack.c.b16 %v560, %v559
    %v596 = vpack.c.b16 %v562, %v561
    %v597 = vpack.c.b16 %v564, %v563
    %v598 = vpack.c.b16 %v566, %v565
    %631 = vmatpush.bf16.msra.mxu0 %v574
    %632 = vmatpush.bf16.msra.mxu0 %v573
    %633 = vmatpush.bf16.msra.mxu0 %v572
    %634 = vmatpush.bf16.msra.mxu0 %v571
    %635 = vmatpush.bf16.msra.mxu0 %v570
    %636 = vmatpush.bf16.msra.mxu0 %v569
    %637 = vmatpush.bf16.msra.mxu0 %v568
    %638 = vmatpush.bf16.msra.mxu0 %v567
    %639 = vmatmul.bf16.gmra.mxu0 %v371
    %v640 = vpop.f32.mrf.mxu0
    %v641 = vadd.f32 0.0, %v640
    %v642 = vpop.f32.mrf.mxu0
    %v643 = vadd.f32 0.0, %v642
    %644 = vdwg.mxu0
    %645 = vmatpush.bf16.msra.mxu0 %v582
    %646 = vmatpush.bf16.msra.mxu0 %v581
    %647 = vmatpush.bf16.msra.mxu0 %v580
    %648 = vmatpush.bf16.msra.mxu0 %v579
    %649 = vmatpush.bf16.msra.mxu0 %v578
    %650 = vmatpush.bf16.msra.mxu0 %v577
    %651 = vmatpush.bf16.msra.mxu0 %v576
    %652 = vmatpush.bf16.msra.mxu0 %v575
    %653 = vmatmul.bf16.gmra.mxu0 %v372
    %v654 = vpop.f32.mrf.mxu0
    %v655 = vadd.f32 %v641, %v654
    %v656 = vpop.f32.mrf.mxu0
    %v657 = vadd.f32 %v643, %v656
    %658 = vdwg.mxu0
    %659 = vmatpush.bf16.msra.mxu0 %v590
    %660 = vmatpush.bf16.msra.mxu0 %v589
    %661 = vmatpush.bf16.msra.mxu0 %v588
    %662 = vmatpush.bf16.msra.mxu0 %v587
    %663 = vmatpush.bf16.msra.mxu0 %v586
    %664 = vmatpush.bf16.msra.mxu0 %v585
    %665 = vmatpush.bf16.msra.mxu0 %v584
    %666 = vmatpush.bf16.msra.mxu0 %v583
    %667 = vmatmul.bf16.gmra.mxu0 %v373
    %v668 = vpop.f32.mrf.mxu0
    %v669 = vadd.f32 %v655, %v668
    %v670 = vpop.f32.mrf.mxu0
    %v671 = vadd.f32 %v657, %v670
    %672 = vdwg.mxu0
    %673 = vmatpush.bf16.msra.mxu0 %v598
    %674 = vmatpush.bf16.msra.mxu0 %v597
    %675 = vmatpush.bf16.msra.mxu0 %v596
    %676 = vmatpush.bf16.msra.mxu0 %v595
    %677 = vmatpush.bf16.msra.mxu0 %v594
    %678 = vmatpush.bf16.msra.mxu0 %v593
    %679 = vmatpush.bf16.msra.mxu0 %v592
    %680 = vmatpush.bf16.msra.mxu0 %v591
    %681 = vmatmul.bf16.gmra.mxu0 %v374
    %v682 = vpop.f32.mrf.mxu0
    %v683 = vadd.f32 %v669, %v682
    %v684 = vpop.f32.mrf.mxu0
    %v685 = vadd.f32 %v671, %v684
    %686 = vdwg.mxu0
    %v687 = vld [vmem:[#allocation2 + $0x140] sm:$0xf]
    %v688 = vld [vmem:[#allocation2 + $0x144] sm:$0xf]
    %v689 = vld [vmem:[#allocation2 + $0x148] sm:$0xf]
    %v690 = vld [vmem:[#allocation2 + $0x14c] sm:$0xf]
    %v691 = vld [vmem:[#allocation2 + $0x150] sm:$0xf]
    %v692 = vld [vmem:[#allocation2 + $0x154] sm:$0xf]
    %v693 = vld [vmem:[#allocation2 + $0x158] sm:$0xf]
    %v694 = vld [vmem:[#allocation2 + $0x15c] sm:$0xf]
    %v695 = vld [vmem:[#allocation2 + $0x160] sm:$0xf]
    %v696 = vld [vmem:[#allocation2 + $0x164] sm:$0xf]
    %v697 = vld [vmem:[#allocation2 + $0x168] sm:$0xf]
    %v698 = vld [vmem:[#allocation2 + $0x16c] sm:$0xf]
    %v699 = vld [vmem:[#allocation2 + $0x170] sm:$0xf]
    %v700 = vld [vmem:[#allocation2 + $0x174] sm:$0xf]
    %v701 = vld [vmem:[#allocation2 + $0x178] sm:$0xf]
    %v702 = vld [vmem:[#allocation2 + $0x17c] sm:$0xf]
    %v703 = vld [vmem:[#allocation2 + $0x180] sm:$0xf]
    %v704 = vld [vmem:[#allocation2 + $0x184] sm:$0xf]
    %v705 = vld [vmem:[#allocation2 + $0x188] sm:$0xf]
    %v706 = vld [vmem:[#allocation2 + $0x18c] sm:$0xf]
    %v707 = vld [vmem:[#allocation2 + $0x190] sm:$0xf]
    %v708 = vld [vmem:[#allocation2 + $0x194] sm:$0xf]
    %v709 = vld [vmem:[#allocation2 + $0x198] sm:$0xf]
    %v710 = vld [vmem:[#allocation2 + $0x19c] sm:$0xf]
    %v711 = vld [vmem:[#allocation2 + $0x1a0] sm:$0xf]
    %v712 = vld [vmem:[#allocation2 + $0x1a4] sm:$0xf]
    %v713 = vld [vmem:[#allocation2 + $0x1a8] sm:$0xf]
    %v714 = vld [vmem:[#allocation2 + $0x1ac] sm:$0xf]
    %v715 = vld [vmem:[#allocation2 + $0x1b0] sm:$0xf]
    %v716 = vld [vmem:[#allocation2 + $0x1b4] sm:$0xf]
    %v717 = vld [vmem:[#allocation2 + $0x1b8] sm:$0xf]
    %v718 = vld [vmem:[#allocation2 + $0x1bc] sm:$0xf]
    %v719 = vld [vmem:[#allocation2 + $0x1c0] sm:$0xf]
    %v720 = vld [vmem:[#allocation2 + $0x1c4] sm:$0xf]
    %v721 = vld [vmem:[#allocation2 + $0x1c8] sm:$0xf]
    %v722 = vld [vmem:[#allocation2 + $0x1cc] sm:$0xf]
    %v723 = vld [vmem:[#allocation2 + $0x1d0] sm:$0xf]
    %v724 = vld [vmem:[#allocation2 + $0x1d4] sm:$0xf]
    %v725 = vld [vmem:[#allocation2 + $0x1d8] sm:$0xf]
    %v726 = vld [vmem:[#allocation2 + $0x1dc] sm:$0xf]
    %v727 = vld [vmem:[#allocation2 + $0x1e0] sm:$0xf]
    %v728 = vld [vmem:[#allocation2 + $0x1e4] sm:$0xf]
    %v729 = vld [vmem:[#allocation2 + $0x1e8] sm:$0xf]
    %v730 = vld [vmem:[#allocation2 + $0x1ec] sm:$0xf]
    %v731 = vld [vmem:[#allocation2 + $0x1f0] sm:$0xf]
    %v732 = vld [vmem:[#allocation2 + $0x1f4] sm:$0xf]
    %v733 = vld [vmem:[#allocation2 + $0x1f8] sm:$0xf]
    %v734 = vld [vmem:[#allocation2 + $0x1fc] sm:$0xf]
    %v735 = vld [vmem:[#allocation2 + $0x200] sm:$0xf]
    %v736 = vld [vmem:[#allocation2 + $0x204] sm:$0xf]
    %v737 = vld [vmem:[#allocation2 + $0x208] sm:$0xf]
    %v738 = vld [vmem:[#allocation2 + $0x20c] sm:$0xf]
    %v739 = vld [vmem:[#allocation2 + $0x210] sm:$0xf]
    %v740 = vld [vmem:[#allocation2 + $0x214] sm:$0xf]
    %v741 = vld [vmem:[#allocation2 + $0x218] sm:$0xf]
    %v742 = vld [vmem:[#allocation2 + $0x21c] sm:$0xf]
    %v743 = vld [vmem:[#allocation2 + $0x220] sm:$0xf]
    %v744 = vld [vmem:[#allocation2 + $0x224] sm:$0xf]
    %v745 = vld [vmem:[#allocation2 + $0x228] sm:$0xf]
    %v746 = vld [vmem:[#allocation2 + $0x22c] sm:$0xf]
    %v747 = vld [vmem:[#allocation2 + $0x230] sm:$0xf]
    %v748 = vld [vmem:[#allocation2 + $0x234] sm:$0xf]
    %v749 = vld [vmem:[#allocation2 + $0x238] sm:$0xf]
    %v750 = vld [vmem:[#allocation2 + $0x23c] sm:$0xf]
    %v815 = vunpack.c.l.b16 %v687
    %v816 = vunpack.c.l.b16 %v688
    %v817 = vunpack.c.l.b16 %v689
    %v818 = vunpack.c.l.b16 %v690
    %v819 = vunpack.c.l.b16 %v691
    %v820 = vunpack.c.l.b16 %v692
    %v821 = vunpack.c.l.b16 %v693
    %v822 = vunpack.c.l.b16 %v694
    %v823 = vunpack.c.l.b16 %v695
    %v824 = vunpack.c.l.b16 %v696
    %v825 = vunpack.c.l.b16 %v697
    %v826 = vunpack.c.l.b16 %v698
    %v827 = vunpack.c.l.b16 %v699
    %v828 = vunpack.c.l.b16 %v700
    %v829 = vunpack.c.l.b16 %v701
    %v830 = vunpack.c.l.b16 %v702
    %v831 = vunpack.c.l.b16 %v703
    %v832 = vunpack.c.l.b16 %v704
    %v833 = vunpack.c.l.b16 %v705
    %v834 = vunpack.c.l.b16 %v706
    %v835 = vunpack.c.l.b16 %v707
    %v836 = vunpack.c.l.b16 %v708
    %v837 = vunpack.c.l.b16 %v709
    %v838 = vunpack.c.l.b16 %v710
    %v839 = vunpack.c.l.b16 %v711
    %v840 = vunpack.c.l.b16 %v712
    %v841 = vunpack.c.l.b16 %v713
    %v842 = vunpack.c.l.b16 %v714
    %v843 = vunpack.c.l.b16 %v715
    %v844 = vunpack.c.l.b16 %v716
    %v845 = vunpack.c.l.b16 %v717
    %v846 = vunpack.c.l.b16 %v718
    %v847 = vunpack.c.l.b16 %v719
    %v848 = vunpack.c.l.b16 %v720
    %v849 = vunpack.c.l.b16 %v721
    %v850 = vunpack.c.l.b16 %v722
    %v851 = vunpack.c.l.b16 %v723
    %v852 = vunpack.c.l.b16 %v724
    %v853 = vunpack.c.l.b16 %v725
    %v854 = vunpack.c.l.b16 %v726
    %v855 = vunpack.c.l.b16 %v727
    %v856 = vunpack.c.l.b16 %v728
    %v857 = vunpack.c.l.b16 %v729
    %v858 = vunpack.c.l.b16 %v730
    %v859 = vunpack.c.l.b16 %v731
    %v860 = vunpack.c.l.b16 %v732
    %v861 = vunpack.c.l.b16 %v733
    %v862 = vunpack.c.l.b16 %v734
    %v863 = vunpack.c.l.b16 %v735
    %v864 = vunpack.c.l.b16 %v736
    %v865 = vunpack.c.l.b16 %v737
    %v866 = vunpack.c.l.b16 %v738
    %v867 = vunpack.c.l.b16 %v739
    %v868 = vunpack.c.l.b16 %v740
    %v869 = vunpack.c.l.b16 %v741
    %v870 = vunpack.c.l.b16 %v742
    %v871 = vunpack.c.l.b16 %v743
    %v872 = vunpack.c.l.b16 %v744
    %v873 = vunpack.c.l.b16 %v745
    %v874 = vunpack.c.l.b16 %v746
    %v875 = vunpack.c.l.b16 %v747
    %v876 = vunpack.c.l.b16 %v748
    %v877 = vunpack.c.l.b16 %v749
    %v878 = vunpack.c.l.b16 %v750
    %v879 = vpack.c.b16 %v816, %v815
    %v880 = vpack.c.b16 %v818, %v817
    %v881 = vpack.c.b16 %v820, %v819
    %v882 = vpack.c.b16 %v822, %v821
    %v883 = vpack.c.b16 %v824, %v823
    %v884 = vpack.c.b16 %v826, %v825
    %v885 = vpack.c.b16 %v828, %v827
    %v886 = vpack.c.b16 %v830, %v829
    %v887 = vpack.c.b16 %v832, %v831
    %v888 = vpack.c.b16 %v834, %v833
    %v889 = vpack.c.b16 %v836, %v835
    %v890 = vpack.c.b16 %v838, %v837
    %v891 = vpack.c.b16 %v840, %v839
    %v892 = vpack.c.b16 %v842, %v841
    %v893 = vpack.c.b16 %v844, %v843
    %v894 = vpack.c.b16 %v846, %v845
    %v895 = vpack.c.b16 %v848, %v847
    %v896 = vpack.c.b16 %v850, %v849
    %v897 = vpack.c.b16 %v852, %v851
    %v898 = vpack.c.b16 %v854, %v853
    %v899 = vpack.c.b16 %v856, %v855
    %v900 = vpack.c.b16 %v858, %v857
    %v901 = vpack.c.b16 %v860, %v859
    %v902 = vpack.c.b16 %v862, %v861
    %v903 = vpack.c.b16 %v864, %v863
    %v904 = vpack.c.b16 %v866, %v865
    %v905 = vpack.c.b16 %v868, %v867
    %v906 = vpack.c.b16 %v870, %v869
    %v907 = vpack.c.b16 %v872, %v871
    %v908 = vpack.c.b16 %v874, %v873
    %v909 = vpack.c.b16 %v876, %v875
    %v910 = vpack.c.b16 %v878, %v877
    %943 = vmatpush.bf16.msra.mxu0 %v886
    %944 = vmatpush.bf16.msra.mxu0 %v885
    %945 = vmatpush.bf16.msra.mxu0 %v884
    %946 = vmatpush.bf16.msra.mxu0 %v883
    %947 = vmatpush.bf16.msra.mxu0 %v882
    %948 = vmatpush.bf16.msra.mxu0 %v881
    %949 = vmatpush.bf16.msra.mxu0 %v880
    %950 = vmatpush.bf16.msra.mxu0 %v879
    %951 = vmatmul.bf16.gmra.mxu0 %v371
    %v952 = vpop.f32.mrf.mxu0
    %v953 = vadd.f32 0.0, %v952
    %v954 = vpop.f32.mrf.mxu0
    %v955 = vadd.f32 0.0, %v954
    %956 = vdwg.mxu0
    %957 = vmatpush.bf16.msra.mxu0 %v894
    %958 = vmatpush.bf16.msra.mxu0 %v893
    %959 = vmatpush.bf16.msra.mxu0 %v892
    %960 = vmatpush.bf16.msra.mxu0 %v891
    %961 = vmatpush.bf16.msra.mxu0 %v890
    %962 = vmatpush.bf16.msra.mxu0 %v889
    %963 = vmatpush.bf16.msra.mxu0 %v888
    %964 = vmatpush.bf16.msra.mxu0 %v887
    %965 = vmatmul.bf16.gmra.mxu0 %v372
    %v966 = vpop.f32.mrf.mxu0
    %v967 = vadd.f32 %v953, %v966
    %v968 = vpop.f32.mrf.mxu0
    %v969 = vadd.f32 %v955, %v968
    %970 = vdwg.mxu0
    %971 = vmatpush.bf16.msra.mxu0 %v902
    %972 = vmatpush.bf16.msra.mxu0 %v901
    %973 = vmatpush.bf16.msra.mxu0 %v900
    %974 = vmatpush.bf16.msra.mxu0 %v899
    %975 = vmatpush.bf16.msra.mxu0 %v898
    %976 = vmatpush.bf16.msra.mxu0 %v897
    %977 = vmatpush.bf16.msra.mxu0 %v896
    %978 = vmatpush.bf16.msra.mxu0 %v895
    %979 = vmatmul.bf16.gmra.mxu0 %v373
    %v980 = vpop.f32.mrf.mxu0
    %v981 = vadd.f32 %v967, %v980
    %v982 = vpop.f32.mrf.mxu0
    %v983 = vadd.f32 %v969, %v982
    %984 = vdwg.mxu0
    %985 = vmatpush.bf16.msra.mxu0 %v910
    %986 = vmatpush.bf16.msra.mxu0 %v909
    %987 = vmatpush.bf16.msra.mxu0 %v908
    %988 = vmatpush.bf16.msra.mxu0 %v907
    %989 = vmatpush.bf16.msra.mxu0 %v906
    %990 = vmatpush.bf16.msra.mxu0 %v905
    %991 = vmatpush.bf16.msra.mxu0 %v904
    %992 = vmatpush.bf16.msra.mxu0 %v903
    %993 = vmatmul.bf16.gmra.mxu0 %v374
    %v994 = vpop.f32.mrf.mxu0
    %v995 = vadd.f32 %v981, %v994
    %v996 = vpop.f32.mrf.mxu0
    %v997 = vadd.f32 %v983, %v996
    %998 = vdwg.mxu0
    %v999 = vld [vmem:[#allocation2 + $0x240] sm:$0xf]
    %v1000 = vld [vmem:[#allocation2 + $0x244] sm:$0xf]
    %v1001 = vld [vmem:[#allocation2 + $0x248] sm:$0xf]
    %v1002 = vld [vmem:[#allocation2 + $0x24c] sm:$0xf]
    %v1003 = vld [vmem:[#allocation2 + $0x250] sm:$0xf]
    %v1004 = vld [vmem:[#allocation2 + $0x254] sm:$0xf]
    %v1005 = vld [vmem:[#allocation2 + $0x258] sm:$0xf]
    %v1006 = vld [vmem:[#allocation2 + $0x25c] sm:$0xf]
    %v1007 = vld [vmem:[#allocation2 + $0x260] sm:$0xf]
    %v1008 = vld [vmem:[#allocation2 + $0x264] sm:$0xf]
    %v1009 = vld [vmem:[#allocation2 + $0x268] sm:$0xf]
    %v1010 = vld [vmem:[#allocation2 + $0x26c] sm:$0xf]
    %v1011 = vld [vmem:[#allocation2 + $0x270] sm:$0xf]
    %v1012 = vld [vmem:[#allocation2 + $0x274] sm:$0xf]
    %v1013 = vld [vmem:[#allocation2 + $0x278] sm:$0xf]
    %v1014 = vld [vmem:[#allocation2 + $0x27c] sm:$0xf]
    %v1015 = vld [vmem:[#allocation2 + $0x280] sm:$0xf]
    %v1016 = vld [vmem:[#allocation2 + $0x284] sm:$0xf]
    %v1017 = vld [vmem:[#allocation2 + $0x288] sm:$0xf]
    %v1018 = vld [vmem:[#allocation2 + $0x28c] sm:$0xf]
    %v1019 = vld [vmem:[#allocation2 + $0x290] sm:$0xf]
    %v1020 = vld [vmem:[#allocation2 + $0x294] sm:$0xf]
    %v1021 = vld [vmem:[#allocation2 + $0x298] sm:$0xf]
    %v1022 = vld [vmem:[#allocation2 + $0x29c] sm:$0xf]
    %v1023 = vld [vmem:[#allocation2 + $0x2a0] sm:$0xf]
    %v1024 = vld [vmem:[#allocation2 + $0x2a4] sm:$0xf]
    %v1025 = vld [vmem:[#allocation2 + $0x2a8] sm:$0xf]
    %v1026 = vld [vmem:[#allocation2 + $0x2ac] sm:$0xf]
    %v1027 = vld [vmem:[#allocation2 + $0x2b0] sm:$0xf]
    %v1028 = vld [vmem:[#allocation2 + $0x2b4] sm:$0xf]
    %v1029 = vld [vmem:[#allocation2 + $0x2b8] sm:$0xf]
    %v1030 = vld [vmem:[#allocation2 + $0x2bc] sm:$0xf]
    %v1031 = vld [vmem:[#allocation2 + $0x2c0] sm:$0xf]
    %v1032 = vld [vmem:[#allocation2 + $0x2c4] sm:$0xf]
    %v1033 = vld [vmem:[#allocation2 + $0x2c8] sm:$0xf]
    %v1034 = vld [vmem:[#allocation2 + $0x2cc] sm:$0xf]
    %v1035 = vld [vmem:[#allocation2 + $0x2d0] sm:$0xf]
    %v1036 = vld [vmem:[#allocation2 + $0x2d4] sm:$0xf]
    %v1037 = vld [vmem:[#allocation2 + $0x2d8] sm:$0xf]
    %v1038 = vld [vmem:[#allocation2 + $0x2dc] sm:$0xf]
    %v1039 = vld [vmem:[#allocation2 + $0x2e0] sm:$0xf]
    %v1040 = vld [vmem:[#allocation2 + $0x2e4] sm:$0xf]
    %v1041 = vld [vmem:[#allocation2 + $0x2e8] sm:$0xf]
    %v1042 = vld [vmem:[#allocation2 + $0x2ec] sm:$0xf]
    %v1043 = vld [vmem:[#allocation2 + $0x2f0] sm:$0xf]
    %v1044 = vld [vmem:[#allocation2 + $0x2f4] sm:$0xf]
    %v1045 = vld [vmem:[#allocation2 + $0x2f8] sm:$0xf]
    %v1046 = vld [vmem:[#allocation2 + $0x2fc] sm:$0xf]
    %v1047 = vld [vmem:[#allocation2 + $0x300] sm:$0xf]
    %v1048 = vld [vmem:[#allocation2 + $0x304] sm:$0xf]
    %v1049 = vld [vmem:[#allocation2 + $0x308] sm:$0xf]
    %v1050 = vld [vmem:[#allocation2 + $0x30c] sm:$0xf]
    %v1051 = vld [vmem:[#allocation2 + $0x310] sm:$0xf]
    %v1052 = vld [vmem:[#allocation2 + $0x314] sm:$0xf]
    %v1053 = vld [vmem:[#allocation2 + $0x318] sm:$0xf]
    %v1054 = vld [vmem:[#allocation2 + $0x31c] sm:$0xf]
    %v1055 = vld [vmem:[#allocation2 + $0x320] sm:$0xf]
    %v1056 = vld [vmem:[#allocation2 + $0x324] sm:$0xf]
    %v1057 = vld [vmem:[#allocation2 + $0x328] sm:$0xf]
    %v1058 = vld [vmem:[#allocation2 + $0x32c] sm:$0xf]
    %v1059 = vld [vmem:[#allocation2 + $0x330] sm:$0xf]
    %v1060 = vld [vmem:[#allocation2 + $0x334] sm:$0xf]
    %v1061 = vld [vmem:[#allocation2 + $0x338] sm:$0xf]
    %v1062 = vld [vmem:[#allocation2 + $0x33c] sm:$0xf]
    %v1127 = vunpack.c.l.b16 %v999
    %v1128 = vunpack.c.l.b16 %v1000
    %v1129 = vunpack.c.l.b16 %v1001
    %v1130 = vunpack.c.l.b16 %v1002
    %v1131 = vunpack.c.l.b16 %v1003
    %v1132 = vunpack.c.l.b16 %v1004
    %v1133 = vunpack.c.l.b16 %v1005
    %v1134 = vunpack.c.l.b16 %v1006
    %v1135 = vunpack.c.l.b16 %v1007
    %v1136 = vunpack.c.l.b16 %v1008
    %v1137 = vunpack.c.l.b16 %v1009
    %v1138 = vunpack.c.l.b16 %v1010
    %v1139 = vunpack.c.l.b16 %v1011
    %v1140 = vunpack.c.l.b16 %v1012
    %v1141 = vunpack.c.l.b16 %v1013
    %v1142 = vunpack.c.l.b16 %v1014
    %v1143 = vunpack.c.l.b16 %v1015
    %v1144 = vunpack.c.l.b16 %v1016
    %v1145 = vunpack.c.l.b16 %v1017
    %v1146 = vunpack.c.l.b16 %v1018
    %v1147 = vunpack.c.l.b16 %v1019
    %v1148 = vunpack.c.l.b16 %v1020
    %v1149 = vunpack.c.l.b16 %v1021
    %v1150 = vunpack.c.l.b16 %v1022
    %v1151 = vunpack.c.l.b16 %v1023
    %v1152 = vunpack.c.l.b16 %v1024
    %v1153 = vunpack.c.l.b16 %v1025
    %v1154 = vunpack.c.l.b16 %v1026
    %v1155 = vunpack.c.l.b16 %v1027
    %v1156 = vunpack.c.l.b16 %v1028
    %v1157 = vunpack.c.l.b16 %v1029
    %v1158 = vunpack.c.l.b16 %v1030
    %v1159 = vunpack.c.l.b16 %v1031
    %v1160 = vunpack.c.l.b16 %v1032
    %v1161 = vunpack.c.l.b16 %v1033
    %v1162 = vunpack.c.l.b16 %v1034
    %v1163 = vunpack.c.l.b16 %v1035
    %v1164 = vunpack.c.l.b16 %v1036
    %v1165 = vunpack.c.l.b16 %v1037
    %v1166 = vunpack.c.l.b16 %v1038
    %v1167 = vunpack.c.l.b16 %v1039
    %v1168 = vunpack.c.l.b16 %v1040
    %v1169 = vunpack.c.l.b16 %v1041
    %v1170 = vunpack.c.l.b16 %v1042
    %v1171 = vunpack.c.l.b16 %v1043
    %v1172 = vunpack.c.l.b16 %v1044
    %v1173 = vunpack.c.l.b16 %v1045
    %v1174 = vunpack.c.l.b16 %v1046
    %v1175 = vunpack.c.l.b16 %v1047
    %v1176 = vunpack.c.l.b16 %v1048
    %v1177 = vunpack.c.l.b16 %v1049
    %v1178 = vunpack.c.l.b16 %v1050
    %v1179 = vunpack.c.l.b16 %v1051
    %v1180 = vunpack.c.l.b16 %v1052
    %v1181 = vunpack.c.l.b16 %v1053
    %v1182 = vunpack.c.l.b16 %v1054
    %v1183 = vunpack.c.l.b16 %v1055
    %v1184 = vunpack.c.l.b16 %v1056
    %v1185 = vunpack.c.l.b16 %v1057
    %v1186 = vunpack.c.l.b16 %v1058
    %v1187 = vunpack.c.l.b16 %v1059
    %v1188 = vunpack.c.l.b16 %v1060
    %v1189 = vunpack.c.l.b16 %v1061
    %v1190 = vunpack.c.l.b16 %v1062
    %v1191 = vpack.c.b16 %v1128, %v1127
    %v1192 = vpack.c.b16 %v1130, %v1129
    %v1193 = vpack.c.b16 %v1132, %v1131
    %v1194 = vpack.c.b16 %v1134, %v1133
    %v1195 = vpack.c.b16 %v1136, %v1135
    %v1196 = vpack.c.b16 %v1138, %v1137
    %v1197 = vpack.c.b16 %v1140, %v1139
    %v1198 = vpack.c.b16 %v1142, %v1141
    %v1199 = vpack.c.b16 %v1144, %v1143
    %v1200 = vpack.c.b16 %v1146, %v1145
    %v1201 = vpack.c.b16 %v1148, %v1147
    %v1202 = vpack.c.b16 %v1150, %v1149
    %v1203 = vpack.c.b16 %v1152, %v1151
    %v1204 = vpack.c.b16 %v1154, %v1153
    %v1205 = vpack.c.b16 %v1156, %v1155
    %v1206 = vpack.c.b16 %v1158, %v1157
    %v1207 = vpack.c.b16 %v1160, %v1159
    %v1208 = vpack.c.b16 %v1162, %v1161
    %v1209 = vpack.c.b16 %v1164, %v1163
    %v1210 = vpack.c.b16 %v1166, %v1165
    %v1211 = vpack.c.b16 %v1168, %v1167
    %v1212 = vpack.c.b16 %v1170, %v1169
    %v1213 = vpack.c.b16 %v1172, %v1171
    %v1214 = vpack.c.b16 %v1174, %v1173
    %v1215 = vpack.c.b16 %v1176, %v1175
    %v1216 = vpack.c.b16 %v1178, %v1177
    %v1217 = vpack.c.b16 %v1180, %v1179
    %v1218 = vpack.c.b16 %v1182, %v1181
    %v1219 = vpack.c.b16 %v1184, %v1183
    %v1220 = vpack.c.b16 %v1186, %v1185
    %v1221 = vpack.c.b16 %v1188, %v1187
    %v1222 = vpack.c.b16 %v1190, %v1189
    %1255 = vmatpush.bf16.msra.mxu0 %v1198
    %1256 = vmatpush.bf16.msra.mxu0 %v1197
    %1257 = vmatpush.bf16.msra.mxu0 %v1196
    %1258 = vmatpush.bf16.msra.mxu0 %v1195
    %1259 = vmatpush.bf16.msra.mxu0 %v1194
    %1260 = vmatpush.bf16.msra.mxu0 %v1193
    %1261 = vmatpush.bf16.msra.mxu0 %v1192
    %1262 = vmatpush.bf16.msra.mxu0 %v1191
    %1263 = vmatmul.bf16.gmra.mxu0 %v371
    %v1264 = vpop.f32.mrf.mxu0
    %v1265 = vadd.f32 0.0, %v1264
    %v1266 = vpop.f32.mrf.mxu0
    %v1267 = vadd.f32 0.0, %v1266
    %1268 = vdwg.mxu0
    %1269 = vmatpush.bf16.msra.mxu0 %v1206
    %1270 = vmatpush.bf16.msra.mxu0 %v1205
    %1271 = vmatpush.bf16.msra.mxu0 %v1204
    %1272 = vmatpush.bf16.msra.mxu0 %v1203
    %1273 = vmatpush.bf16.msra.mxu0 %v1202
    %1274 = vmatpush.bf16.msra.mxu0 %v1201
    %1275 = vmatpush.bf16.msra.mxu0 %v1200
    %1276 = vmatpush.bf16.msra.mxu0 %v1199
    %1277 = vmatmul.bf16.gmra.mxu0 %v372
    %v1278 = vpop.f32.mrf.mxu0
    %v1279 = vadd.f32 %v1265, %v1278
    %v1280 = vpop.f32.mrf.mxu0
    %v1281 = vadd.f32 %v1267, %v1280
    %1282 = vdwg.mxu0
    %1283 = vmatpush.bf16.msra.mxu0 %v1214
    %1284 = vmatpush.bf16.msra.mxu0 %v1213
    %1285 = vmatpush.bf16.msra.mxu0 %v1212
    %1286 = vmatpush.bf16.msra.mxu0 %v1211
    %1287 = vmatpush.bf16.msra.mxu0 %v1210
    %1288 = vmatpush.bf16.msra.mxu0 %v1209
    %1289 = vmatpush.bf16.msra.mxu0 %v1208
    %1290 = vmatpush.bf16.msra.mxu0 %v1207
    %1291 = vmatmul.bf16.gmra.mxu0 %v373
    %v1292 = vpop.f32.mrf.mxu0
    %v1293 = vadd.f32 %v1279, %v1292
    %v1294 = vpop.f32.mrf.mxu0
    %v1295 = vadd.f32 %v1281, %v1294
    %1296 = vdwg.mxu0
    %1297 = vmatpush.bf16.msra.mxu0 %v1222
    %1298 = vmatpush.bf16.msra.mxu0 %v1221
    %1299 = vmatpush.bf16.msra.mxu0 %v1220
    %1300 = vmatpush.bf16.msra.mxu0 %v1219
    %1301 = vmatpush.bf16.msra.mxu0 %v1218
    %1302 = vmatpush.bf16.msra.mxu0 %v1217
    %1303 = vmatpush.bf16.msra.mxu0 %v1216
    %1304 = vmatpush.bf16.msra.mxu0 %v1215
    %1305 = vmatmul.bf16.gmra.mxu0 %v374
    %v1306 = vpop.f32.mrf.mxu0
    %v1307 = vadd.f32 %v1293, %v1306
    %v1308 = vpop.f32.mrf.mxu0
    %v1309 = vadd.f32 %v1295, %v1308
    %1310 = vdwg.mxu0
    %v1311 = vld [vmem:[#allocation2 + $0x340] sm:$0xf]
    %v1312 = vld [vmem:[#allocation2 + $0x344] sm:$0xf]
    %v1313 = vld [vmem:[#allocation2 + $0x348] sm:$0xf]
    %v1314 = vld [vmem:[#allocation2 + $0x34c] sm:$0xf]
    %v1315 = vld [vmem:[#allocation2 + $0x350] sm:$0xf]
    %v1316 = vld [vmem:[#allocation2 + $0x354] sm:$0xf]
    %v1317 = vld [vmem:[#allocation2 + $0x358] sm:$0xf]
    %v1318 = vld [vmem:[#allocation2 + $0x35c] sm:$0xf]
    %v1319 = vld [vmem:[#allocation2 + $0x360] sm:$0xf]
    %v1320 = vld [vmem:[#allocation2 + $0x364] sm:$0xf]
    %v1321 = vld [vmem:[#allocation2 + $0x368] sm:$0xf]
    %v1322 = vld [vmem:[#allocation2 + $0x36c] sm:$0xf]
    %v1323 = vld [vmem:[#allocation2 + $0x370] sm:$0xf]
    %v1324 = vld [vmem:[#allocation2 + $0x374] sm:$0xf]
    %v1325 = vld [vmem:[#allocation2 + $0x378] sm:$0xf]
    %v1326 = vld [vmem:[#allocation2 + $0x37c] sm:$0xf]
    %v1327 = vld [vmem:[#allocation2 + $0x380] sm:$0xf]
    %v1328 = vld [vmem:[#allocation2 + $0x384] sm:$0xf]
    %v1329 = vld [vmem:[#allocation2 + $0x388] sm:$0xf]
    %v1330 = vld [vmem:[#allocation2 + $0x38c] sm:$0xf]
    %v1331 = vld [vmem:[#allocation2 + $0x390] sm:$0xf]
    %v1332 = vld [vmem:[#allocation2 + $0x394] sm:$0xf]
    %v1333 = vld [vmem:[#allocation2 + $0x398] sm:$0xf]
    %v1334 = vld [vmem:[#allocation2 + $0x39c] sm:$0xf]
    %v1335 = vld [vmem:[#allocation2 + $0x3a0] sm:$0xf]
    %v1336 = vld [vmem:[#allocation2 + $0x3a4] sm:$0xf]
    %v1337 = vld [vmem:[#allocation2 + $0x3a8] sm:$0xf]
    %v1338 = vld [vmem:[#allocation2 + $0x3ac] sm:$0xf]
    %v1339 = vld [vmem:[#allocation2 + $0x3b0] sm:$0xf]
    %v1340 = vld [vmem:[#allocation2 + $0x3b4] sm:$0xf]
    %v1341 = vld [vmem:[#allocation2 + $0x3b8] sm:$0xf]
    %v1342 = vld [vmem:[#allocation2 + $0x3bc] sm:$0xf]
    %v1343 = vld [vmem:[#allocation2 + $0x3c0] sm:$0xf]
    %v1344 = vld [vmem:[#allocation2 + $0x3c4] sm:$0xf]
    %v1345 = vld [vmem:[#allocation2 + $0x3c8] sm:$0xf]
    %v1346 = vld [vmem:[#allocation2 + $0x3cc] sm:$0xf]
    %v1347 = vld [vmem:[#allocation2 + $0x3d0] sm:$0xf]
    %v1348 = vld [vmem:[#allocation2 + $0x3d4] sm:$0xf]
    %v1349 = vld [vmem:[#allocation2 + $0x3d8] sm:$0xf]
    %v1350 = vld [vmem:[#allocation2 + $0x3dc] sm:$0xf]
    %v1351 = vld [vmem:[#allocation2 + $0x3e0] sm:$0xf]
    %v1352 = vld [vmem:[#allocation2 + $0x3e4] sm:$0xf]
    %v1353 = vld [vmem:[#allocation2 + $0x3e8] sm:$0xf]
    %v1354 = vld [vmem:[#allocation2 + $0x3ec] sm:$0xf]
    %v1355 = vld [vmem:[#allocation2 + $0x3f0] sm:$0xf]
    %v1356 = vld [vmem:[#allocation2 + $0x3f4] sm:$0xf]
    %v1357 = vld [vmem:[#allocation2 + $0x3f8] sm:$0xf]
    %v1358 = vld [vmem:[#allocation2 + $0x3fc] sm:$0xf]
    %v1359 = vld [vmem:[#allocation2 + $0x400] sm:$0xf]
    %v1360 = vld [vmem:[#allocation2 + $0x404] sm:$0xf]
    %v1361 = vld [vmem:[#allocation2 + $0x408] sm:$0xf]
    %v1362 = vld [vmem:[#allocation2 + $0x40c] sm:$0xf]
    %v1363 = vld [vmem:[#allocation2 + $0x410] sm:$0xf]
    %v1364 = vld [vmem:[#allocation2 + $0x414] sm:$0xf]
    %v1365 = vld [vmem:[#allocation2 + $0x418] sm:$0xf]
    %v1366 = vld [vmem:[#allocation2 + $0x41c] sm:$0xf]
    %v1367 = vld [vmem:[#allocation2 + $0x420] sm:$0xf]
    %v1368 = vld [vmem:[#allocation2 + $0x424] sm:$0xf]
    %v1369 = vld [vmem:[#allocation2 + $0x428] sm:$0xf]
    %v1370 = vld [vmem:[#allocation2 + $0x42c] sm:$0xf]
    %v1371 = vld [vmem:[#allocation2 + $0x430] sm:$0xf]
    %v1372 = vld [vmem:[#allocation2 + $0x434] sm:$0xf]
    %v1373 = vld [vmem:[#allocation2 + $0x438] sm:$0xf]
    %v1374 = vld [vmem:[#allocation2 + $0x43c] sm:$0xf]
    %v1439 = vunpack.c.l.b16 %v1311
    %v1440 = vunpack.c.l.b16 %v1312
    %v1441 = vunpack.c.l.b16 %v1313
    %v1442 = vunpack.c.l.b16 %v1314
    %v1443 = vunpack.c.l.b16 %v1315
    %v1444 = vunpack.c.l.b16 %v1316
    %v1445 = vunpack.c.l.b16 %v1317
    %v1446 = vunpack.c.l.b16 %v1318
    %v1447 = vunpack.c.l.b16 %v1319
    %v1448 = vunpack.c.l.b16 %v1320
    %v1449 = vunpack.c.l.b16 %v1321
    %v1450 = vunpack.c.l.b16 %v1322
    %v1451 = vunpack.c.l.b16 %v1323
    %v1452 = vunpack.c.l.b16 %v1324
    %v1453 = vunpack.c.l.b16 %v1325
    %v1454 = vunpack.c.l.b16 %v1326
    %v1455 = vunpack.c.l.b16 %v1327
    %v1456 = vunpack.c.l.b16 %v1328
    %v1457 = vunpack.c.l.b16 %v1329
    %v1458 = vunpack.c.l.b16 %v1330
    %v1459 = vunpack.c.l.b16 %v1331
    %v1460 = vunpack.c.l.b16 %v1332
    %v1461 = vunpack.c.l.b16 %v1333
    %v1462 = vunpack.c.l.b16 %v1334
    %v1463 = vunpack.c.l.b16 %v1335
    %v1464 = vunpack.c.l.b16 %v1336
    %v1465 = vunpack.c.l.b16 %v1337
    %v1466 = vunpack.c.l.b16 %v1338
    %v1467 = vunpack.c.l.b16 %v1339
    %v1468 = vunpack.c.l.b16 %v1340
    %v1469 = vunpack.c.l.b16 %v1341
    %v1470 = vunpack.c.l.b16 %v1342
    %v1471 = vunpack.c.l.b16 %v1343
    %v1472 = vunpack.c.l.b16 %v1344
    %v1473 = vunpack.c.l.b16 %v1345
    %v1474 = vunpack.c.l.b16 %v1346
    %v1475 = vunpack.c.l.b16 %v1347
    %v1476 = vunpack.c.l.b16 %v1348
    %v1477 = vunpack.c.l.b16 %v1349
    %v1478 = vunpack.c.l.b16 %v1350
    %v1479 = vunpack.c.l.b16 %v1351
    %v1480 = vunpack.c.l.b16 %v1352
    %v1481 = vunpack.c.l.b16 %v1353
    %v1482 = vunpack.c.l.b16 %v1354
    %v1483 = vunpack.c.l.b16 %v1355
    %v1484 = vunpack.c.l.b16 %v1356
    %v1485 = vunpack.c.l.b16 %v1357
    %v1486 = vunpack.c.l.b16 %v1358
    %v1487 = vunpack.c.l.b16 %v1359
    %v1488 = vunpack.c.l.b16 %v1360
    %v1489 = vunpack.c.l.b16 %v1361
    %v1490 = vunpack.c.l.b16 %v1362
    %v1491 = vunpack.c.l.b16 %v1363
    %v1492 = vunpack.c.l.b16 %v1364
    %v1493 = vunpack.c.l.b16 %v1365
    %v1494 = vunpack.c.l.b16 %v1366
    %v1495 = vunpack.c.l.b16 %v1367
    %v1496 = vunpack.c.l.b16 %v1368
    %v1497 = vunpack.c.l.b16 %v1369
    %v1498 = vunpack.c.l.b16 %v1370
    %v1499 = vunpack.c.l.b16 %v1371
    %v1500 = vunpack.c.l.b16 %v1372
    %v1501 = vunpack.c.l.b16 %v1373
    %v1502 = vunpack.c.l.b16 %v1374
    %v1503 = vpack.c.b16 %v1440, %v1439
    %v1504 = vpack.c.b16 %v1442, %v1441
    %v1505 = vpack.c.b16 %v1444, %v1443
    %v1506 = vpack.c.b16 %v1446, %v1445
    %v1507 = vpack.c.b16 %v1448, %v1447
    %v1508 = vpack.c.b16 %v1450, %v1449
    %v1509 = vpack.c.b16 %v1452, %v1451
    %v1510 = vpack.c.b16 %v1454, %v1453
    %v1511 = vpack.c.b16 %v1456, %v1455
    %v1512 = vpack.c.b16 %v1458, %v1457
    %v1513 = vpack.c.b16 %v1460, %v1459
    %v1514 = vpack.c.b16 %v1462, %v1461
    %v1515 = vpack.c.b16 %v1464, %v1463
    %v1516 = vpack.c.b16 %v1466, %v1465
    %v1517 = vpack.c.b16 %v1468, %v1467
    %v1518 = vpack.c.b16 %v1470, %v1469
    %v1519 = vpack.c.b16 %v1472, %v1471
    %v1520 = vpack.c.b16 %v1474, %v1473
    %v1521 = vpack.c.b16 %v1476, %v1475
    %v1522 = vpack.c.b16 %v1478, %v1477
    %v1523 = vpack.c.b16 %v1480, %v1479
    %v1524 = vpack.c.b16 %v1482, %v1481
    %v1525 = vpack.c.b16 %v1484, %v1483
    %v1526 = vpack.c.b16 %v1486, %v1485
    %v1527 = vpack.c.b16 %v1488, %v1487
    %v1528 = vpack.c.b16 %v1490, %v1489
    %v1529 = vpack.c.b16 %v1492, %v1491
    %v1530 = vpack.c.b16 %v1494, %v1493
    %v1531 = vpack.c.b16 %v1496, %v1495
    %v1532 = vpack.c.b16 %v1498, %v1497
    %v1533 = vpack.c.b16 %v1500, %v1499
    %v1534 = vpack.c.b16 %v1502, %v1501
    %1567 = vmatpush.bf16.msra.mxu0 %v1510
    %1568 = vmatpush.bf16.msra.mxu0 %v1509
    %1569 = vmatpush.bf16.msra.mxu0 %v1508
    %1570 = vmatpush.bf16.msra.mxu0 %v1507
    %1571 = vmatpush.bf16.msra.mxu0 %v1506
    %1572 = vmatpush.bf16.msra.mxu0 %v1505
    %1573 = vmatpush.bf16.msra.mxu0 %v1504
    %1574 = vmatpush.bf16.msra.mxu0 %v1503
    %1575 = vmatmul.bf16.gmra.mxu0 %v371
    %v1576 = vpop.f32.mrf.mxu0
    %v1577 = vadd.f32 0.0, %v1576
    %v1578 = vpop.f32.mrf.mxu0
    %v1579 = vadd.f32 0.0, %v1578
    %1580 = vdwg.mxu0
    %1581 = vmatpush.bf16.msra.mxu0 %v1518
    %1582 = vmatpush.bf16.msra.mxu0 %v1517
    %1583 = vmatpush.bf16.msra.mxu0 %v1516
    %1584 = vmatpush.bf16.msra.mxu0 %v1515
    %1585 = vmatpush.bf16.msra.mxu0 %v1514
    %1586 = vmatpush.bf16.msra.mxu0 %v1513
    %1587 = vmatpush.bf16.msra.mxu0 %v1512
    %1588 = vmatpush.bf16.msra.mxu0 %v1511
    %1589 = vmatmul.bf16.gmra.mxu0 %v372
    %v1590 = vpop.f32.mrf.mxu0
    %v1591 = vadd.f32 %v1577, %v1590
    %v1592 = vpop.f32.mrf.mxu0
    %v1593 = vadd.f32 %v1579, %v1592
    %1594 = vdwg.mxu0
    %1595 = vmatpush.bf16.msra.mxu0 %v1526
    %1596 = vmatpush.bf16.msra.mxu0 %v1525
    %1597 = vmatpush.bf16.msra.mxu0 %v1524
    %1598 = vmatpush.bf16.msra.mxu0 %v1523
    %1599 = vmatpush.bf16.msra.mxu0 %v1522
    %1600 = vmatpush.bf16.msra.mxu0 %v1521
    %1601 = vmatpush.bf16.msra.mxu0 %v1520
    %1602 = vmatpush.bf16.msra.mxu0 %v1519
    %1603 = vmatmul.bf16.gmra.mxu0 %v373
    %v1604 = vpop.f32.mrf.mxu0
    %v1605 = vadd.f32 %v1591, %v1604
    %v1606 = vpop.f32.mrf.mxu0
    %v1607 = vadd.f32 %v1593, %v1606
    %1608 = vdwg.mxu0
    %1609 = vmatpush.bf16.msra.mxu0 %v1534
    %1610 = vmatpush.bf16.msra.mxu0 %v1533
    %1611 = vmatpush.bf16.msra.mxu0 %v1532
    %1612 = vmatpush.bf16.msra.mxu0 %v1531
    %1613 = vmatpush.bf16.msra.mxu0 %v1530
    %1614 = vmatpush.bf16.msra.mxu0 %v1529
    %1615 = vmatpush.bf16.msra.mxu0 %v1528
    %1616 = vmatpush.bf16.msra.mxu0 %v1527
    %1617 = vmatmul.bf16.gmra.mxu0 %v374
    %v1618 = vpop.f32.mrf.mxu0
    %v1619 = vadd.f32 %v1605, %v1618
    %v1620 = vpop.f32.mrf.mxu0
    %v1621 = vadd.f32 %v1607, %v1620
    %1622 = vdwg.mxu0
    %s1623 = scalar_lea.vmem [#allocation4], 1
    %v1624 = vld [vmem:[%s1623] ss:$8 sm:$0xf]
    %v1626 = vperm.slane %v1624, 0
    %v1627 = vperm.slane %v1624, 1
    %v1628 = vperm.slane %v1624, 2
    %v1629 = vperm.slane %v1624, 3
    %v1634 = vadd.f32 %v683, %v1626
    %v1635 = vadd.f32 %v995, %v1627
    %v1636 = vadd.f32 %v1307, %v1628
    %v1637 = vadd.f32 %v1619, %v1629
    %v1638 = vadd.f32 %v685, %v1626
    %v1639 = vadd.f32 %v997, %v1627
    %v1640 = vadd.f32 %v1309, %v1628
    %v1641 = vadd.f32 %v1621, %v1629
    %vm1642 = vcmp.ge.f32.partialorder %v1634, 0.0
    %vm1643 = vcmp.ge.f32.partialorder %v1635, 0.0
    %vm1644 = vcmp.ge.f32.partialorder %v1636, 0.0
    %vm1645 = vcmp.ge.f32.partialorder %v1637, 0.0
    %vm1646 = vcmp.ge.f32.partialorder %v1638, 0.0
    %vm1647 = vcmp.ge.f32.partialorder %v1639, 0.0
    %vm1648 = vcmp.ge.f32.partialorder %v1640, 0.0
    %vm1649 = vcmp.ge.f32.partialorder %v1641, 0.0
    %v1650 = vmul.f32 %v1634, 0.01
    %v1651 = vmul.f32 %v1635, 0.01
    %v1652 = vmul.f32 %v1636, 0.01
    %v1653 = vmul.f32 %v1637, 0.01
    %v1654 = vmul.f32 %v1638, 0.01
    %v1655 = vmul.f32 %v1639, 0.01
    %v1656 = vmul.f32 %v1640, 0.01
    %v1657 = vmul.f32 %v1641, 0.01
    %v1658 = vsel %vm1642, %v1634, %v1650
    %v1659 = vsel %vm1643, %v1635, %v1651
    %v1660 = vsel %vm1644, %v1636, %v1652
    %v1661 = vsel %vm1645, %v1637, %v1653
    %v1662 = vsel %vm1646, %v1638, %v1654
    %v1663 = vsel %vm1647, %v1639, %v1655
    %v1664 = vsel %vm1648, %v1640, %v1656
    %v1665 = vsel %vm1649, %v1641, %v1657
    %v1666 = vsel %vm221, %v1658, 0.0
    %v1667 = vsel %vm221, %v1659, 0.0
    %v1668 = vsel %vm221, %v1660, 0.0
    %v1669 = vsel %vm221, %v1661, 0.0
    %v1670 = vsel %vm222, %v1662, 0.0
    %v1671 = vsel %vm222, %v1663, 0.0
    %v1672 = vsel %vm222, %v1664, 0.0
    %v1673 = vsel %vm222, %v1665, 0.0
    %v1674 = vadd.f32 %v1666, %v1670
    %v1675 = vrot.slane %v1674, 4
    %v1676 = vadd.f32 %v1674, %v1675
    %v1677 = vrot.slane %v1676, 2
    %v1678 = vadd.f32 %v1676, %v1677
    %v1679 = vrot.slane %v1678, 1
    %v1680 = vadd.f32 %v1678, %v1679
    %v1681 = vadd.f32 %v1667, %v1671
    %v1682 = vrot.slane %v1681, 4
    %v1683 = vadd.f32 %v1681, %v1682
    %v1684 = vrot.slane %v1683, 2
    %v1685 = vadd.f32 %v1683, %v1684
    %v1686 = vrot.slane %v1685, 1
    %v1687 = vadd.f32 %v1685, %v1686
    %v1688 = vadd.f32 %v1668, %v1672
    %v1689 = vrot.slane %v1688, 4
    %v1690 = vadd.f32 %v1688, %v1689
    %v1691 = vrot.slane %v1690, 2
    %v1692 = vadd.f32 %v1690, %v1691
    %v1693 = vrot.slane %v1692, 1
    %v1694 = vadd.f32 %v1692, %v1693
    %v1695 = vadd.f32 %v1669, %v1673
    %v1696 = vrot.slane %v1695, 4
    %v1697 = vadd.f32 %v1695, %v1696
    %v1698 = vrot.slane %v1697, 2
    %v1699 = vadd.f32 %v1697, %v1698
    %v1700 = vrot.slane %v1699, 1
    %v1701 = vadd.f32 %v1699, %v1700
    %v1702 = vmul.f32 %v1680, 0.125
    %v1703 = vmul.f32 %v1687, 0.125
    %v1704 = vmul.f32 %v1694, 0.125
    %v1705 = vmul.f32 %v1701, 0.125
    %v1706 = vsub.f32 %v1658, %v1702
    %v1707 = vsub.f32 %v1659, %v1703
    %v1708 = vsub.f32 %v1660, %v1704
    %v1709 = vsub.f32 %v1661, %v1705
    %v1710 = vsub.f32 %v1662, %v1702
    %v1711 = vsub.f32 %v1663, %v1703
    %v1712 = vsub.f32 %v1664, %v1704
    %v1713 = vsub.f32 %v1665, %v1705
    %v1714 = vsel %vm221, %v1706, 0.0
    %v1715 = vsel %vm221, %v1707, 0.0
    %v1716 = vsel %vm221, %v1708, 0.0
    %v1717 = vsel %vm221, %v1709, 0.0
    %v1718 = vsel %vm222, %v1710, 0.0
    %v1719 = vsel %vm222, %v1711, 0.0
    %v1720 = vsel %vm222, %v1712, 0.0
    %v1721 = vsel %vm222, %v1713, 0.0
    %v1722 = vmul.f32 %v1714, %v1714
    %v1723 = vmul.f32 %v1715, %v1715
    %v1724 = vmul.f32 %v1716, %v1716
    %v1725 = vmul.f32 %v1717, %v1717
    %v1726 = vmul.f32 %v1718, %v1718
    %v1727 = vmul.f32 %v1719, %v1719
    %v1728 = vmul.f32 %v1720, %v1720
    %v1729 = vmul.f32 %v1721, %v1721
    %v1730 = vadd.f32 %v1722, %v1726
    %v1731 = vrot.slane %v1730, 4
    %v1732 = vadd.f32 %v1730, %v1731
    %v1733 = vrot.slane %v1732, 2
    %v1734 = vadd.f32 %v1732, %v1733
    %v1735 = vrot.slane %v1734, 1
    %v1736 = vadd.f32 %v1734, %v1735
    %v1737 = vadd.f32 %v1723, %v1727
    %v1738 = vrot.slane %v1737, 4
    %v1739 = vadd.f32 %v1737, %v1738
    %v1740 = vrot.slane %v1739, 2
    %v1741 = vadd.f32 %v1739, %v1740
    %v1742 = vrot.slane %v1741, 1
    %v1743 = vadd.f32 %v1741, %v1742
    %v1744 = vadd.f32 %v1724, %v1728
    %v1745 = vrot.slane %v1744, 4
    %v1746 = vadd.f32 %v1744, %v1745
    %v1747 = vrot.slane %v1746, 2
    %v1748 = vadd.f32 %v1746, %v1747
    %v1749 = vrot.slane %v1748, 1
    %v1750 = vadd.f32 %v1748, %v1749
    %v1751 = vadd.f32 %v1725, %v1729
    %v1752 = vrot.slane %v1751, 4
    %v1753 = vadd.f32 %v1751, %v1752
    %v1754 = vrot.slane %v1753, 2
    %v1755 = vadd.f32 %v1753, %v1754
    %v1756 = vrot.slane %v1755, 1
    %v1757 = vadd.f32 %v1755, %v1756
    %v1758 = vmul.f32 %v1736, 0.125
    %v1759 = vmul.f32 %v1743, 0.125
    %v1760 = vmul.f32 %v1750, 0.125
    %v1761 = vmul.f32 %v1757, 0.125
    %v1762 = vadd.f32 %v1758, 1e-05
    %v1763 = vadd.f32 %v1759, 1e-05
    %v1764 = vadd.f32 %v1760, 1e-05
    %v1765 = vadd.f32 %v1761, 1e-05
    %v1766 = vrsqrt.pop %v1762
    %v1767 = vmul.f32 %v1766, %v1762
    %v1768 = vmul.f32 %v1767, %v1766
    %v1769 = vmul.f32 0.5, %v1768
    %v1770 = vsub.f32 1.5, %v1769
    %v1771 = vmul.f32 %v1766, %v1770
    %vm1772 = vweird.f32 %v1762
    %vm1773 = vweird.f32 %v1766
    %vm1774 = vmor %vm1772, %vm1773
    %v1775 = vsel %vm1774, %v1766, %v1771
    %v1776 = vrsqrt.pop %v1763
    %v1777 = vmul.f32 %v1776, %v1763
    %v1778 = vmul.f32 %v1777, %v1776
    %v1779 = vmul.f32 0.5, %v1778
    %v1780 = vsub.f32 1.5, %v1779
    %v1781 = vmul.f32 %v1776, %v1780
    %vm1782 = vweird.f32 %v1763
    %vm1783 = vweird.f32 %v1776
    %vm1784 = vmor %vm1782, %vm1783
    %v1785 = vsel %vm1784, %v1776, %v1781
    %v1786 = vrsqrt.pop %v1764
    %v1787 = vmul.f32 %v1786, %v1764
    %v1788 = vmul.f32 %v1787, %v1786
    %v1789 = vmul.f32 0.5, %v1788
    %v1790 = vsub.f32 1.5, %v1789
    %v1791 = vmul.f32 %v1786, %v1790
    %vm1792 = vweird.f32 %v1764
    %vm1793 = vweird.f32 %v1786
    %vm1794 = vmor %vm1792, %vm1793
    %v1795 = vsel %vm1794, %v1786, %v1791
    %v1796 = vrsqrt.pop %v1765
    %v1797 = vmul.f32 %v1796, %v1765
    %v1798 = vmul.f32 %v1797, %v1796
    %v1799 = vmul.f32 0.5, %v1798
    %v1800 = vsub.f32 1.5, %v1799
    %v1801 = vmul.f32 %v1796, %v1800
    %vm1802 = vweird.f32 %v1765
    %vm1803 = vweird.f32 %v1796
    %vm1804 = vmor %vm1802, %vm1803
    %v1805 = vsel %vm1804, %v1796, %v1801
    %v1806 = vmul.f32 %v1706, %v1775
    %v1807 = vmul.f32 %v1707, %v1785
    %v1808 = vmul.f32 %v1708, %v1795
    %v1809 = vmul.f32 %v1709, %v1805
    %v1810 = vmul.f32 %v1710, %v1775
    %v1811 = vmul.f32 %v1711, %v1785
    %v1812 = vmul.f32 %v1712, %v1795
    %v1813 = vmul.f32 %v1713, %v1805
    %v1814 = vpack.c.bf16 %v1810, %v1806
    %v1815 = vpack.c.bf16 %v1811, %v1807
    %v1816 = vpack.c.bf16 %v1812, %v1808
    %v1817 = vpack.c.bf16 %v1813, %v1809
    %v1818 = vld [vmem:[#allocation2 + $0x440] sm:$0xf]
    %v1819 = vld [vmem:[#allocation2 + $0x444] sm:$0xf]
    %v1820 = vld [vmem:[#allocation2 + $0x448] sm:$0xf]
    %v1821 = vld [vmem:[#allocation2 + $0x44c] sm:$0xf]
    %v1822 = vld [vmem:[#allocation2 + $0x450] sm:$0xf]
    %v1823 = vld [vmem:[#allocation2 + $0x454] sm:$0xf]
    %v1824 = vld [vmem:[#allocation2 + $0x458] sm:$0xf]
    %v1825 = vld [vmem:[#allocation2 + $0x45c] sm:$0xf]
    %v1826 = vld [vmem:[#allocation2 + $0x460] sm:$0xf]
    %v1827 = vld [vmem:[#allocation2 + $0x464] sm:$0xf]
    %v1828 = vld [vmem:[#allocation2 + $0x468] sm:$0xf]
    %v1829 = vld [vmem:[#allocation2 + $0x46c] sm:$0xf]
    %v1830 = vld [vmem:[#allocation2 + $0x470] sm:$0xf]
    %v1831 = vld [vmem:[#allocation2 + $0x474] sm:$0xf]
    %v1832 = vld [vmem:[#allocation2 + $0x478] sm:$0xf]
    %v1833 = vld [vmem:[#allocation2 + $0x47c] sm:$0xf]
    %v1834 = vld [vmem:[#allocation2 + $0x480] sm:$0xf]
    %v1835 = vld [vmem:[#allocation2 + $0x484] sm:$0xf]
    %v1836 = vld [vmem:[#allocation2 + $0x488] sm:$0xf]
    %v1837 = vld [vmem:[#allocation2 + $0x48c] sm:$0xf]
    %v1838 = vld [vmem:[#allocation2 + $0x490] sm:$0xf]
    %v1839 = vld [vmem:[#allocation2 + $0x494] sm:$0xf]
    %v1840 = vld [vmem:[#allocation2 + $0x498] sm:$0xf]
    %v1841 = vld [vmem:[#allocation2 + $0x49c] sm:$0xf]
    %v1842 = vld [vmem:[#allocation2 + $0x4a0] sm:$0xf]
    %v1843 = vld [vmem:[#allocation2 + $0x4a4] sm:$0xf]
    %v1844 = vld [vmem:[#allocation2 + $0x4a8] sm:$0xf]
    %v1845 = vld [vmem:[#allocation2 + $0x4ac] sm:$0xf]
    %v1846 = vld [vmem:[#allocation2 + $0x4b0] sm:$0xf]
    %v1847 = vld [vmem:[#allocation2 + $0x4b4] sm:$0xf]
    %v1848 = vld [vmem:[#allocation2 + $0x4b8] sm:$0xf]
    %v1849 = vld [vmem:[#allocation2 + $0x4bc] sm:$0xf]
    %v1850 = vld [vmem:[#allocation2 + $0x4c0] sm:$0xf]
    %v1851 = vld [vmem:[#allocation2 + $0x4c4] sm:$0xf]
    %v1852 = vld [vmem:[#allocation2 + $0x4c8] sm:$0xf]
    %v1853 = vld [vmem:[#allocation2 + $0x4cc] sm:$0xf]
    %v1854 = vld [vmem:[#allocation2 + $0x4d0] sm:$0xf]
    %v1855 = vld [vmem:[#allocation2 + $0x4d4] sm:$0xf]
    %v1856 = vld [vmem:[#allocation2 + $0x4d8] sm:$0xf]
    %v1857 = vld [vmem:[#allocation2 + $0x4dc] sm:$0xf]
    %v1858 = vld [vmem:[#allocation2 + $0x4e0] sm:$0xf]
    %v1859 = vld [vmem:[#allocation2 + $0x4e4] sm:$0xf]
    %v1860 = vld [vmem:[#allocation2 + $0x4e8] sm:$0xf]
    %v1861 = vld [vmem:[#allocation2 + $0x4ec] sm:$0xf]
    %v1862 = vld [vmem:[#allocation2 + $0x4f0] sm:$0xf]
    %v1863 = vld [vmem:[#allocation2 + $0x4f4] sm:$0xf]
    %v1864 = vld [vmem:[#allocation2 + $0x4f8] sm:$0xf]
    %v1865 = vld [vmem:[#allocation2 + $0x4fc] sm:$0xf]
    %v1866 = vld [vmem:[#allocation2 + $0x500] sm:$0xf]
    %v1867 = vld [vmem:[#allocation2 + $0x504] sm:$0xf]
    %v1868 = vld [vmem:[#allocation2 + $0x508] sm:$0xf]
    %v1869 = vld [vmem:[#allocation2 + $0x50c] sm:$0xf]
    %v1870 = vld [vmem:[#allocation2 + $0x510] sm:$0xf]
    %v1871 = vld [vmem:[#allocation2 + $0x514] sm:$0xf]
    %v1872 = vld [vmem:[#allocation2 + $0x518] sm:$0xf]
    %v1873 = vld [vmem:[#allocation2 + $0x51c] sm:$0xf]
    %v1874 = vld [vmem:[#allocation2 + $0x520] sm:$0xf]
    %v1875 = vld [vmem:[#allocation2 + $0x524] sm:$0xf]
    %v1876 = vld [vmem:[#allocation2 + $0x528] sm:$0xf]
    %v1877 = vld [vmem:[#allocation2 + $0x52c] sm:$0xf]
    %v1878 = vld [vmem:[#allocation2 + $0x530] sm:$0xf]
    %v1879 = vld [vmem:[#allocation2 + $0x534] sm:$0xf]
    %v1880 = vld [vmem:[#allocation2 + $0x538] sm:$0xf]
    %v1881 = vld [vmem:[#allocation2 + $0x53c] sm:$0xf]
    %v1946 = vunpack.c.l.b16 %v1818
    %v1947 = vunpack.c.l.b16 %v1819
    %v1948 = vunpack.c.l.b16 %v1820
    %v1949 = vunpack.c.l.b16 %v1821
    %v1950 = vunpack.c.l.b16 %v1822
    %v1951 = vunpack.c.l.b16 %v1823
    %v1952 = vunpack.c.l.b16 %v1824
    %v1953 = vunpack.c.l.b16 %v1825
    %v1954 = vunpack.c.l.b16 %v1826
    %v1955 = vunpack.c.l.b16 %v1827
    %v1956 = vunpack.c.l.b16 %v1828
    %v1957 = vunpack.c.l.b16 %v1829
    %v1958 = vunpack.c.l.b16 %v1830
    %v1959 = vunpack.c.l.b16 %v1831
    %v1960 = vunpack.c.l.b16 %v1832
    %v1961 = vunpack.c.l.b16 %v1833
    %v1962 = vunpack.c.l.b16 %v1834
    %v1963 = vunpack.c.l.b16 %v1835
    %v1964 = vunpack.c.l.b16 %v1836
    %v1965 = vunpack.c.l.b16 %v1837
    %v1966 = vunpack.c.l.b16 %v1838
    %v1967 = vunpack.c.l.b16 %v1839
    %v1968 = vunpack.c.l.b16 %v1840
    %v1969 = vunpack.c.l.b16 %v1841
    %v1970 = vunpack.c.l.b16 %v1842
    %v1971 = vunpack.c.l.b16 %v1843
    %v1972 = vunpack.c.l.b16 %v1844
    %v1973 = vunpack.c.l.b16 %v1845
    %v1974 = vunpack.c.l.b16 %v1846
    %v1975 = vunpack.c.l.b16 %v1847
    %v1976 = vunpack.c.l.b16 %v1848
    %v1977 = vunpack.c.l.b16 %v1849
    %v1978 = vunpack.c.l.b16 %v1850
    %v1979 = vunpack.c.l.b16 %v1851
    %v1980 = vunpack.c.l.b16 %v1852
    %v1981 = vunpack.c.l.b16 %v1853
    %v1982 = vunpack.c.l.b16 %v1854
    %v1983 = vunpack.c.l.b16 %v1855
    %v1984 = vunpack.c.l.b16 %v1856
    %v1985 = vunpack.c.l.b16 %v1857
    %v1986 = vunpack.c.l.b16 %v1858
    %v1987 = vunpack.c.l.b16 %v1859
    %v1988 = vunpack.c.l.b16 %v1860
    %v1989 = vunpack.c.l.b16 %v1861
    %v1990 = vunpack.c.l.b16 %v1862
    %v1991 = vunpack.c.l.b16 %v1863
    %v1992 = vunpack.c.l.b16 %v1864
    %v1993 = vunpack.c.l.b16 %v1865
    %v1994 = vunpack.c.l.b16 %v1866
    %v1995 = vunpack.c.l.b16 %v1867
    %v1996 = vunpack.c.l.b16 %v1868
    %v1997 = vunpack.c.l.b16 %v1869
    %v1998 = vunpack.c.l.b16 %v1870
    %v1999 = vunpack.c.l.b16 %v1871
    %v2000 = vunpack.c.l.b16 %v1872
    %v2001 = vunpack.c.l.b16 %v1873
    %v2002 = vunpack.c.l.b16 %v1874
    %v2003 = vunpack.c.l.b16 %v1875
    %v2004 = vunpack.c.l.b16 %v1876
    %v2005 = vunpack.c.l.b16 %v1877
    %v2006 = vunpack.c.l.b16 %v1878
    %v2007 = vunpack.c.l.b16 %v1879
    %v2008 = vunpack.c.l.b16 %v1880
    %v2009 = vunpack.c.l.b16 %v1881
    %v2010 = vpack.c.b16 %v1947, %v1946
    %v2011 = vpack.c.b16 %v1949, %v1948
    %v2012 = vpack.c.b16 %v1951, %v1950
    %v2013 = vpack.c.b16 %v1953, %v1952
    %v2014 = vpack.c.b16 %v1955, %v1954
    %v2015 = vpack.c.b16 %v1957, %v1956
    %v2016 = vpack.c.b16 %v1959, %v1958
    %v2017 = vpack.c.b16 %v1961, %v1960
    %v2018 = vpack.c.b16 %v1963, %v1962
    %v2019 = vpack.c.b16 %v1965, %v1964
    %v2020 = vpack.c.b16 %v1967, %v1966
    %v2021 = vpack.c.b16 %v1969, %v1968
    %v2022 = vpack.c.b16 %v1971, %v1970
    %v2023 = vpack.c.b16 %v1973, %v1972
    %v2024 = vpack.c.b16 %v1975, %v1974
    %v2025 = vpack.c.b16 %v1977, %v1976
    %v2026 = vpack.c.b16 %v1979, %v1978
    %v2027 = vpack.c.b16 %v1981, %v1980
    %v2028 = vpack.c.b16 %v1983, %v1982
    %v2029 = vpack.c.b16 %v1985, %v1984
    %v2030 = vpack.c.b16 %v1987, %v1986
    %v2031 = vpack.c.b16 %v1989, %v1988
    %v2032 = vpack.c.b16 %v1991, %v1990
    %v2033 = vpack.c.b16 %v1993, %v1992
    %v2034 = vpack.c.b16 %v1995, %v1994
    %v2035 = vpack.c.b16 %v1997, %v1996
    %v2036 = vpack.c.b16 %v1999, %v1998
    %v2037 = vpack.c.b16 %v2001, %v2000
    %v2038 = vpack.c.b16 %v2003, %v2002
    %v2039 = vpack.c.b16 %v2005, %v2004
    %v2040 = vpack.c.b16 %v2007, %v2006
    %v2041 = vpack.c.b16 %v2009, %v2008
    %2074 = vmatpush.bf16.msra.mxu0 %v2017
    %2075 = vmatpush.bf16.msra.mxu0 %v2016
    %2076 = vmatpush.bf16.msra.mxu0 %v2015
    %2077 = vmatpush.bf16.msra.mxu0 %v2014
    %2078 = vmatpush.bf16.msra.mxu0 %v2013
    %2079 = vmatpush.bf16.msra.mxu0 %v2012
    %2080 = vmatpush.bf16.msra.mxu0 %v2011
    %2081 = vmatpush.bf16.msra.mxu0 %v2010
    %2082 = vmatmul.bf16.gmra.mxu0 %v1814
    %v2083 = vpop.f32.mrf.mxu0
    %v2084 = vadd.f32 0.0, %v2083
    %v2085 = vpop.f32.mrf.mxu0
    %v2086 = vadd.f32 0.0, %v2085
    %2087 = vdwg.mxu0
    %2088 = vmatpush.bf16.msra.mxu0 %v2025
    %2089 = vmatpush.bf16.msra.mxu0 %v2024
    %2090 = vmatpush.bf16.msra.mxu0 %v2023
    %2091 = vmatpush.bf16.msra.mxu0 %v2022
    %2092 = vmatpush.bf16.msra.mxu0 %v2021
    %2093 = vmatpush.bf16.msra.mxu0 %v2020
    %2094 = vmatpush.bf16.msra.mxu0 %v2019
    %2095 = vmatpush.bf16.msra.mxu0 %v2018
    %2096 = vmatmul.bf16.gmra.mxu0 %v1815
    %v2097 = vpop.f32.mrf.mxu0
    %v2098 = vadd.f32 %v2084, %v2097
    %v2099 = vpop.f32.mrf.mxu0
    %v2100 = vadd.f32 %v2086, %v2099
    %2101 = vdwg.mxu0
    %2102 = vmatpush.bf16.msra.mxu0 %v2033
    %2103 = vmatpush.bf16.msra.mxu0 %v2032
    %2104 = vmatpush.bf16.msra.mxu0 %v2031
    %2105 = vmatpush.bf16.msra.mxu0 %v2030
    %2106 = vmatpush.bf16.msra.mxu0 %v2029
    %2107 = vmatpush.bf16.msra.mxu0 %v2028
    %2108 = vmatpush.bf16.msra.mxu0 %v2027
    %2109 = vmatpush.bf16.msra.mxu0 %v2026
    %2110 = vmatmul.bf16.gmra.mxu0 %v1816
    %v2111 = vpop.f32.mrf.mxu0
    %v2112 = vadd.f32 %v2098, %v2111
    %v2113 = vpop.f32.mrf.mxu0
    %v2114 = vadd.f32 %v2100, %v2113
    %2115 = vdwg.mxu0
    %2116 = vmatpush.bf16.msra.mxu0 %v2041
    %2117 = vmatpush.bf16.msra.mxu0 %v2040
    %2118 = vmatpush.bf16.msra.mxu0 %v2039
    %2119 = vmatpush.bf16.msra.mxu0 %v2038
    %2120 = vmatpush.bf16.msra.mxu0 %v2037
    %2121 = vmatpush.bf16.msra.mxu0 %v2036
    %2122 = vmatpush.bf16.msra.mxu0 %v2035
    %2123 = vmatpush.bf16.msra.mxu0 %v2034
    %2124 = vmatmul.bf16.gmra.mxu0 %v1817
    %v2125 = vpop.f32.mrf.mxu0
    %v2126 = vadd.f32 %v2112, %v2125
    %v2127 = vpop.f32.mrf.mxu0
    %v2128 = vadd.f32 %v2114, %v2127
    %2129 = vdwg.mxu0
    %v2130 = vld [vmem:[#allocation2 + $0x540] sm:$0xf]
    %v2131 = vld [vmem:[#allocation2 + $0x544] sm:$0xf]
    %v2132 = vld [vmem:[#allocation2 + $0x548] sm:$0xf]
    %v2133 = vld [vmem:[#allocation2 + $0x54c] sm:$0xf]
    %v2134 = vld [vmem:[#allocation2 + $0x550] sm:$0xf]
    %v2135 = vld [vmem:[#allocation2 + $0x554] sm:$0xf]
    %v2136 = vld [vmem:[#allocation2 + $0x558] sm:$0xf]
    %v2137 = vld [vmem:[#allocation2 + $0x55c] sm:$0xf]
    %v2138 = vld [vmem:[#allocation2 + $0x560] sm:$0xf]
    %v2139 = vld [vmem:[#allocation2 + $0x564] sm:$0xf]
    %v2140 = vld [vmem:[#allocation2 + $0x568] sm:$0xf]
    %v2141 = vld [vmem:[#allocation2 + $0x56c] sm:$0xf]
    %v2142 = vld [vmem:[#allocation2 + $0x570] sm:$0xf]
    %v2143 = vld [vmem:[#allocation2 + $0x574] sm:$0xf]
    %v2144 = vld [vmem:[#allocation2 + $0x578] sm:$0xf]
    %v2145 = vld [vmem:[#allocation2 + $0x57c] sm:$0xf]
    %v2146 = vld [vmem:[#allocation2 + $0x580] sm:$0xf]
    %v2147 = vld [vmem:[#allocation2 + $0x584] sm:$0xf]
    %v2148 = vld [vmem:[#allocation2 + $0x588] sm:$0xf]
    %v2149 = vld [vmem:[#allocation2 + $0x58c] sm:$0xf]
    %v2150 = vld [vmem:[#allocation2 + $0x590] sm:$0xf]
    %v2151 = vld [vmem:[#allocation2 + $0x594] sm:$0xf]
    %v2152 = vld [vmem:[#allocation2 + $0x598] sm:$0xf]
    %v2153 = vld [vmem:[#allocation2 + $0x59c] sm:$0xf]
    %v2154 = vld [vmem:[#allocation2 + $0x5a0] sm:$0xf]
    %v2155 = vld [vmem:[#allocation2 + $0x5a4] sm:$0xf]
    %v2156 = vld [vmem:[#allocation2 + $0x5a8] sm:$0xf]
    %v2157 = vld [vmem:[#allocation2 + $0x5ac] sm:$0xf]
    %v2158 = vld [vmem:[#allocation2 + $0x5b0] sm:$0xf]
    %v2159 = vld [vmem:[#allocation2 + $0x5b4] sm:$0xf]
    %v2160 = vld [vmem:[#allocation2 + $0x5b8] sm:$0xf]
    %v2161 = vld [vmem:[#allocation2 + $0x5bc] sm:$0xf]
    %v2162 = vld [vmem:[#allocation2 + $0x5c0] sm:$0xf]
    %v2163 = vld [vmem:[#allocation2 + $0x5c4] sm:$0xf]
    %v2164 = vld [vmem:[#allocation2 + $0x5c8] sm:$0xf]
    %v2165 = vld [vmem:[#allocation2 + $0x5cc] sm:$0xf]
    %v2166 = vld [vmem:[#allocation2 + $0x5d0] sm:$0xf]
    %v2167 = vld [vmem:[#allocation2 + $0x5d4] sm:$0xf]
    %v2168 = vld [vmem:[#allocation2 + $0x5d8] sm:$0xf]
    %v2169 = vld [vmem:[#allocation2 + $0x5dc] sm:$0xf]
    %v2170 = vld [vmem:[#allocation2 + $0x5e0] sm:$0xf]
    %v2171 = vld [vmem:[#allocation2 + $0x5e4] sm:$0xf]
    %v2172 = vld [vmem:[#allocation2 + $0x5e8] sm:$0xf]
    %v2173 = vld [vmem:[#allocation2 + $0x5ec] sm:$0xf]
    %v2174 = vld [vmem:[#allocation2 + $0x5f0] sm:$0xf]
    %v2175 = vld [vmem:[#allocation2 + $0x5f4] sm:$0xf]
    %v2176 = vld [vmem:[#allocation2 + $0x5f8] sm:$0xf]
    %v2177 = vld [vmem:[#allocation2 + $0x5fc] sm:$0xf]
    %v2178 = vld [vmem:[#allocation2 + $0x600] sm:$0xf]
    %v2179 = vld [vmem:[#allocation2 + $0x604] sm:$0xf]
    %v2180 = vld [vmem:[#allocation2 + $0x608] sm:$0xf]
    %v2181 = vld [vmem:[#allocation2 + $0x60c] sm:$0xf]
    %v2182 = vld [vmem:[#allocation2 + $0x610] sm:$0xf]
    %v2183 = vld [vmem:[#allocation2 + $0x614] sm:$0xf]
    %v2184 = vld [vmem:[#allocation2 + $0x618] sm:$0xf]
    %v2185 = vld [vmem:[#allocation2 + $0x61c] sm:$0xf]
    %v2186 = vld [vmem:[#allocation2 + $0x620] sm:$0xf]
    %v2187 = vld [vmem:[#allocation2 + $0x624] sm:$0xf]
    %v2188 = vld [vmem:[#allocation2 + $0x628] sm:$0xf]
    %v2189 = vld [vmem:[#allocation2 + $0x62c] sm:$0xf]
    %v2190 = vld [vmem:[#allocation2 + $0x630] sm:$0xf]
    %v2191 = vld [vmem:[#allocation2 + $0x634] sm:$0xf]
    %v2192 = vld [vmem:[#allocation2 + $0x638] sm:$0xf]
    %v2193 = vld [vmem:[#allocation2 + $0x63c] sm:$0xf]
    %v2258 = vunpack.c.l.b16 %v2130
    %v2259 = vunpack.c.l.b16 %v2131
    %v2260 = vunpack.c.l.b16 %v2132
    %v2261 = vunpack.c.l.b16 %v2133
    %v2262 = vunpack.c.l.b16 %v2134
    %v2263 = vunpack.c.l.b16 %v2135
    %v2264 = vunpack.c.l.b16 %v2136
    %v2265 = vunpack.c.l.b16 %v2137
    %v2266 = vunpack.c.l.b16 %v2138
    %v2267 = vunpack.c.l.b16 %v2139
    %v2268 = vunpack.c.l.b16 %v2140
    %v2269 = vunpack.c.l.b16 %v2141
    %v2270 = vunpack.c.l.b16 %v2142
    %v2271 = vunpack.c.l.b16 %v2143
    %v2272 = vunpack.c.l.b16 %v2144
    %v2273 = vunpack.c.l.b16 %v2145
    %v2274 = vunpack.c.l.b16 %v2146
    %v2275 = vunpack.c.l.b16 %v2147
    %v2276 = vunpack.c.l.b16 %v2148
    %v2277 = vunpack.c.l.b16 %v2149
    %v2278 = vunpack.c.l.b16 %v2150
    %v2279 = vunpack.c.l.b16 %v2151
    %v2280 = vunpack.c.l.b16 %v2152
    %v2281 = vunpack.c.l.b16 %v2153
    %v2282 = vunpack.c.l.b16 %v2154
    %v2283 = vunpack.c.l.b16 %v2155
    %v2284 = vunpack.c.l.b16 %v2156
    %v2285 = vunpack.c.l.b16 %v2157
    %v2286 = vunpack.c.l.b16 %v2158
    %v2287 = vunpack.c.l.b16 %v2159
    %v2288 = vunpack.c.l.b16 %v2160
    %v2289 = vunpack.c.l.b16 %v2161
    %v2290 = vunpack.c.l.b16 %v2162
    %v2291 = vunpack.c.l.b16 %v2163
    %v2292 = vunpack.c.l.b16 %v2164
    %v2293 = vunpack.c.l.b16 %v2165
    %v2294 = vunpack.c.l.b16 %v2166
    %v2295 = vunpack.c.l.b16 %v2167
    %v2296 = vunpack.c.l.b16 %v2168
    %v2297 = vunpack.c.l.b16 %v2169
    %v2298 = vunpack.c.l.b16 %v2170
    %v2299 = vunpack.c.l.b16 %v2171
    %v2300 = vunpack.c.l.b16 %v2172
    %v2301 = vunpack.c.l.b16 %v2173
    %v2302 = vunpack.c.l.b16 %v2174
    %v2303 = vunpack.c.l.b16 %v2175
    %v2304 = vunpack.c.l.b16 %v2176
    %v2305 = vunpack.c.l.b16 %v2177
    %v2306 = vunpack.c.l.b16 %v2178
    %v2307 = vunpack.c.l.b16 %v2179
    %v2308 = vunpack.c.l.b16 %v2180
    %v2309 = vunpack.c.l.b16 %v2181
    %v2310 = vunpack.c.l.b16 %v2182
    %v2311 = vunpack.c.l.b16 %v2183
    %v2312 = vunpack.c.l.b16 %v2184
    %v2313 = vunpack.c.l.b16 %v2185
    %v2314 = vunpack.c.l.b16 %v2186
    %v2315 = vunpack.c.l.b16 %v2187
    %v2316 = vunpack.c.l.b16 %v2188
    %v2317 = vunpack.c.l.b16 %v2189
    %v2318 = vunpack.c.l.b16 %v2190
    %v2319 = vunpack.c.l.b16 %v2191
    %v2320 = vunpack.c.l.b16 %v2192
    %v2321 = vunpack.c.l.b16 %v2193
    %v2322 = vpack.c.b16 %v2259, %v2258
    %v2323 = vpack.c.b16 %v2261, %v2260
    %v2324 = vpack.c.b16 %v2263, %v2262
    %v2325 = vpack.c.b16 %v2265, %v2264
    %v2326 = vpack.c.b16 %v2267, %v2266
    %v2327 = vpack.c.b16 %v2269, %v2268
    %v2328 = vpack.c.b16 %v2271, %v2270
    %v2329 = vpack.c.b16 %v2273, %v2272
    %v2330 = vpack.c.b16 %v2275, %v2274
    %v2331 = vpack.c.b16 %v2277, %v2276
    %v2332 = vpack.c.b16 %v2279, %v2278
    %v2333 = vpack.c.b16 %v2281, %v2280
    %v2334 = vpack.c.b16 %v2283, %v2282
    %v2335 = vpack.c.b16 %v2285, %v2284
    %v2336 = vpack.c.b16 %v2287, %v2286
    %v2337 = vpack.c.b16 %v2289, %v2288
    %v2338 = vpack.c.b16 %v2291, %v2290
    %v2339 = vpack.c.b16 %v2293, %v2292
    %v2340 = vpack.c.b16 %v2295, %v2294
    %v2341 = vpack.c.b16 %v2297, %v2296
    %v2342 = vpack.c.b16 %v2299, %v2298
    %v2343 = vpack.c.b16 %v2301, %v2300
    %v2344 = vpack.c.b16 %v2303, %v2302
    %v2345 = vpack.c.b16 %v2305, %v2304
    %v2346 = vpack.c.b16 %v2307, %v2306
    %v2347 = vpack.c.b16 %v2309, %v2308
    %v2348 = vpack.c.b16 %v2311, %v2310
    %v2349 = vpack.c.b16 %v2313, %v2312
    %v2350 = vpack.c.b16 %v2315, %v2314
    %v2351 = vpack.c.b16 %v2317, %v2316
    %v2352 = vpack.c.b16 %v2319, %v2318
    %v2353 = vpack.c.b16 %v2321, %v2320
    %2386 = vmatpush.bf16.msra.mxu0 %v2329
    %2387 = vmatpush.bf16.msra.mxu0 %v2328
    %2388 = vmatpush.bf16.msra.mxu0 %v2327
    %2389 = vmatpush.bf16.msra.mxu0 %v2326
    %2390 = vmatpush.bf16.msra.mxu0 %v2325
    %2391 = vmatpush.bf16.msra.mxu0 %v2324
    %2392 = vmatpush.bf16.msra.mxu0 %v2323
    %2393 = vmatpush.bf16.msra.mxu0 %v2322
    %2394 = vmatmul.bf16.gmra.mxu0 %v1814
    %v2395 = vpop.f32.mrf.mxu0
    %v2396 = vadd.f32 0.0, %v2395
    %v2397 = vpop.f32.mrf.mxu0
    %v2398 = vadd.f32 0.0, %v2397
    %2399 = vdwg.mxu0
    %2400 = vmatpush.bf16.msra.mxu0 %v2337
    %2401 = vmatpush.bf16.msra.mxu0 %v2336
    %2402 = vmatpush.bf16.msra.mxu0 %v2335
    %2403 = vmatpush.bf16.msra.mxu0 %v2334
    %2404 = vmatpush.bf16.msra.mxu0 %v2333
    %2405 = vmatpush.bf16.msra.mxu0 %v2332
    %2406 = vmatpush.bf16.msra.mxu0 %v2331
    %2407 = vmatpush.bf16.msra.mxu0 %v2330
    %2408 = vmatmul.bf16.gmra.mxu0 %v1815
    %v2409 = vpop.f32.mrf.mxu0
    %v2410 = vadd.f32 %v2396, %v2409
    %v2411 = vpop.f32.mrf.mxu0
    %v2412 = vadd.f32 %v2398, %v2411
    %2413 = vdwg.mxu0
    %2414 = vmatpush.bf16.msra.mxu0 %v2345
    %2415 = vmatpush.bf16.msra.mxu0 %v2344
    %2416 = vmatpush.bf16.msra.mxu0 %v2343
    %2417 = vmatpush.bf16.msra.mxu0 %v2342
    %2418 = vmatpush.bf16.msra.mxu0 %v2341
    %2419 = vmatpush.bf16.msra.mxu0 %v2340
    %2420 = vmatpush.bf16.msra.mxu0 %v2339
    %2421 = vmatpush.bf16.msra.mxu0 %v2338
    %2422 = vmatmul.bf16.gmra.mxu0 %v1816
    %v2423 = vpop.f32.mrf.mxu0
    %v2424 = vadd.f32 %v2410, %v2423
    %v2425 = vpop.f32.mrf.mxu0
    %v2426 = vadd.f32 %v2412, %v2425
    %2427 = vdwg.mxu0
    %2428 = vmatpush.bf16.msra.mxu0 %v2353
    %2429 = vmatpush.bf16.msra.mxu0 %v2352
    %2430 = vmatpush.bf16.msra.mxu0 %v2351
    %2431 = vmatpush.bf16.msra.mxu0 %v2350
    %2432 = vmatpush.bf16.msra.mxu0 %v2349
    %2433 = vmatpush.bf16.msra.mxu0 %v2348
    %2434 = vmatpush.bf16.msra.mxu0 %v2347
    %2435 = vmatpush.bf16.msra.mxu0 %v2346
    %2436 = vmatmul.bf16.gmra.mxu0 %v1817
    %v2437 = vpop.f32.mrf.mxu0
    %v2438 = vadd.f32 %v2424, %v2437
    %v2439 = vpop.f32.mrf.mxu0
    %v2440 = vadd.f32 %v2426, %v2439
    %2441 = vdwg.mxu0
    %v2442 = vld [vmem:[#allocation2 + $0x640] sm:$0xf]
    %v2443 = vld [vmem:[#allocation2 + $0x644] sm:$0xf]
    %v2444 = vld [vmem:[#allocation2 + $0x648] sm:$0xf]
    %v2445 = vld [vmem:[#allocation2 + $0x64c] sm:$0xf]
    %v2446 = vld [vmem:[#allocation2 + $0x650] sm:$0xf]
    %v2447 = vld [vmem:[#allocation2 + $0x654] sm:$0xf]
    %v2448 = vld [vmem:[#allocation2 + $0x658] sm:$0xf]
    %v2449 = vld [vmem:[#allocation2 + $0x65c] sm:$0xf]
    %v2450 = vld [vmem:[#allocation2 + $0x660] sm:$0xf]
    %v2451 = vld [vmem:[#allocation2 + $0x664] sm:$0xf]
    %v2452 = vld [vmem:[#allocation2 + $0x668] sm:$0xf]
    %v2453 = vld [vmem:[#allocation2 + $0x66c] sm:$0xf]
    %v2454 = vld [vmem:[#allocation2 + $0x670] sm:$0xf]
    %v2455 = vld [vmem:[#allocation2 + $0x674] sm:$0xf]
    %v2456 = vld [vmem:[#allocation2 + $0x678] sm:$0xf]
    %v2457 = vld [vmem:[#allocation2 + $0x67c] sm:$0xf]
    %v2458 = vld [vmem:[#allocation2 + $0x680] sm:$0xf]
    %v2459 = vld [vmem:[#allocation2 + $0x684] sm:$0xf]
    %v2460 = vld [vmem:[#allocation2 + $0x688] sm:$0xf]
    %v2461 = vld [vmem:[#allocation2 + $0x68c] sm:$0xf]
    %v2462 = vld [vmem:[#allocation2 + $0x690] sm:$0xf]
    %v2463 = vld [vmem:[#allocation2 + $0x694] sm:$0xf]
    %v2464 = vld [vmem:[#allocation2 + $0x698] sm:$0xf]
    %v2465 = vld [vmem:[#allocation2 + $0x69c] sm:$0xf]
    %v2466 = vld [vmem:[#allocation2 + $0x6a0] sm:$0xf]
    %v2467 = vld [vmem:[#allocation2 + $0x6a4] sm:$0xf]
    %v2468 = vld [vmem:[#allocation2 + $0x6a8] sm:$0xf]
    %v2469 = vld [vmem:[#allocation2 + $0x6ac] sm:$0xf]
    %v2470 = vld [vmem:[#allocation2 + $0x6b0] sm:$0xf]
    %v2471 = vld [vmem:[#allocation2 + $0x6b4] sm:$0xf]
    %v2472 = vld [vmem:[#allocation2 + $0x6b8] sm:$0xf]
    %v2473 = vld [vmem:[#allocation2 + $0x6bc] sm:$0xf]
    %v2474 = vld [vmem:[#allocation2 + $0x6c0] sm:$0xf]
    %v2475 = vld [vmem:[#allocation2 + $0x6c4] sm:$0xf]
    %v2476 = vld [vmem:[#allocation2 + $0x6c8] sm:$0xf]
    %v2477 = vld [vmem:[#allocation2 + $0x6cc] sm:$0xf]
    %v2478 = vld [vmem:[#allocation2 + $0x6d0] sm:$0xf]
    %v2479 = vld [vmem:[#allocation2 + $0x6d4] sm:$0xf]
    %v2480 = vld [vmem:[#allocation2 + $0x6d8] sm:$0xf]
    %v2481 = vld [vmem:[#allocation2 + $0x6dc] sm:$0xf]
    %v2482 = vld [vmem:[#allocation2 + $0x6e0] sm:$0xf]
    %v2483 = vld [vmem:[#allocation2 + $0x6e4] sm:$0xf]
    %v2484 = vld [vmem:[#allocation2 + $0x6e8] sm:$0xf]
    %v2485 = vld [vmem:[#allocation2 + $0x6ec] sm:$0xf]
    %v2486 = vld [vmem:[#allocation2 + $0x6f0] sm:$0xf]
    %v2487 = vld [vmem:[#allocation2 + $0x6f4] sm:$0xf]
    %v2488 = vld [vmem:[#allocation2 + $0x6f8] sm:$0xf]
    %v2489 = vld [vmem:[#allocation2 + $0x6fc] sm:$0xf]
    %v2490 = vld [vmem:[#allocation2 + $0x700] sm:$0xf]
    %v2491 = vld [vmem:[#allocation2 + $0x704] sm:$0xf]
    %v2492 = vld [vmem:[#allocation2 + $0x708] sm:$0xf]
    %v2493 = vld [vmem:[#allocation2 + $0x70c] sm:$0xf]
    %v2494 = vld [vmem:[#allocation2 + $0x710] sm:$0xf]
    %v2495 = vld [vmem:[#allocation2 + $0x714] sm:$0xf]
    %v2496 = vld [vmem:[#allocation2 + $0x718] sm:$0xf]
    %v2497 = vld [vmem:[#allocation2 + $0x71c] sm:$0xf]
    %v2498 = vld [vmem:[#allocation2 + $0x720] sm:$0xf]
    %v2499 = vld [vmem:[#allocation2 + $0x724] sm:$0xf]
    %v2500 = vld [vmem:[#allocation2 + $0x728] sm:$0xf]
    %v2501 = vld [vmem:[#allocation2 + $0x72c] sm:$0xf]
    %v2502 = vld [vmem:[#allocation2 + $0x730] sm:$0xf]
    %v2503 = vld [vmem:[#allocation2 + $0x734] sm:$0xf]
    %v2504 = vld [vmem:[#allocation2 + $0x738] sm:$0xf]
    %v2505 = vld [vmem:[#allocation2 + $0x73c] sm:$0xf]
    %v2570 = vunpack.c.l.b16 %v2442
    %v2571 = vunpack.c.l.b16 %v2443
    %v2572 = vunpack.c.l.b16 %v2444
    %v2573 = vunpack.c.l.b16 %v2445
    %v2574 = vunpack.c.l.b16 %v2446
    %v2575 = vunpack.c.l.b16 %v2447
    %v2576 = vunpack.c.l.b16 %v2448
    %v2577 = vunpack.c.l.b16 %v2449
    %v2578 = vunpack.c.l.b16 %v2450
    %v2579 = vunpack.c.l.b16 %v2451
    %v2580 = vunpack.c.l.b16 %v2452
    %v2581 = vunpack.c.l.b16 %v2453
    %v2582 = vunpack.c.l.b16 %v2454
    %v2583 = vunpack.c.l.b16 %v2455
    %v2584 = vunpack.c.l.b16 %v2456
    %v2585 = vunpack.c.l.b16 %v2457
    %v2586 = vunpack.c.l.b16 %v2458
    %v2587 = vunpack.c.l.b16 %v2459
    %v2588 = vunpack.c.l.b16 %v2460
    %v2589 = vunpack.c.l.b16 %v2461
    %v2590 = vunpack.c.l.b16 %v2462
    %v2591 = vunpack.c.l.b16 %v2463
    %v2592 = vunpack.c.l.b16 %v2464
    %v2593 = vunpack.c.l.b16 %v2465
    %v2594 = vunpack.c.l.b16 %v2466
    %v2595 = vunpack.c.l.b16 %v2467
    %v2596 = vunpack.c.l.b16 %v2468
    %v2597 = vunpack.c.l.b16 %v2469
    %v2598 = vunpack.c.l.b16 %v2470
    %v2599 = vunpack.c.l.b16 %v2471
    %v2600 = vunpack.c.l.b16 %v2472
    %v2601 = vunpack.c.l.b16 %v2473
    %v2602 = vunpack.c.l.b16 %v2474
    %v2603 = vunpack.c.l.b16 %v2475
    %v2604 = vunpack.c.l.b16 %v2476
    %v2605 = vunpack.c.l.b16 %v2477
    %v2606 = vunpack.c.l.b16 %v2478
    %v2607 = vunpack.c.l.b16 %v2479
    %v2608 = vunpack.c.l.b16 %v2480
    %v2609 = vunpack.c.l.b16 %v2481
    %v2610 = vunpack.c.l.b16 %v2482
    %v2611 = vunpack.c.l.b16 %v2483
    %v2612 = vunpack.c.l.b16 %v2484
    %v2613 = vunpack.c.l.b16 %v2485
    %v2614 = vunpack.c.l.b16 %v2486
    %v2615 = vunpack.c.l.b16 %v2487
    %v2616 = vunpack.c.l.b16 %v2488
    %v2617 = vunpack.c.l.b16 %v2489
    %v2618 = vunpack.c.l.b16 %v2490
    %v2619 = vunpack.c.l.b16 %v2491
    %v2620 = vunpack.c.l.b16 %v2492
    %v2621 = vunpack.c.l.b16 %v2493
    %v2622 = vunpack.c.l.b16 %v2494
    %v2623 = vunpack.c.l.b16 %v2495
    %v2624 = vunpack.c.l.b16 %v2496
    %v2625 = vunpack.c.l.b16 %v2497
    %v2626 = vunpack.c.l.b16 %v2498
    %v2627 = vunpack.c.l.b16 %v2499
    %v2628 = vunpack.c.l.b16 %v2500
    %v2629 = vunpack.c.l.b16 %v2501
    %v2630 = vunpack.c.l.b16 %v2502
    %v2631 = vunpack.c.l.b16 %v2503
    %v2632 = vunpack.c.l.b16 %v2504
    %v2633 = vunpack.c.l.b16 %v2505
    %v2634 = vpack.c.b16 %v2571, %v2570
    %v2635 = vpack.c.b16 %v2573, %v2572
    %v2636 = vpack.c.b16 %v2575, %v2574
    %v2637 = vpack.c.b16 %v2577, %v2576
    %v2638 = vpack.c.b16 %v2579, %v2578
    %v2639 = vpack.c.b16 %v2581, %v2580
    %v2640 = vpack.c.b16 %v2583, %v2582
    %v2641 = vpack.c.b16 %v2585, %v2584
    %v2642 = vpack.c.b16 %v2587, %v2586
    %v2643 = vpack.c.b16 %v2589, %v2588
    %v2644 = vpack.c.b16 %v2591, %v2590
    %v2645 = vpack.c.b16 %v2593, %v2592
    %v2646 = vpack.c.b16 %v2595, %v2594
    %v2647 = vpack.c.b16 %v2597, %v2596
    %v2648 = vpack.c.b16 %v2599, %v2598
    %v2649 = vpack.c.b16 %v2601, %v2600
    %v2650 = vpack.c.b16 %v2603, %v2602
    %v2651 = vpack.c.b16 %v2605, %v2604
    %v2652 = vpack.c.b16 %v2607, %v2606
    %v2653 = vpack.c.b16 %v2609, %v2608
    %v2654 = vpack.c.b16 %v2611, %v2610
    %v2655 = vpack.c.b16 %v2613, %v2612
    %v2656 = vpack.c.b16 %v2615, %v2614
    %v2657 = vpack.c.b16 %v2617, %v2616
    %v2658 = vpack.c.b16 %v2619, %v2618
    %v2659 = vpack.c.b16 %v2621, %v2620
    %v2660 = vpack.c.b16 %v2623, %v2622
    %v2661 = vpack.c.b16 %v2625, %v2624
    %v2662 = vpack.c.b16 %v2627, %v2626
    %v2663 = vpack.c.b16 %v2629, %v2628
    %v2664 = vpack.c.b16 %v2631, %v2630
    %v2665 = vpack.c.b16 %v2633, %v2632
    %2698 = vmatpush.bf16.msra.mxu0 %v2641
    %2699 = vmatpush.bf16.msra.mxu0 %v2640
    %2700 = vmatpush.bf16.msra.mxu0 %v2639
    %2701 = vmatpush.bf16.msra.mxu0 %v2638
    %2702 = vmatpush.bf16.msra.mxu0 %v2637
    %2703 = vmatpush.bf16.msra.mxu0 %v2636
    %2704 = vmatpush.bf16.msra.mxu0 %v2635
    %2705 = vmatpush.bf16.msra.mxu0 %v2634
    %2706 = vmatmul.bf16.gmra.mxu0 %v1814
    %v2707 = vpop.f32.mrf.mxu0
    %v2708 = vadd.f32 0.0, %v2707
    %v2709 = vpop.f32.mrf.mxu0
    %v2710 = vadd.f32 0.0, %v2709
    %2711 = vdwg.mxu0
    %2712 = vmatpush.bf16.msra.mxu0 %v2649
    %2713 = vmatpush.bf16.msra.mxu0 %v2648
    %2714 = vmatpush.bf16.msra.mxu0 %v2647
    %2715 = vmatpush.bf16.msra.mxu0 %v2646
    %2716 = vmatpush.bf16.msra.mxu0 %v2645
    %2717 = vmatpush.bf16.msra.mxu0 %v2644
    %2718 = vmatpush.bf16.msra.mxu0 %v2643
    %2719 = vmatpush.bf16.msra.mxu0 %v2642
    %2720 = vmatmul.bf16.gmra.mxu0 %v1815
    %v2721 = vpop.f32.mrf.mxu0
    %v2722 = vadd.f32 %v2708, %v2721
    %v2723 = vpop.f32.mrf.mxu0
    %v2724 = vadd.f32 %v2710, %v2723
    %2725 = vdwg.mxu0
    %2726 = vmatpush.bf16.msra.mxu0 %v2657
    %2727 = vmatpush.bf16.msra.mxu0 %v2656
    %2728 = vmatpush.bf16.msra.mxu0 %v2655
    %2729 = vmatpush.bf16.msra.mxu0 %v2654
    %2730 = vmatpush.bf16.msra.mxu0 %v2653
    %2731 = vmatpush.bf16.msra.mxu0 %v2652
    %2732 = vmatpush.bf16.msra.mxu0 %v2651
    %2733 = vmatpush.bf16.msra.mxu0 %v2650
    %2734 = vmatmul.bf16.gmra.mxu0 %v1816
    %v2735 = vpop.f32.mrf.mxu0
    %v2736 = vadd.f32 %v2722, %v2735
    %v2737 = vpop.f32.mrf.mxu0
    %v2738 = vadd.f32 %v2724, %v2737
    %2739 = vdwg.mxu0
    %2740 = vmatpush.bf16.msra.mxu0 %v2665
    %2741 = vmatpush.bf16.msra.mxu0 %v2664
    %2742 = vmatpush.bf16.msra.mxu0 %v2663
    %2743 = vmatpush.bf16.msra.mxu0 %v2662
    %2744 = vmatpush.bf16.msra.mxu0 %v2661
    %2745 = vmatpush.bf16.msra.mxu0 %v2660
    %2746 = vmatpush.bf16.msra.mxu0 %v2659
    %2747 = vmatpush.bf16.msra.mxu0 %v2658
    %2748 = vmatmul.bf16.gmra.mxu0 %v1817
    %v2749 = vpop.f32.mrf.mxu0
    %v2750 = vadd.f32 %v2736, %v2749
    %v2751 = vpop.f32.mrf.mxu0
    %v2752 = vadd.f32 %v2738, %v2751
    %2753 = vdwg.mxu0
    %s2754 = scalar_lea.vmem [#allocation4], 2
    %v2755 = vld [vmem:[%s2754] ss:$8 sm:$0x7]
    %v2757 = vperm.slane %v2755, 0
    %v2758 = vperm.slane %v2755, 1
    %v2759 = vperm.slane %v2755, 2
    %v2763 = vadd.f32 %v2126, %v2757
    %v2764 = vadd.f32 %v2438, %v2758
    %v2765 = vadd.f32 %v2750, %v2759
    %v2766 = vadd.f32 %v2128, %v2757
    %v2767 = vadd.f32 %v2440, %v2758
    %v2768 = vadd.f32 %v2752, %v2759
    %vm2769 = vcmp.ge.f32.partialorder %v2763, 0.0
    %vm2770 = vcmp.ge.f32.partialorder %v2764, 0.0
    %vm2771 = vcmp.ge.f32.partialorder %v2765, 0.0
    %vm2772 = vcmp.ge.f32.partialorder %v2766, 0.0
    %vm2773 = vcmp.ge.f32.partialorder %v2767, 0.0
    %vm2774 = vcmp.ge.f32.partialorder %v2768, 0.0
    %v2775 = vmul.f32 %v2763, 0.01
    %v2776 = vmul.f32 %v2764, 0.01
    %v2777 = vmul.f32 %v2765, 0.01
    %v2778 = vmul.f32 %v2766, 0.01
    %v2779 = vmul.f32 %v2767, 0.01
    %v2780 = vmul.f32 %v2768, 0.01
    %v2781 = vsel %vm2769, %v2763, %v2775
    %v2782 = vsel %vm2770, %v2764, %v2776
    %v2783 = vsel %vm2771, %v2765, %v2777
    %v2784 = vsel %vm2772, %v2766, %v2778
    %v2785 = vsel %vm2773, %v2767, %v2779
    %v2786 = vsel %vm2774, %v2768, %v2780
    %v2787 = vsel %vm221, %v2781, 0.0
    %v2788 = vsel %vm221, %v2782, 0.0
    %v2789 = vsel %vm221, %v2783, 0.0
    %v2790 = vsel %vm222, %v2784, 0.0
    %v2791 = vsel %vm222, %v2785, 0.0
    %v2792 = vsel %vm222, %v2786, 0.0
    %v2793 = vadd.f32 %v2787, %v2790
    %v2794 = vrot.slane %v2793, 4
    %v2795 = vadd.f32 %v2793, %v2794
    %v2796 = vrot.slane %v2795, 2
    %v2797 = vadd.f32 %v2795, %v2796
    %v2798 = vrot.slane %v2797, 1
    %v2799 = vadd.f32 %v2797, %v2798
    %v2800 = vadd.f32 %v2788, %v2791
    %v2801 = vrot.slane %v2800, 4
    %v2802 = vadd.f32 %v2800, %v2801
    %v2803 = vrot.slane %v2802, 2
    %v2804 = vadd.f32 %v2802, %v2803
    %v2805 = vrot.slane %v2804, 1
    %v2806 = vadd.f32 %v2804, %v2805
    %v2807 = vadd.f32 %v2789, %v2792
    %v2808 = vrot.slane %v2807, 4
    %v2809 = vadd.f32 %v2807, %v2808
    %v2810 = vrot.slane %v2809, 2
    %v2811 = vadd.f32 %v2809, %v2810
    %v2812 = vrot.slane %v2811, 1
    %v2813 = vadd.f32 %v2811, %v2812
    %v2814 = vmul.f32 %v2799, 0.125
    %v2815 = vmul.f32 %v2806, 0.125
    %v2816 = vmul.f32 %v2813, 0.125
    %v2817 = vsub.f32 %v2781, %v2814
    %v2818 = vsub.f32 %v2782, %v2815
    %v2819 = vsub.f32 %v2783, %v2816
    %v2820 = vsub.f32 %v2784, %v2814
    %v2821 = vsub.f32 %v2785, %v2815
    %v2822 = vsub.f32 %v2786, %v2816
    %v2823 = vsel %vm221, %v2817, 0.0
    %v2824 = vsel %vm221, %v2818, 0.0
    %v2825 = vsel %vm221, %v2819, 0.0
    %v2826 = vsel %vm222, %v2820, 0.0
    %v2827 = vsel %vm222, %v2821, 0.0
    %v2828 = vsel %vm222, %v2822, 0.0
    %v2829 = vmul.f32 %v2823, %v2823
    %v2830 = vmul.f32 %v2824, %v2824
    %v2831 = vmul.f32 %v2825, %v2825
    %v2832 = vmul.f32 %v2826, %v2826
    %v2833 = vmul.f32 %v2827, %v2827
    %v2834 = vmul.f32 %v2828, %v2828
    %v2835 = vadd.f32 %v2829, %v2832
    %v2836 = vrot.slane %v2835, 4
    %v2837 = vadd.f32 %v2835, %v2836
    %v2838 = vrot.slane %v2837, 2
    %v2839 = vadd.f32 %v2837, %v2838
    %v2840 = vrot.slane %v2839, 1
    %v2841 = vadd.f32 %v2839, %v2840
    %v2842 = vadd.f32 %v2830, %v2833
    %v2843 = vrot.slane %v2842, 4
    %v2844 = vadd.f32 %v2842, %v2843
    %v2845 = vrot.slane %v2844, 2
    %v2846 = vadd.f32 %v2844, %v2845
    %v2847 = vrot.slane %v2846, 1
    %v2848 = vadd.f32 %v2846, %v2847
    %v2849 = vadd.f32 %v2831, %v2834
    %v2850 = vrot.slane %v2849, 4
    %v2851 = vadd.f32 %v2849, %v2850
    %v2852 = vrot.slane %v2851, 2
    %v2853 = vadd.f32 %v2851, %v2852
    %v2854 = vrot.slane %v2853, 1
    %v2855 = vadd.f32 %v2853, %v2854
    %v2856 = vmul.f32 %v2841, 0.125
    %v2857 = vmul.f32 %v2848, 0.125
    %v2858 = vmul.f32 %v2855, 0.125
    %v2859 = vadd.f32 %v2856, 1e-05
    %v2860 = vadd.f32 %v2857, 1e-05
    %v2861 = vadd.f32 %v2858, 1e-05
    %v2862 = vrsqrt.pop %v2859
    %v2863 = vmul.f32 %v2862, %v2859
    %v2864 = vmul.f32 %v2863, %v2862
    %v2865 = vmul.f32 0.5, %v2864
    %v2866 = vsub.f32 1.5, %v2865
    %v2867 = vmul.f32 %v2862, %v2866
    %vm2868 = vweird.f32 %v2859
    %vm2869 = vweird.f32 %v2862
    %vm2870 = vmor %vm2868, %vm2869
    %v2871 = vsel %vm2870, %v2862, %v2867
    %v2872 = vrsqrt.pop %v2860
    %v2873 = vmul.f32 %v2872, %v2860
    %v2874 = vmul.f32 %v2873, %v2872
    %v2875 = vmul.f32 0.5, %v2874
    %v2876 = vsub.f32 1.5, %v2875
    %v2877 = vmul.f32 %v2872, %v2876
    %vm2878 = vweird.f32 %v2860
    %vm2879 = vweird.f32 %v2872
    %vm2880 = vmor %vm2878, %vm2879
    %v2881 = vsel %vm2880, %v2872, %v2877
    %v2882 = vrsqrt.pop %v2861
    %v2883 = vmul.f32 %v2882, %v2861
    %v2884 = vmul.f32 %v2883, %v2882
    %v2885 = vmul.f32 0.5, %v2884
    %v2886 = vsub.f32 1.5, %v2885
    %v2887 = vmul.f32 %v2882, %v2886
    %vm2888 = vweird.f32 %v2861
    %vm2889 = vweird.f32 %v2882
    %vm2890 = vmor %vm2888, %vm2889
    %v2891 = vsel %vm2890, %v2882, %v2887
    %v2892 = vmul.f32 %v2817, %v2871
    %v2893 = vmul.f32 %v2818, %v2881
    %v2894 = vmul.f32 %v2819, %v2891
    %v2895 = vmul.f32 %v2820, %v2871
    %v2896 = vmul.f32 %v2821, %v2881
    %v2897 = vmul.f32 %v2822, %v2891
    %v2898 = vpack.c.bf16 %v2895, %v2892
    %v2899 = vpack.c.bf16 %v2896, %v2893
    %v2900 = vpack.c.bf16 %v2897, %v2894
    %v2901 = vld [vmem:[#allocation2 + $0x740] sm:$0xf]
    %v2902 = vld [vmem:[#allocation2 + $0x744] sm:$0xf]
    %v2903 = vld [vmem:[#allocation2 + $0x748] sm:$0xf]
    %v2904 = vld [vmem:[#allocation2 + $0x74c] sm:$0xf]
    %v2905 = vld [vmem:[#allocation2 + $0x750] sm:$0xf]
    %v2906 = vld [vmem:[#allocation2 + $0x754] sm:$0xf]
    %v2907 = vld [vmem:[#allocation2 + $0x758] sm:$0xf]
    %v2908 = vld [vmem:[#allocation2 + $0x75c] sm:$0xf]
    %v2909 = vld [vmem:[#allocation2 + $0x760] sm:$0xf]
    %v2910 = vld [vmem:[#allocation2 + $0x764] sm:$0xf]
    %v2911 = vld [vmem:[#allocation2 + $0x768] sm:$0xf]
    %v2912 = vld [vmem:[#allocation2 + $0x76c] sm:$0xf]
    %v2913 = vld [vmem:[#allocation2 + $0x770] sm:$0xf]
    %v2914 = vld [vmem:[#allocation2 + $0x774] sm:$0xf]
    %v2915 = vld [vmem:[#allocation2 + $0x778] sm:$0xf]
    %v2916 = vld [vmem:[#allocation2 + $0x77c] sm:$0xf]
    %v2917 = vld [vmem:[#allocation2 + $0x780] sm:$0xf]
    %v2918 = vld [vmem:[#allocation2 + $0x784] sm:$0xf]
    %v2919 = vld [vmem:[#allocation2 + $0x788] sm:$0xf]
    %v2920 = vld [vmem:[#allocation2 + $0x78c] sm:$0xf]
    %v2921 = vld [vmem:[#allocation2 + $0x790] sm:$0xf]
    %v2922 = vld [vmem:[#allocation2 + $0x794] sm:$0xf]
    %v2923 = vld [vmem:[#allocation2 + $0x798] sm:$0xf]
    %v2924 = vld [vmem:[#allocation2 + $0x79c] sm:$0xf]
    %v2925 = vld [vmem:[#allocation2 + $0x7a0] sm:$0xf]
    %v2926 = vld [vmem:[#allocation2 + $0x7a4] sm:$0xf]
    %v2927 = vld [vmem:[#allocation2 + $0x7a8] sm:$0xf]
    %v2928 = vld [vmem:[#allocation2 + $0x7ac] sm:$0xf]
    %v2929 = vld [vmem:[#allocation2 + $0x7b0] sm:$0xf]
    %v2930 = vld [vmem:[#allocation2 + $0x7b4] sm:$0xf]
    %v2931 = vld [vmem:[#allocation2 + $0x7b8] sm:$0xf]
    %v2932 = vld [vmem:[#allocation2 + $0x7bc] sm:$0xf]
    %v2933 = vld [vmem:[#allocation2 + $0x7c0] sm:$0xf]
    %v2934 = vld [vmem:[#allocation2 + $0x7c4] sm:$0xf]
    %v2935 = vld [vmem:[#allocation2 + $0x7c8] sm:$0xf]
    %v2936 = vld [vmem:[#allocation2 + $0x7cc] sm:$0xf]
    %v2937 = vld [vmem:[#allocation2 + $0x7d0] sm:$0xf]
    %v2938 = vld [vmem:[#allocation2 + $0x7d4] sm:$0xf]
    %v2939 = vld [vmem:[#allocation2 + $0x7d8] sm:$0xf]
    %v2940 = vld [vmem:[#allocation2 + $0x7dc] sm:$0xf]
    %v2941 = vld [vmem:[#allocation2 + $0x7e0] sm:$0xf]
    %v2942 = vld [vmem:[#allocation2 + $0x7e4] sm:$0xf]
    %v2943 = vld [vmem:[#allocation2 + $0x7e8] sm:$0xf]
    %v2944 = vld [vmem:[#allocation2 + $0x7ec] sm:$0xf]
    %v2945 = vld [vmem:[#allocation2 + $0x7f0] sm:$0xf]
    %v2946 = vld [vmem:[#allocation2 + $0x7f4] sm:$0xf]
    %v2947 = vld [vmem:[#allocation2 + $0x7f8] sm:$0xf]
    %v2948 = vld [vmem:[#allocation2 + $0x7fc] sm:$0xf]
    %v2997 = vunpack.c.l.b16 %v2901
    %v2998 = vunpack.c.l.b16 %v2902
    %v2999 = vunpack.c.l.b16 %v2903
    %v3000 = vunpack.c.l.b16 %v2904
    %v3001 = vunpack.c.l.b16 %v2905
    %v3002 = vunpack.c.l.b16 %v2906
    %v3003 = vunpack.c.l.b16 %v2907
    %v3004 = vunpack.c.l.b16 %v2908
    %v3005 = vunpack.c.l.b16 %v2909
    %v3006 = vunpack.c.l.b16 %v2910
    %v3007 = vunpack.c.l.b16 %v2911
    %v3008 = vunpack.c.l.b16 %v2912
    %v3009 = vunpack.c.l.b16 %v2913
    %v3010 = vunpack.c.l.b16 %v2914
    %v3011 = vunpack.c.l.b16 %v2915
    %v3012 = vunpack.c.l.b16 %v2916
    %v3013 = vunpack.c.l.b16 %v2917
    %v3014 = vunpack.c.l.b16 %v2918
    %v3015 = vunpack.c.l.b16 %v2919
    %v3016 = vunpack.c.l.b16 %v2920
    %v3017 = vunpack.c.l.b16 %v2921
    %v3018 = vunpack.c.l.b16 %v2922
    %v3019 = vunpack.c.l.b16 %v2923
    %v3020 = vunpack.c.l.b16 %v2924
    %v3021 = vunpack.c.l.b16 %v2925
    %v3022 = vunpack.c.l.b16 %v2926
    %v3023 = vunpack.c.l.b16 %v2927
    %v3024 = vunpack.c.l.b16 %v2928
    %v3025 = vunpack.c.l.b16 %v2929
    %v3026 = vunpack.c.l.b16 %v2930
    %v3027 = vunpack.c.l.b16 %v2931
    %v3028 = vunpack.c.l.b16 %v2932
    %v3029 = vunpack.c.l.b16 %v2933
    %v3030 = vunpack.c.l.b16 %v2934
    %v3031 = vunpack.c.l.b16 %v2935
    %v3032 = vunpack.c.l.b16 %v2936
    %v3033 = vunpack.c.l.b16 %v2937
    %v3034 = vunpack.c.l.b16 %v2938
    %v3035 = vunpack.c.l.b16 %v2939
    %v3036 = vunpack.c.l.b16 %v2940
    %v3037 = vunpack.c.l.b16 %v2941
    %v3038 = vunpack.c.l.b16 %v2942
    %v3039 = vunpack.c.l.b16 %v2943
    %v3040 = vunpack.c.l.b16 %v2944
    %v3041 = vunpack.c.l.b16 %v2945
    %v3042 = vunpack.c.l.b16 %v2946
    %v3043 = vunpack.c.l.b16 %v2947
    %v3044 = vunpack.c.l.b16 %v2948
    %v3045 = vpack.c.b16 %v2998, %v2997
    %v3046 = vpack.c.b16 %v3000, %v2999
    %v3047 = vpack.c.b16 %v3002, %v3001
    %v3048 = vpack.c.b16 %v3004, %v3003
    %v3049 = vpack.c.b16 %v3006, %v3005
    %v3050 = vpack.c.b16 %v3008, %v3007
    %v3051 = vpack.c.b16 %v3010, %v3009
    %v3052 = vpack.c.b16 %v3012, %v3011
    %v3053 = vpack.c.b16 %v3014, %v3013
    %v3054 = vpack.c.b16 %v3016, %v3015
    %v3055 = vpack.c.b16 %v3018, %v3017
    %v3056 = vpack.c.b16 %v3020, %v3019
    %v3057 = vpack.c.b16 %v3022, %v3021
    %v3058 = vpack.c.b16 %v3024, %v3023
    %v3059 = vpack.c.b16 %v3026, %v3025
    %v3060 = vpack.c.b16 %v3028, %v3027
    %v3061 = vpack.c.b16 %v3030, %v3029
    %v3062 = vpack.c.b16 %v3032, %v3031
    %v3063 = vpack.c.b16 %v3034, %v3033
    %v3064 = vpack.c.b16 %v3036, %v3035
    %v3065 = vpack.c.b16 %v3038, %v3037
    %v3066 = vpack.c.b16 %v3040, %v3039
    %v3067 = vpack.c.b16 %v3042, %v3041
    %v3068 = vpack.c.b16 %v3044, %v3043
    %3093 = vmatpush.bf16.msra.mxu0 %v3052
    %3094 = vmatpush.bf16.msra.mxu0 %v3051
    %3095 = vmatpush.bf16.msra.mxu0 %v3050
    %3096 = vmatpush.bf16.msra.mxu0 %v3049
    %3097 = vmatpush.bf16.msra.mxu0 %v3048
    %3098 = vmatpush.bf16.msra.mxu0 %v3047
    %3099 = vmatpush.bf16.msra.mxu0 %v3046
    %3100 = vmatpush.bf16.msra.mxu0 %v3045
    %3101 = vmatmul.bf16.gmra.mxu0 %v2898
    %v3102 = vpop.f32.mrf.mxu0
    %v3103 = vadd.f32 0.0, %v3102
    %v3104 = vpop.f32.mrf.mxu0
    %v3105 = vadd.f32 0.0, %v3104
    %3106 = vdwg.mxu0
    %3107 = vmatpush.bf16.msra.mxu0 %v3060
    %3108 = vmatpush.bf16.msra.mxu0 %v3059
    %3109 = vmatpush.bf16.msra.mxu0 %v3058
    %3110 = vmatpush.bf16.msra.mxu0 %v3057
    %3111 = vmatpush.bf16.msra.mxu0 %v3056
    %3112 = vmatpush.bf16.msra.mxu0 %v3055
    %3113 = vmatpush.bf16.msra.mxu0 %v3054
    %3114 = vmatpush.bf16.msra.mxu0 %v3053
    %3115 = vmatmul.bf16.gmra.mxu0 %v2899
    %v3116 = vpop.f32.mrf.mxu0
    %v3117 = vadd.f32 %v3103, %v3116
    %v3118 = vpop.f32.mrf.mxu0
    %v3119 = vadd.f32 %v3105, %v3118
    %3120 = vdwg.mxu0
    %3121 = vmatpush.bf16.msra.mxu0 %v3068
    %3122 = vmatpush.bf16.msra.mxu0 %v3067
    %3123 = vmatpush.bf16.msra.mxu0 %v3066
    %3124 = vmatpush.bf16.msra.mxu0 %v3065
    %3125 = vmatpush.bf16.msra.mxu0 %v3064
    %3126 = vmatpush.bf16.msra.mxu0 %v3063
    %3127 = vmatpush.bf16.msra.mxu0 %v3062
    %3128 = vmatpush.bf16.msra.mxu0 %v3061
    %3129 = vmatmul.bf16.gmra.mxu0 %v2900
    %v3130 = vpop.f32.mrf.mxu0
    %v3131 = vadd.f32 %v3117, %v3130
    %v3132 = vpop.f32.mrf.mxu0
    %v3133 = vadd.f32 %v3119, %v3132
    %3134 = vdwg.mxu0
    %v3135 = vld [vmem:[#allocation2 + $0x800] sm:$0xf]
    %v3136 = vld [vmem:[#allocation2 + $0x804] sm:$0xf]
    %v3137 = vld [vmem:[#allocation2 + $0x808] sm:$0xf]
    %v3138 = vld [vmem:[#allocation2 + $0x80c] sm:$0xf]
    %v3139 = vld [vmem:[#allocation2 + $0x810] sm:$0xf]
    %v3140 = vld [vmem:[#allocation2 + $0x814] sm:$0xf]
    %v3141 = vld [vmem:[#allocation2 + $0x818] sm:$0xf]
    %v3142 = vld [vmem:[#allocation2 + $0x81c] sm:$0xf]
    %v3143 = vld [vmem:[#allocation2 + $0x820] sm:$0xf]
    %v3144 = vld [vmem:[#allocation2 + $0x824] sm:$0xf]
    %v3145 = vld [vmem:[#allocation2 + $0x828] sm:$0xf]
    %v3146 = vld [vmem:[#allocation2 + $0x82c] sm:$0xf]
    %v3147 = vld [vmem:[#allocation2 + $0x830] sm:$0xf]
    %v3148 = vld [vmem:[#allocation2 + $0x834] sm:$0xf]
    %v3149 = vld [vmem:[#allocation2 + $0x838] sm:$0xf]
    %v3150 = vld [vmem:[#allocation2 + $0x83c] sm:$0xf]
    %v3151 = vld [vmem:[#allocation2 + $0x840] sm:$0xf]
    %v3152 = vld [vmem:[#allocation2 + $0x844] sm:$0xf]
    %v3153 = vld [vmem:[#allocation2 + $0x848] sm:$0xf]
    %v3154 = vld [vmem:[#allocation2 + $0x84c] sm:$0xf]
    %v3155 = vld [vmem:[#allocation2 + $0x850] sm:$0xf]
    %v3156 = vld [vmem:[#allocation2 + $0x854] sm:$0xf]
    %v3157 = vld [vmem:[#allocation2 + $0x858] sm:$0xf]
    %v3158 = vld [vmem:[#allocation2 + $0x85c] sm:$0xf]
    %v3159 = vld [vmem:[#allocation2 + $0x860] sm:$0xf]
    %v3160 = vld [vmem:[#allocation2 + $0x864] sm:$0xf]
    %v3161 = vld [vmem:[#allocation2 + $0x868] sm:$0xf]
    %v3162 = vld [vmem:[#allocation2 + $0x86c] sm:$0xf]
    %v3163 = vld [vmem:[#allocation2 + $0x870] sm:$0xf]
    %v3164 = vld [vmem:[#allocation2 + $0x874] sm:$0xf]
    %v3165 = vld [vmem:[#allocation2 + $0x878] sm:$0xf]
    %v3166 = vld [vmem:[#allocation2 + $0x87c] sm:$0xf]
    %v3167 = vld [vmem:[#allocation2 + $0x880] sm:$0xf]
    %v3168 = vld [vmem:[#allocation2 + $0x884] sm:$0xf]
    %v3169 = vld [vmem:[#allocation2 + $0x888] sm:$0xf]
    %v3170 = vld [vmem:[#allocation2 + $0x88c] sm:$0xf]
    %v3171 = vld [vmem:[#allocation2 + $0x890] sm:$0xf]
    %v3172 = vld [vmem:[#allocation2 + $0x894] sm:$0xf]
    %v3173 = vld [vmem:[#allocation2 + $0x898] sm:$0xf]
    %v3174 = vld [vmem:[#allocation2 + $0x89c] sm:$0xf]
    %v3175 = vld [vmem:[#allocation2 + $0x8a0] sm:$0xf]
    %v3176 = vld [vmem:[#allocation2 + $0x8a4] sm:$0xf]
    %v3177 = vld [vmem:[#allocation2 + $0x8a8] sm:$0xf]
    %v3178 = vld [vmem:[#allocation2 + $0x8ac] sm:$0xf]
    %v3179 = vld [vmem:[#allocation2 + $0x8b0] sm:$0xf]
    %v3180 = vld [vmem:[#allocation2 + $0x8b4] sm:$0xf]
    %v3181 = vld [vmem:[#allocation2 + $0x8b8] sm:$0xf]
    %v3182 = vld [vmem:[#allocation2 + $0x8bc] sm:$0xf]
    %v3231 = vunpack.c.l.b16 %v3135
    %v3232 = vunpack.c.l.b16 %v3136
    %v3233 = vunpack.c.l.b16 %v3137
    %v3234 = vunpack.c.l.b16 %v3138
    %v3235 = vunpack.c.l.b16 %v3139
    %v3236 = vunpack.c.l.b16 %v3140
    %v3237 = vunpack.c.l.b16 %v3141
    %v3238 = vunpack.c.l.b16 %v3142
    %v3239 = vunpack.c.l.b16 %v3143
    %v3240 = vunpack.c.l.b16 %v3144
    %v3241 = vunpack.c.l.b16 %v3145
    %v3242 = vunpack.c.l.b16 %v3146
    %v3243 = vunpack.c.l.b16 %v3147
    %v3244 = vunpack.c.l.b16 %v3148
    %v3245 = vunpack.c.l.b16 %v3149
    %v3246 = vunpack.c.l.b16 %v3150
    %v3247 = vunpack.c.l.b16 %v3151
    %v3248 = vunpack.c.l.b16 %v3152
    %v3249 = vunpack.c.l.b16 %v3153
    %v3250 = vunpack.c.l.b16 %v3154
    %v3251 = vunpack.c.l.b16 %v3155
    %v3252 = vunpack.c.l.b16 %v3156
    %v3253 = vunpack.c.l.b16 %v3157
    %v3254 = vunpack.c.l.b16 %v3158
    %v3255 = vunpack.c.l.b16 %v3159
    %v3256 = vunpack.c.l.b16 %v3160
    %v3257 = vunpack.c.l.b16 %v3161
    %v3258 = vunpack.c.l.b16 %v3162
    %v3259 = vunpack.c.l.b16 %v3163
    %v3260 = vunpack.c.l.b16 %v3164
    %v3261 = vunpack.c.l.b16 %v3165
    %v3262 = vunpack.c.l.b16 %v3166
    %v3263 = vunpack.c.l.b16 %v3167
    %v3264 = vunpack.c.l.b16 %v3168
    %v3265 = vunpack.c.l.b16 %v3169
    %v3266 = vunpack.c.l.b16 %v3170
    %v3267 = vunpack.c.l.b16 %v3171
    %v3268 = vunpack.c.l.b16 %v3172
    %v3269 = vunpack.c.l.b16 %v3173
    %v3270 = vunpack.c.l.b16 %v3174
    %v3271 = vunpack.c.l.b16 %v3175
    %v3272 = vunpack.c.l.b16 %v3176
    %v3273 = vunpack.c.l.b16 %v3177
    %v3274 = vunpack.c.l.b16 %v3178
    %v3275 = vunpack.c.l.b16 %v3179
    %v3276 = vunpack.c.l.b16 %v3180
    %v3277 = vunpack.c.l.b16 %v3181
    %v3278 = vunpack.c.l.b16 %v3182
    %v3279 = vpack.c.b16 %v3232, %v3231
    %v3280 = vpack.c.b16 %v3234, %v3233
    %v3281 = vpack.c.b16 %v3236, %v3235
    %v3282 = vpack.c.b16 %v3238, %v3237
    %v3283 = vpack.c.b16 %v3240, %v3239
    %v3284 = vpack.c.b16 %v3242, %v3241
    %v3285 = vpack.c.b16 %v3244, %v3243
    %v3286 = vpack.c.b16 %v3246, %v3245
    %v3287 = vpack.c.b16 %v3248, %v3247
    %v3288 = vpack.c.b16 %v3250, %v3249
    %v3289 = vpack.c.b16 %v3252, %v3251
    %v3290 = vpack.c.b16 %v3254, %v3253
    %v3291 = vpack.c.b16 %v3256, %v3255
    %v3292 = vpack.c.b16 %v3258, %v3257
    %v3293 = vpack.c.b16 %v3260, %v3259
    %v3294 = vpack.c.b16 %v3262, %v3261
    %v3295 = vpack.c.b16 %v3264, %v3263
    %v3296 = vpack.c.b16 %v3266, %v3265
    %v3297 = vpack.c.b16 %v3268, %v3267
    %v3298 = vpack.c.b16 %v3270, %v3269
    %v3299 = vpack.c.b16 %v3272, %v3271
    %v3300 = vpack.c.b16 %v3274, %v3273
    %v3301 = vpack.c.b16 %v3276, %v3275
    %v3302 = vpack.c.b16 %v3278, %v3277
    %3327 = vmatpush.bf16.msra.mxu0 %v3286
    %3328 = vmatpush.bf16.msra.mxu0 %v3285
    %3329 = vmatpush.bf16.msra.mxu0 %v3284
    %3330 = vmatpush.bf16.msra.mxu0 %v3283
    %3331 = vmatpush.bf16.msra.mxu0 %v3282
    %3332 = vmatpush.bf16.msra.mxu0 %v3281
    %3333 = vmatpush.bf16.msra.mxu0 %v3280
    %3334 = vmatpush.bf16.msra.mxu0 %v3279
    %3335 = vmatmul.bf16.gmra.mxu0 %v2898
    %v3336 = vpop.f32.mrf.mxu0
    %v3337 = vadd.f32 0.0, %v3336
    %v3338 = vpop.f32.mrf.mxu0
    %v3339 = vadd.f32 0.0, %v3338
    %3340 = vdwg.mxu0
    %3341 = vmatpush.bf16.msra.mxu0 %v3294
    %3342 = vmatpush.bf16.msra.mxu0 %v3293
    %3343 = vmatpush.bf16.msra.mxu0 %v3292
    %3344 = vmatpush.bf16.msra.mxu0 %v3291
    %3345 = vmatpush.bf16.msra.mxu0 %v3290
    %3346 = vmatpush.bf16.msra.mxu0 %v3289
    %3347 = vmatpush.bf16.msra.mxu0 %v3288
    %3348 = vmatpush.bf16.msra.mxu0 %v3287
    %3349 = vmatmul.bf16.gmra.mxu0 %v2899
    %v3350 = vpop.f32.mrf.mxu0
    %v3351 = vadd.f32 %v3337, %v3350
    %v3352 = vpop.f32.mrf.mxu0
    %v3353 = vadd.f32 %v3339, %v3352
    %3354 = vdwg.mxu0
    %3355 = vmatpush.bf16.msra.mxu0 %v3302
    %3356 = vmatpush.bf16.msra.mxu0 %v3301
    %3357 = vmatpush.bf16.msra.mxu0 %v3300
    %3358 = vmatpush.bf16.msra.mxu0 %v3299
    %3359 = vmatpush.bf16.msra.mxu0 %v3298
    %3360 = vmatpush.bf16.msra.mxu0 %v3297
    %3361 = vmatpush.bf16.msra.mxu0 %v3296
    %3362 = vmatpush.bf16.msra.mxu0 %v3295
    %3363 = vmatmul.bf16.gmra.mxu0 %v2900
    %v3364 = vpop.f32.mrf.mxu0
    %v3365 = vadd.f32 %v3351, %v3364
    %v3366 = vpop.f32.mrf.mxu0
    %v3367 = vadd.f32 %v3353, %v3366
    %3368 = vdwg.mxu0
    %s3369 = scalar_lea.vmem [#allocation4], 3
    %v3370 = vld [vmem:[%s3369] ss:$8 sm:$0x3]
    %v3372 = vperm.slane %v3370, 0
    %v3373 = vperm.slane %v3370, 1
    %v3376 = vadd.f32 %v3131, %v3372
    %v3377 = vadd.f32 %v3365, %v3373
    %v3378 = vadd.f32 %v3133, %v3372
    %v3379 = vadd.f32 %v3367, %v3373
    %vm3380 = vcmp.ge.f32.partialorder %v3376, 0.0
    %vm3381 = vcmp.ge.f32.partialorder %v3377, 0.0
    %vm3382 = vcmp.ge.f32.partialorder %v3378, 0.0
    %vm3383 = vcmp.ge.f32.partialorder %v3379, 0.0
    %v3384 = vmul.f32 %v3376, 0.01
    %v3385 = vmul.f32 %v3377, 0.01
    %v3386 = vmul.f32 %v3378, 0.01
    %v3387 = vmul.f32 %v3379, 0.01
    %v3388 = vsel %vm3380, %v3376, %v3384
    %v3389 = vsel %vm3381, %v3377, %v3385
    %v3390 = vsel %vm3382, %v3378, %v3386
    %v3391 = vsel %vm3383, %v3379, %v3387
    %v3392 = vsel %vm221, %v3388, 0.0
    %v3393 = vsel %vm221, %v3389, 0.0
    %v3394 = vsel %vm222, %v3390, 0.0
    %v3395 = vsel %vm222, %v3391, 0.0
    %v3396 = vadd.f32 %v3392, %v3394
    %v3397 = vrot.slane %v3396, 4
    %v3398 = vadd.f32 %v3396, %v3397
    %v3399 = vrot.slane %v3398, 2
    %v3400 = vadd.f32 %v3398, %v3399
    %v3401 = vrot.slane %v3400, 1
    %v3402 = vadd.f32 %v3400, %v3401
    %v3403 = vadd.f32 %v3393, %v3395
    %v3404 = vrot.slane %v3403, 4
    %v3405 = vadd.f32 %v3403, %v3404
    %v3406 = vrot.slane %v3405, 2
    %v3407 = vadd.f32 %v3405, %v3406
    %v3408 = vrot.slane %v3407, 1
    %v3409 = vadd.f32 %v3407, %v3408
    %v3410 = vmul.f32 %v3402, 0.125
    %v3411 = vmul.f32 %v3409, 0.125
    %v3412 = vsub.f32 %v3388, %v3410
    %v3413 = vsub.f32 %v3389, %v3411
    %v3414 = vsub.f32 %v3390, %v3410
    %v3415 = vsub.f32 %v3391, %v3411
    %v3416 = vsel %vm221, %v3412, 0.0
    %v3417 = vsel %vm221, %v3413, 0.0
    %v3418 = vsel %vm222, %v3414, 0.0
    %v3419 = vsel %vm222, %v3415, 0.0
    %v3420 = vmul.f32 %v3416, %v3416
    %v3421 = vmul.f32 %v3417, %v3417
    %v3422 = vmul.f32 %v3418, %v3418
    %v3423 = vmul.f32 %v3419, %v3419
    %v3424 = vadd.f32 %v3420, %v3422
    %v3425 = vrot.slane %v3424, 4
    %v3426 = vadd.f32 %v3424, %v3425
    %v3427 = vrot.slane %v3426, 2
    %v3428 = vadd.f32 %v3426, %v3427
    %v3429 = vrot.slane %v3428, 1
    %v3430 = vadd.f32 %v3428, %v3429
    %v3431 = vadd.f32 %v3421, %v3423
    %v3432 = vrot.slane %v3431, 4
    %v3433 = vadd.f32 %v3431, %v3432
    %v3434 = vrot.slane %v3433, 2
    %v3435 = vadd.f32 %v3433, %v3434
    %v3436 = vrot.slane %v3435, 1
    %v3437 = vadd.f32 %v3435, %v3436
    %v3438 = vmul.f32 %v3430, 0.125
    %v3439 = vmul.f32 %v3437, 0.125
    %v3440 = vadd.f32 %v3438, 1e-05
    %v3441 = vadd.f32 %v3439, 1e-05
    %v3442 = vrsqrt.pop %v3440
    %v3443 = vmul.f32 %v3442, %v3440
    %v3444 = vmul.f32 %v3443, %v3442
    %v3445 = vmul.f32 0.5, %v3444
    %v3446 = vsub.f32 1.5, %v3445
    %v3447 = vmul.f32 %v3442, %v3446
    %vm3448 = vweird.f32 %v3440
    %vm3449 = vweird.f32 %v3442
    %vm3450 = vmor %vm3448, %vm3449
    %v3451 = vsel %vm3450, %v3442, %v3447
    %v3452 = vrsqrt.pop %v3441
    %v3453 = vmul.f32 %v3452, %v3441
    %v3454 = vmul.f32 %v3453, %v3452
    %v3455 = vmul.f32 0.5, %v3454
    %v3456 = vsub.f32 1.5, %v3455
    %v3457 = vmul.f32 %v3452, %v3456
    %vm3458 = vweird.f32 %v3441
    %vm3459 = vweird.f32 %v3452
    %vm3460 = vmor %vm3458, %vm3459
    %v3461 = vsel %vm3460, %v3452, %v3457
    %v3462 = vmul.f32 %v3412, %v3451
    %v3463 = vmul.f32 %v3413, %v3461
    %v3464 = vmul.f32 %v3414, %v3451
    %v3465 = vmul.f32 %v3415, %v3461
    %v3466 = vpack.c.bf16 %v3464, %v3462
    %v3467 = vpack.c.bf16 %v3465, %v3463
    %v3468 = vld [vmem:[#allocation2 + $0x8c0] sm:$0xf]
    %v3469 = vld [vmem:[#allocation2 + $0x8c4] sm:$0xf]
    %v3470 = vld [vmem:[#allocation2 + $0x8c8] sm:$0xf]
    %v3471 = vld [vmem:[#allocation2 + $0x8cc] sm:$0xf]
    %v3472 = vld [vmem:[#allocation2 + $0x8d0] sm:$0xf]
    %v3473 = vld [vmem:[#allocation2 + $0x8d4] sm:$0xf]
    %v3474 = vld [vmem:[#allocation2 + $0x8d8] sm:$0xf]
    %v3475 = vld [vmem:[#allocation2 + $0x8dc] sm:$0xf]
    %v3476 = vld [vmem:[#allocation2 + $0x8e0] sm:$0xf]
    %v3477 = vld [vmem:[#allocation2 + $0x8e4] sm:$0xf]
    %v3478 = vld [vmem:[#allocation2 + $0x8e8] sm:$0xf]
    %v3479 = vld [vmem:[#allocation2 + $0x8ec] sm:$0xf]
    %v3480 = vld [vmem:[#allocation2 + $0x8f0] sm:$0xf]
    %v3481 = vld [vmem:[#allocation2 + $0x8f4] sm:$0xf]
    %v3482 = vld [vmem:[#allocation2 + $0x8f8] sm:$0xf]
    %v3483 = vld [vmem:[#allocation2 + $0x8fc] sm:$0xf]
    %v3484 = vld [vmem:[#allocation2 + $0x900] sm:$0xf]
    %v3485 = vld [vmem:[#allocation2 + $0x904] sm:$0xf]
    %v3486 = vld [vmem:[#allocation2 + $0x908] sm:$0xf]
    %v3487 = vld [vmem:[#allocation2 + $0x90c] sm:$0xf]
    %v3488 = vld [vmem:[#allocation2 + $0x910] sm:$0xf]
    %v3489 = vld [vmem:[#allocation2 + $0x914] sm:$0xf]
    %v3490 = vld [vmem:[#allocation2 + $0x918] sm:$0xf]
    %v3491 = vld [vmem:[#allocation2 + $0x91c] sm:$0xf]
    %v3492 = vld [vmem:[#allocation2 + $0x920] sm:$0xf]
    %v3493 = vld [vmem:[#allocation2 + $0x924] sm:$0xf]
    %v3494 = vld [vmem:[#allocation2 + $0x928] sm:$0xf]
    %v3495 = vld [vmem:[#allocation2 + $0x92c] sm:$0xf]
    %v3496 = vld [vmem:[#allocation2 + $0x930] sm:$0xf]
    %v3497 = vld [vmem:[#allocation2 + $0x934] sm:$0xf]
    %v3498 = vld [vmem:[#allocation2 + $0x938] sm:$0xf]
    %v3499 = vld [vmem:[#allocation2 + $0x93c] sm:$0xf]
    %v3500 = vld [vmem:[#allocation4 + $0x4] ss:$0 sm:$0xff]
    %v3533 = vunpack.c.l.b16 %v3468
    %v3534 = vunpack.c.l.b16 %v3469
    %v3535 = vunpack.c.l.b16 %v3470
    %v3536 = vunpack.c.l.b16 %v3471
    %v3537 = vunpack.c.l.b16 %v3472
    %v3538 = vunpack.c.l.b16 %v3473
    %v3539 = vunpack.c.l.b16 %v3474
    %v3540 = vunpack.c.l.b16 %v3475
    %v3541 = vunpack.c.l.b16 %v3476
    %v3542 = vunpack.c.l.b16 %v3477
    %v3543 = vunpack.c.l.b16 %v3478
    %v3544 = vunpack.c.l.b16 %v3479
    %v3545 = vunpack.c.l.b16 %v3480
    %v3546 = vunpack.c.l.b16 %v3481
    %v3547 = vunpack.c.l.b16 %v3482
    %v3548 = vunpack.c.l.b16 %v3483
    %v3549 = vunpack.c.l.b16 %v3484
    %v3550 = vunpack.c.l.b16 %v3485
    %v3551 = vunpack.c.l.b16 %v3486
    %v3552 = vunpack.c.l.b16 %v3487
    %v3553 = vunpack.c.l.b16 %v3488
    %v3554 = vunpack.c.l.b16 %v3489
    %v3555 = vunpack.c.l.b16 %v3490
    %v3556 = vunpack.c.l.b16 %v3491
    %v3557 = vunpack.c.l.b16 %v3492
    %v3558 = vunpack.c.l.b16 %v3493
    %v3559 = vunpack.c.l.b16 %v3494
    %v3560 = vunpack.c.l.b16 %v3495
    %v3561 = vunpack.c.l.b16 %v3496
    %v3562 = vunpack.c.l.b16 %v3497
    %v3563 = vunpack.c.l.b16 %v3498
    %v3564 = vunpack.c.l.b16 %v3499
    %v3565 = vpack.c.b16 %v3534, %v3533
    %v3566 = vpack.c.b16 %v3536, %v3535
    %v3567 = vpack.c.b16 %v3538, %v3537
    %v3568 = vpack.c.b16 %v3540, %v3539
    %v3569 = vpack.c.b16 %v3542, %v3541
    %v3570 = vpack.c.b16 %v3544, %v3543
    %v3571 = vpack.c.b16 %v3546, %v3545
    %v3572 = vpack.c.b16 %v3548, %v3547
    %v3573 = vpack.c.b16 %v3550, %v3549
    %v3574 = vpack.c.b16 %v3552, %v3551
    %v3575 = vpack.c.b16 %v3554, %v3553
    %v3576 = vpack.c.b16 %v3556, %v3555
    %v3577 = vpack.c.b16 %v3558, %v3557
    %v3578 = vpack.c.b16 %v3560, %v3559
    %v3579 = vpack.c.b16 %v3562, %v3561
    %v3580 = vpack.c.b16 %v3564, %v3563
    %3597 = vmatpush.bf16.msra.mxu0 %v3572
    %3598 = vmatpush.bf16.msra.mxu0 %v3571
    %3599 = vmatpush.bf16.msra.mxu0 %v3570
    %3600 = vmatpush.bf16.msra.mxu0 %v3569
    %3601 = vmatpush.bf16.msra.mxu0 %v3568
    %3602 = vmatpush.bf16.msra.mxu0 %v3567
    %3603 = vmatpush.bf16.msra.mxu0 %v3566
    %3604 = vmatpush.bf16.msra.mxu0 %v3565
    %3605 = vmatmul.bf16.gmra.mxu0 %v3466
    %v3606 = vpop.f32.mrf.mxu0
    %v3607 = vadd.f32 %v3500, %v3606
    %v3608 = vpop.f32.mrf.mxu0
    %v3609 = vadd.f32 %v3500, %v3608
    %3610 = vdwg.mxu0
    %3611 = vmatpush.bf16.msra.mxu0 %v3580
    %3612 = vmatpush.bf16.msra.mxu0 %v3579
    %3613 = vmatpush.bf16.msra.mxu0 %v3578
    %3614 = vmatpush.bf16.msra.mxu0 %v3577
    %3615 = vmatpush.bf16.msra.mxu0 %v3576
    %3616 = vmatpush.bf16.msra.mxu0 %v3575
    %3617 = vmatpush.bf16.msra.mxu0 %v3574
    %3618 = vmatpush.bf16.msra.mxu0 %v3573
    %3619 = vmatmul.bf16.gmra.mxu0 %v3467
    %v3620 = vpop.f32.mrf.mxu0
    %v3621 = vadd.f32 %v3607, %v3620
    %v3622 = vpop.f32.mrf.mxu0
    %v3623 = vadd.f32 %v3609, %v3622
    %3624 = vdwg.mxu0
    %vm3625 = vcmp.ge.f32.partialorder %v3621, 0.0
    %vm3626 = vcmp.ge.f32.partialorder %v3623, 0.0
    %v3627 = vmul.f32 %v3621, 0.01
    %v3628 = vmul.f32 %v3623, 0.01
    %v3629 = vsel %vm3625, %v3621, %v3627
    %v3630 = vsel %vm3626, %v3623, %v3628
    %v3631 = vsel %vm221, %v3629, 0.0
    %v3632 = vsel %vm222, %v3630, 0.0
    %v3633 = vadd.f32 %v3631, %v3632
    %v3634 = vrot.slane %v3633, 4
    %v3635 = vadd.f32 %v3633, %v3634
    %v3636 = vrot.slane %v3635, 2
    %v3637 = vadd.f32 %v3635, %v3636
    %v3638 = vrot.slane %v3637, 1
    %v3639 = vadd.f32 %v3637, %v3638
    %v3640 = vmul.f32 %v3639, 0.125
    %v3641 = vsub.f32 %v3629, %v3640
    %v3642 = vsub.f32 %v3630, %v3640
    %v3643 = vsel %vm221, %v3641, 0.0
    %v3644 = vsel %vm222, %v3642, 0.0
    %v3645 = vmul.f32 %v3643, %v3643
    %v3646 = vmul.f32 %v3644, %v3644
    %v3647 = vadd.f32 %v3645, %v3646
    %v3648 = vrot.slane %v3647, 4
    %v3649 = vadd.f32 %v3647, %v3648
    %v3650 = vrot.slane %v3649, 2
    %v3651 = vadd.f32 %v3649, %v3650
    %v3652 = vrot.slane %v3651, 1
    %v3653 = vadd.f32 %v3651, %v3652
    %v3654 = vmul.f32 %v3653, 0.125
    %v3655 = vadd.f32 %v3654, 1e-05
    %v3656 = vrsqrt.pop %v3655
    %v3657 = vmul.f32 %v3656, %v3655
    %v3658 = vmul.f32 %v3657, %v3656
    %v3659 = vmul.f32 0.5, %v3658
    %v3660 = vsub.f32 1.5, %v3659
    %v3661 = vmul.f32 %v3656, %v3660
    %vm3662 = vweird.f32 %v3655
    %vm3663 = vweird.f32 %v3656
    %vm3664 = vmor %vm3662, %vm3663
    %v3665 = vsel %vm3664, %v3656, %v3661
    %v3666 = vmul.f32 %v3641, %v3665
    %v3667 = vmul.f32 %v3642, %v3665
    %v3668 = vpack.c.bf16 %v3667, %v3666
    %v3669 = vld [vmem:[#allocation2 + $0x940] sm:$0xf]
    %v3670 = vld [vmem:[#allocation2 + $0x944] sm:$0xf]
    %v3671 = vld [vmem:[#allocation2 + $0x948] sm:$0xf]
    %v3672 = vld [vmem:[#allocation2 + $0x94c] sm:$0xf]
    %v3673 = vld [vmem:[#allocation2 + $0x950] sm:$0xf]
    %v3674 = vld [vmem:[#allocation2 + $0x954] sm:$0xf]
    %v3675 = vld [vmem:[#allocation2 + $0x958] sm:$0xf]
    %v3676 = vld [vmem:[#allocation2 + $0x95c] sm:$0xf]
    %v3677 = vld [vmem:[#allocation2 + $0x960] sm:$0xf]
    %v3678 = vld [vmem:[#allocation2 + $0x964] sm:$0xf]
    %v3679 = vld [vmem:[#allocation2 + $0x968] sm:$0xf]
    %v3680 = vld [vmem:[#allocation2 + $0x96c] sm:$0xf]
    %v3681 = vld [vmem:[#allocation2 + $0x970] sm:$0xf]
    %v3682 = vld [vmem:[#allocation2 + $0x974] sm:$0xf]
    %v3683 = vld [vmem:[#allocation2 + $0x978] sm:$0xf]
    %v3684 = vld [vmem:[#allocation2 + $0x97c] sm:$0xf]
    %v3685 = vld [vmem:[#allocation4 + $0x5] ss:$0 sm:$0xff]
    %v3702 = vunpack.c.l.b16 %v3669
    %v3703 = vunpack.c.l.b16 %v3670
    %v3704 = vunpack.c.l.b16 %v3671
    %v3705 = vunpack.c.l.b16 %v3672
    %v3706 = vunpack.c.l.b16 %v3673
    %v3707 = vunpack.c.l.b16 %v3674
    %v3708 = vunpack.c.l.b16 %v3675
    %v3709 = vunpack.c.l.b16 %v3676
    %v3710 = vunpack.c.l.b16 %v3677
    %v3711 = vunpack.c.l.b16 %v3678
    %v3712 = vunpack.c.l.b16 %v3679
    %v3713 = vunpack.c.l.b16 %v3680
    %v3714 = vunpack.c.l.b16 %v3681
    %v3715 = vunpack.c.l.b16 %v3682
    %v3716 = vunpack.c.l.b16 %v3683
    %v3717 = vunpack.c.l.b16 %v3684
    %v3718 = vpack.c.b16 %v3703, %v3702
    %v3719 = vpack.c.b16 %v3705, %v3704
    %v3720 = vpack.c.b16 %v3707, %v3706
    %v3721 = vpack.c.b16 %v3709, %v3708
    %v3722 = vpack.c.b16 %v3711, %v3710
    %v3723 = vpack.c.b16 %v3713, %v3712
    %v3724 = vpack.c.b16 %v3715, %v3714
    %v3725 = vpack.c.b16 %v3717, %v3716
    %3734 = vmatpush.bf16.msra.mxu0 %v3725
    %3735 = vmatpush.bf16.msra.mxu0 %v3724
    %3736 = vmatpush.bf16.msra.mxu0 %v3723
    %3737 = vmatpush.bf16.msra.mxu0 %v3722
    %3738 = vmatpush.bf16.msra.mxu0 %v3721
    %3739 = vmatpush.bf16.msra.mxu0 %v3720
    %3740 = vmatpush.bf16.msra.mxu0 %v3719
    %3741 = vmatpush.bf16.msra.mxu0 %v3718
    %3742 = vmatmul.bf16.gmra.mxu0 %v3668
    %v3743 = vpop.f32.mrf.mxu0
    %v3744 = vadd.f32 %v3685, %v3743
    %v3745 = vpop.f32.mrf.mxu0
    %v3746 = vadd.f32 %v3685, %v3745
    %3747 = vdwg.mxu0
    %vm3748 = vcmp.ge.f32.partialorder %v3744, 0.0
    %vm3749 = vcmp.ge.f32.partialorder %v3746, 0.0
    %v3750 = vmul.f32 %v3744, 0.01
    %v3751 = vmul.f32 %v3746, 0.01
    %v3752 = vsel %vm3748, %v3744, %v3750
    %v3753 = vsel %vm3749, %v3746, %v3751
    %v3754 = vsel %vm221, %v3752, 0.0
    %v3755 = vsel %vm222, %v3753, 0.0
    %v3756 = vadd.f32 %v3754, %v3755
    %v3757 = vrot.slane %v3756, 4
    %v3758 = vadd.f32 %v3756, %v3757
    %v3759 = vrot.slane %v3758, 2
    %v3760 = vadd.f32 %v3758, %v3759
    %v3761 = vrot.slane %v3760, 1
    %v3762 = vadd.f32 %v3760, %v3761
    %v3763 = vmul.f32 %v3762, 0.125
    %v3764 = vsub.f32 %v3752, %v3763
    %v3765 = vsub.f32 %v3753, %v3763
    %v3766 = vsel %vm221, %v3764, 0.0
    %v3767 = vsel %vm222, %v3765, 0.0
    %v3768 = vmul.f32 %v3766, %v3766
    %v3769 = vmul.f32 %v3767, %v3767
    %v3770 = vadd.f32 %v3768, %v3769
    %v3771 = vrot.slane %v3770, 4
    %v3772 = vadd.f32 %v3770, %v3771
    %v3773 = vrot.slane %v3772, 2
    %v3774 = vadd.f32 %v3772, %v3773
    %v3775 = vrot.slane %v3774, 1
    %v3776 = vadd.f32 %v3774, %v3775
    %v3777 = vmul.f32 %v3776, 0.125
    %v3778 = vadd.f32 %v3777, 1e-05
    %v3779 = vrsqrt.pop %v3778
    %v3780 = vmul.f32 %v3779, %v3778
    %v3781 = vmul.f32 %v3780, %v3779
    %v3782 = vmul.f32 0.5, %v3781
    %v3783 = vsub.f32 1.5, %v3782
    %v3784 = vmul.f32 %v3779, %v3783
    %vm3785 = vweird.f32 %v3778
    %vm3786 = vweird.f32 %v3779
    %vm3787 = vmor %vm3785, %vm3786
    %v3788 = vsel %vm3787, %v3779, %v3784
    %v3789 = vmul.f32 %v3764, %v3788
    %v3790 = vmul.f32 %v3765, %v3788
    %v3791 = vpack.c.bf16 %v3790, %v3789
    %v3792 = vld [vmem:[#allocation2 + $0x980] sm:$0xf]
    %v3793 = vld [vmem:[#allocation2 + $0x984] sm:$0xf]
    %v3794 = vld [vmem:[#allocation2 + $0x988] sm:$0xf]
    %v3795 = vld [vmem:[#allocation2 + $0x98c] sm:$0xf]
    %v3796 = vld [vmem:[#allocation2 + $0x990] sm:$0xf]
    %v3797 = vld [vmem:[#allocation2 + $0x994] sm:$0xf]
    %v3798 = vld [vmem:[#allocation2 + $0x998] sm:$0xf]
    %v3799 = vld [vmem:[#allocation2 + $0x99c] sm:$0xf]
    %v3800 = vld [vmem:[#allocation2 + $0x9a0] sm:$0xf]
    %v3801 = vld [vmem:[#allocation2 + $0x9a4] sm:$0xf]
    %v3802 = vld [vmem:[#allocation2 + $0x9a8] sm:$0xf]
    %v3803 = vld [vmem:[#allocation2 + $0x9ac] sm:$0xf]
    %v3804 = vld [vmem:[#allocation2 + $0x9b0] sm:$0xf]
    %v3805 = vld [vmem:[#allocation2 + $0x9b4] sm:$0xf]
    %v3806 = vld [vmem:[#allocation2 + $0x9b8] sm:$0xf]
    %v3807 = vld [vmem:[#allocation2 + $0x9bc] sm:$0xf]
    %v3808 = vld [vmem:[#allocation4 + $0x6] ss:$0 sm:$0xff]
    %v3825 = vunpack.c.l.b16 %v3792
    %v3826 = vunpack.c.l.b16 %v3793
    %v3827 = vunpack.c.l.b16 %v3794
    %v3828 = vunpack.c.l.b16 %v3795
    %v3829 = vunpack.c.l.b16 %v3796
    %v3830 = vunpack.c.l.b16 %v3797
    %v3831 = vunpack.c.l.b16 %v3798
    %v3832 = vunpack.c.l.b16 %v3799
    %v3833 = vunpack.c.l.b16 %v3800
    %v3834 = vunpack.c.l.b16 %v3801
    %v3835 = vunpack.c.l.b16 %v3802
    %v3836 = vunpack.c.l.b16 %v3803
    %v3837 = vunpack.c.l.b16 %v3804
    %v3838 = vunpack.c.l.b16 %v3805
    %v3839 = vunpack.c.l.b16 %v3806
    %v3840 = vunpack.c.l.b16 %v3807
    %v3841 = vpack.c.b16 %v3826, %v3825
    %v3842 = vpack.c.b16 %v3828, %v3827
    %v3843 = vpack.c.b16 %v3830, %v3829
    %v3844 = vpack.c.b16 %v3832, %v3831
    %v3845 = vpack.c.b16 %v3834, %v3833
    %v3846 = vpack.c.b16 %v3836, %v3835
    %v3847 = vpack.c.b16 %v3838, %v3837
    %v3848 = vpack.c.b16 %v3840, %v3839
    %3857 = vmatpush.bf16.msra.mxu0 %v3848
    %3858 = vmatpush.bf16.msra.mxu0 %v3847
    %3859 = vmatpush.bf16.msra.mxu0 %v3846
    %3860 = vmatpush.bf16.msra.mxu0 %v3845
    %3861 = vmatpush.bf16.msra.mxu0 %v3844
    %3862 = vmatpush.bf16.msra.mxu0 %v3843
    %3863 = vmatpush.bf16.msra.mxu0 %v3842
    %3864 = vmatpush.bf16.msra.mxu0 %v3841
    %3865 = vmatmul.bf16.gmra.mxu0 %v3791
    %v3866 = vpop.f32.mrf.mxu0
    %v3867 = vadd.f32 %v3808, %v3866
    %v3868 = vpop.f32.mrf.mxu0
    %v3869 = vadd.f32 %v3808, %v3868
    %3870 = vdwg.mxu0
    %v3871 = vlaneseq
    %v3872 = vand.u32 %v3871, 127
    %vm3873 = vcmp.lt.s32.totalorder %v3872, 10
    %v3874 = vsel %vm3873, %v3867, -inf
    %v3875 = vsel %vm3873, %v3869, -inf
    %3876 = vmax.xlane.f32.xlu0 %v3874
    %v3877 = vpop.xlane.xlu0 %3876
    %3878 = vmax.xlane.f32.xlu0 %v3875
    %v3879 = vpop.xlane.xlu0 %3878
    %v3880 = vsub.f32 %v3874, %v3877
    %v3881 = vsub.f32 %v3875, %v3879
    %v3882 = vmul.f32 %v3880, 1.442695
    %v3883 = vpow.pop %v3882
    %v3884 = vmul.f32 %v3881, 1.442695
    %v3885 = vpow.pop %v3884
    %3886 = vadd.xlane.f32.xlu0 %v3883
    %v3887 = vpop.xlane.xlu0 %3886
    %3888 = vadd.xlane.f32.xlu0 %v3885
    %v3889 = vpop.xlane.xlu0 %3888
    %v3890 = vlog2.pop %v3887
    %v3891 = vmul.f32 %v3890, 0.6931472
    %v3892 = vlog2.pop %v3889
    %v3893 = vmul.f32 %v3892, 0.6931472
    %v3894 = vsub.f32 %v3880, %v3891
    %v3895 = vsub.f32 %v3881, %v3893
    %v3896 = vsel %vm3873, %v3894, 0.0
    %v3897 = vsel %vm3873, %v3895, 0.0
    %3898 = vst [vmem:[%s3] sm:$0xff] %v3896
    %3899 = vst [vmem:[%s3 + $0x8] sm:$0xff] %v3897
    // Predicated region
    $region22: #{image_classifier_forward.1} parent=1 // pred_check
      _
    $region23: #{image_classifier_forward.1} parent=1 // pred_check_branch
      %3901 = sbr.rel (0) target = $region25
    $region24: #{image_classifier_forward.1} parent=1 // pred_region
      _
    $region25: #{image_classifier_forward.1} parent=1 // pred_fallthru
      _
    // Predicated region
    $region26: #{image_classifier_forward.1} parent=1 // pred_check
      _
    $region27: #{image_classifier_forward.1} parent=1 // pred_check_branch
      %3903 = sbr.rel (0) target = $region29
    $region28: #{image_classifier_forward.1} parent=1 // pred_region
      _
    $region29: #{image_classifier_forward.1} parent=1 // pred_fallthru
      _
    %3904 = vsyncpa [#allocation3], 1
    %3905 = vsyncpa [#allocation5], 1

</llo_original>
